<compile_context>
chip_gen: v5e
topology: v5e:2x2
jax: 0.10.0
libtpu: 0.0.40
codegen_flags: <defaults>
</compile_context>

<pallas_src>
import functools

import jax
import jax.numpy as jnp
from jax.experimental import pallas as pl
from jax.experimental.pallas import tpu as pltpu

EPS = 1e-5


def _layer_norm(v, eps=EPS):
    """ATN with a single memory entry == per-row layer-norm (population var).

    Two-pass centered variance (E[(v-mean)^2]) — robust to large pre-activation
    magnitudes; one extra VALU pass is free on this mem/overhead-bound kernel."""
    mean = jnp.mean(v, axis=-1, keepdims=True)
    d = v - mean
    var = jnp.mean(d * d, axis=-1, keepdims=True)
    return d * jax.lax.rsqrt(var + eps)


def _sigmoid(z):
    # sigmoid(z) = 0.5 * (tanh(z/2) + 1): one EUP transcendental per element.
    return 0.5 * jnp.tanh(0.5 * z) + 0.5


def atn_lstm_kernel(x_ref, h0_ref, c0_ref, wih_ref, whh_ref, bh_ref, bx_ref,
                    h1_ref, c1_ref):
    # Inputs arrive f32; cast to bf16 in VMEM right before the MXU (saves the
    # wrapper-side cast's extra HBM pass). Accumulate in f32.
    h0_b = h0_ref[...].astype(jnp.bfloat16)
    x_b = x_ref[...].astype(jnp.bfloat16)
    whh_b = whh_ref[...].astype(jnp.bfloat16)
    wih_b = wih_ref[...].astype(jnp.bfloat16)

    # Note: K = I / H only half-fills the 256x256 MXU on v6e/v7x; acceptable
    # here since the kernel is memory/overhead-bound at these sizes.
    wh = jnp.dot(h0_b, whh_b, preferred_element_type=jnp.float32) + bh_ref[...]
    wi = jnp.dot(x_b, wih_b, preferred_element_type=jnp.float32) + bx_ref[...]

    pre = _layer_norm(wh) + _layer_norm(wi)          # [TILE_B, 4H], f32

    H = c1_ref.shape[-1]
    f = pre[:, 0 * H:1 * H]
    i = pre[:, 1 * H:2 * H]
    o = pre[:, 2 * H:3 * H]
    g = pre[:, 3 * H:4 * H]

    c0 = c0_ref[...].astype(jnp.float32)
    c1 = _sigmoid(f) * c0 + _sigmoid(i) * jnp.tanh(g)
    h1 = _sigmoid(o) * jnp.tanh(_layer_norm(c1))

    h1_ref[...] = h1.astype(h1_ref.dtype)
    c1_ref[...] = c1.astype(c1_ref.dtype)


def _tpu_vmem_capacity_bytes():
    """Physical VMEM per TensorCore; 128 MiB (v5e/v6e class) if unknown."""
    try:
        return int(pltpu.get_tpu_info().vmem_capacity_bytes)
    except Exception:  # query unavailable (e.g. interpret mode / old jaxlib)
        return 128 << 20


def _vmem_limit_bytes(tile_b, input_size, hidden_size, vmem_capacity):
    """VMEM budget: double-buffered f32 tile I/O + resident f32 weights +
    in-kernel bf16 copies + live f32 intermediates, 2x headroom, capped
    generation-aware (~40 MiB on 64 MiB v7x parts, ~96 MiB on 128 MiB parts)."""
    G = 4 * hidden_size
    f32 = 4
    resident_w = (input_size + hidden_size) * G * f32 + 2 * G * f32
    bf16_copies = ((input_size + hidden_size) * G
                   + tile_b * (input_size + hidden_size)) * 2
    tiled_io = 2 * tile_b * (input_size + 4 * hidden_size) * f32
    live_f32 = 8 * tile_b * G * f32
    est = resident_w + bf16_copies + tiled_io + live_f32
    cap = (40 << 20) if vmem_capacity < (100 << 20) else (96 << 20)
    return int(min(max(2 * est, 16 << 20), cap))


def atn_lstm_cell(x, h0, c0, w_ih, w_hh, bias_h, bias_x, *, tile_b=None,
                  core_parallel=None):
    B, I = x.shape
    _, H = h0.shape
    G = 4 * H

    vmem_cap = _tpu_vmem_capacity_bytes()
    looks_like_v7x = vmem_cap < (100 << 20)   # 64 MiB/TC parts

    # Batch tile: as large as comfortably fits VMEM (amortizes the ~0.35 us
    # per-grid-step overhead and approaches the HBM roofline); smaller default
    # on v7x's 64 MiB VMEM. Tiled inputs are f32 so (8,128) is the min tile.
    if tile_b is None:
        tile_b = 256 if looks_like_v7x else 512
    tile_b = min(tile_b, B)
    if tile_b != B and tile_b % 8 != 0:
        tile_b = max(8, (tile_b // 8) * 8)
    # On v7x make sure both TensorCores get at least one batch tile.
    if looks_like_v7x and B >= 16 and pl.cdiv(B, tile_b) < 2:
        tile_b = max(8, ((B // 2 + 7) // 8) * 8)
    num_tiles = pl.cdiv(B, tile_b)

    if core_parallel is None:
        core_parallel = looks_like_v7x and num_tiles >= 2
    dim_sem = (pltpu.CORE_PARALLEL,) if core_parallel else ("parallel",)

    # Biases as f32 [1, 4H] rows (tiny; reshape is free wrapper plumbing).
    bh2 = bias_h.reshape(1, G).astype(jnp.float32)
    bx2 = bias_x.reshape(1, G).astype(jnp.float32)
    out_dtype = c0.dtype

    grid_spec = pltpu.PrefetchScalarGridSpec(
        num_scalar_prefetch=0,
        grid=(num_tiles,),
        in_specs=[
            pl.BlockSpec((tile_b, I), lambda i: (i, 0)),   # x        (tiled, f32)
            pl.BlockSpec((tile_b, H), lambda i: (i, 0)),   # h0       (tiled, f32)
            pl.BlockSpec((tile_b, H), lambda i: (i, 0)),   # c0       (tiled, f32)
            pl.BlockSpec((I, G), lambda i: (0, 0)),        # w_ih     (resident)
            pl.BlockSpec((H, G), lambda i: (0, 0)),        # w_hh     (resident)
            pl.BlockSpec((1, G), lambda i: (0, 0)),        # bias_h   (resident)
            pl.BlockSpec((1, G), lambda i: (0, 0)),        # bias_x   (resident)
        ],
        out_specs=(
            pl.BlockSpec((tile_b, H), lambda i: (i, 0)),   # h1
            pl.BlockSpec((tile_b, H), lambda i: (i, 0)),   # c1
        ),
    )

    cost = pl.CostEstimate(
        flops=2 * B * (I + H) * G,
        transcendentals=B * (5 * H + 3),      # 5 tanh per hidden elem + 3 rsqrt/row
        bytes_accessed=(B * I * 4 + 2 * B * H * 4          # x, h0, c0 (f32)
                        + (I + H) * G * 4 + 2 * G * 4      # weights, biases (f32)
                        + 2 * B * H * 4),                  # h1, c1
    )

    h1, c1 = pl.pallas_call(
        atn_lstm_kernel,
        out_shape=(jax.ShapeDtypeStruct((B, H), out_dtype),
                   jax.ShapeDtypeStruct((B, H), out_dtype)),
        grid_spec=grid_spec,
        compiler_params=pltpu.CompilerParams(
            dimension_semantics=dim_sem,
            vmem_limit_bytes=_vmem_limit_bytes(tile_b, I, H, vmem_cap),
        ),
        cost_estimate=cost,
    )(x, h0, c0, w_ih, w_hh, bh2, bx2)
    return h1, c1


def atn_lstm_cell_ref(x, h0, c0, w_ih, w_hh, bias_h, bias_x):
    """Pure-JAX reference with the same bf16-matmul/f32-math choices as the kernel."""
    wh = jnp.dot(h0.astype(jnp.bfloat16), w_hh.astype(jnp.bfloat16),
                 preferred_element_type=jnp.float32) + bias_h[None, :]
    wi = jnp.dot(x.astype(jnp.bfloat16), w_ih.astype(jnp.bfloat16),
                 preferred_element_type=jnp.float32) + bias_x[None, :]
    pre = _layer_norm(wh) + _layer_norm(wi)
    H = h0.shape[1]
    f, i, o, g = pre[:, :H], pre[:, H:2 * H], pre[:, 2 * H:3 * H], pre[:, 3 * H:]
    c1 = _sigmoid(f) * c0 + _sigmoid(i) * jnp.tanh(g)
    h1 = _sigmoid(o) * jnp.tanh(_layer_norm(c1))
    return h1, c1


def atn_lstm_cell_ref_f32(x, h0, c0, w_ih, w_hh, bias_h, bias_x):
    """Full-f32 reference mirroring the PyTorch forward (first call after init)."""
    wh = h0 @ w_hh + bias_h[None, :]
    wi = x @ w_ih + bias_x[None, :]
    pre = _layer_norm(wh) + _layer_norm(wi)
    H = h0.shape[1]
    f, i, o, g = pre[:, :H], pre[:, H:2 * H], pre[:, 2 * H:3 * H], pre[:, 3 * H:]
    c1 = jax.nn.sigmoid(f) * c0 + jax.nn.sigmoid(i) * jnp.tanh(g)
    h1 = jax.nn.sigmoid(o) * jnp.tanh(_layer_norm(c1))
    return h1, c1


if __name__ == "__main__":
    key = jax.random.PRNGKey(0)
    # Lane-dense small shapes: H=128 keeps gate slices & output stores unmasked;
    # B=128 with tile_b=64 exercises the batch grid / pipelining.
    B, I, H = 128, 128, 128       # batch, input_size, hidden_size
    G = 4 * H

    k_x, k_h, k_c, k_wi, k_wh, k_bh, k_bx = jax.random.split(key, 7)
    x = jax.random.normal(k_x, (B, I), dtype=jnp.float32)
    h0 = jax.random.normal(k_h, (B, H), dtype=jnp.float32)
    c0 = jax.random.normal(k_c, (B, H), dtype=jnp.float32)

    # Module-shaped parameters. Unlike reset_parameters (identity w_hh, zero
    # biases) we perturb w_hh and use nonzero biases so bias placement relative
    # to the layer norms and the weight layout are actually exercised.
    w_ih = jax.random.normal(k_wi, (I, G), dtype=jnp.float32) / float(I) ** 0.5
    w_hh = (jnp.tile(jnp.eye(H, dtype=jnp.float32), (1, 4))
            + 0.1 * jax.random.normal(k_wh, (H, G), dtype=jnp.float32))
    bias_h = 0.1 * jax.random.normal(k_bh, (G,), dtype=jnp.float32)
    bias_x = 0.1 * jax.random.normal(k_bx, (G,), dtype=jnp.float32)

    def _run(core_parallel):
        fn = jax.jit(functools.partial(atn_lstm_cell, tile_b=64,
                                       core_parallel=core_parallel))
        out = fn(x, h0, c0, w_ih, w_hh, bias_h, bias_x)
        jax.block_until_ready(out)
        return out

    try:
        # Auto: CORE_PARALLEL only on v7x-like parts, plain "parallel" otherwise.
        h1, c1 = _run(None)
    except Exception:
        # Conservative fallback if the core-parallel lowering is rejected.
        h1, c1 = _run(False)

    # Tight check against a reference with identical bf16-matmul semantics.
    h1_r, c1_r = atn_lstm_cell_ref(x, h0, c0, w_ih, w_hh, bias_h, bias_x)
    assert jnp.allclose(h1, h1_r, atol=2e-3, rtol=2e-3)
    assert jnp.allclose(c1, c1_r, atol=2e-3, rtol=2e-3)

    # Loose sanity check against the pure-f32 PyTorch-equivalent math
    # (difference bounded by bf16 quantization of the matmul inputs).
    h1_f, c1_f = atn_lstm_cell_ref_f32(x, h0, c0, w_ih, w_hh, bias_h, bias_x)
    assert jnp.allclose(h1, h1_f, atol=1e-1)
    assert jnp.allclose(c1, c1_f, atol=1e-1)

    print("KERNEL_OK")
</pallas_src>

<mosaic_0001>
module attributes {stable_mosaic.version = 11 : i64} {
  func.func @atn_lstm_kernel(%arg0: i32, %arg1: memref<64x128xf32, #tpu.memory_space<vmem>>, %arg2: memref<64x128xf32, #tpu.memory_space<vmem>>, %arg3: memref<64x128xf32, #tpu.memory_space<vmem>>, %arg4: memref<128x512xf32, #tpu.memory_space<vmem>>, %arg5: memref<128x512xf32, #tpu.memory_space<vmem>>, %arg6: memref<1x512xf32, #tpu.memory_space<vmem>>, %arg7: memref<1x512xf32, #tpu.memory_space<vmem>>, %arg8: memref<64x128xf32, #tpu.memory_space<vmem>>, %arg9: memref<64x128xf32, #tpu.memory_space<vmem>>) attributes {dimension_semantics = [#tpu.dimension_semantics<parallel>], iteration_bounds = array<i64: 2>, scalar_prefetch = 0 : i64, scratch_operands = 0 : i64, tpu.core_type = #tpu.core_type<tc>, window_params = [{transform_indices = @transform_0, window_bounds = array<i64: 64, 128>}, {transform_indices = @transform_1, window_bounds = array<i64: 64, 128>}, {transform_indices = @transform_2, window_bounds = array<i64: 64, 128>}, {pipeline_mode = #tpu.pipeline_mode<synchronous>, transform_indices = @transform_3, window_bounds = array<i64: 128, 512>}, {pipeline_mode = #tpu.pipeline_mode<synchronous>, transform_indices = @transform_4, window_bounds = array<i64: 128, 512>}, {pipeline_mode = #tpu.pipeline_mode<synchronous>, transform_indices = @transform_5, window_bounds = array<i64: 1, 512>}, {pipeline_mode = #tpu.pipeline_mode<synchronous>, transform_indices = @transform_6, window_bounds = array<i64: 1, 512>}, {transform_indices = @transform_7, window_bounds = array<i64: 64, 128>}, {transform_indices = @transform_8, window_bounds = array<i64: 64, 128>}]} {
    %c0 = arith.constant 0 : index
    %c0_0 = arith.constant 0 : index
    %0 = vector.load %arg2[%c0, %c0_0] : memref<64x128xf32, #tpu.memory_space<vmem>>, vector<64x128xf32>
    %1 = arith.truncf %0 : vector<64x128xf32> to vector<64x128xbf16>
    %c0_1 = arith.constant 0 : index
    %c0_2 = arith.constant 0 : index
    %2 = vector.load %arg1[%c0_1, %c0_2] : memref<64x128xf32, #tpu.memory_space<vmem>>, vector<64x128xf32>
    %3 = arith.truncf %2 : vector<64x128xf32> to vector<64x128xbf16>
    %c0_3 = arith.constant 0 : index
    %c0_4 = arith.constant 0 : index
    %4 = vector.load %arg5[%c0_3, %c0_4] : memref<128x512xf32, #tpu.memory_space<vmem>>, vector<128x512xf32>
    %5 = arith.truncf %4 : vector<128x512xf32> to vector<128x512xbf16>
    %c0_5 = arith.constant 0 : index
    %c0_6 = arith.constant 0 : index
    %6 = vector.load %arg4[%c0_5, %c0_6] : memref<128x512xf32, #tpu.memory_space<vmem>>, vector<128x512xf32>
    %7 = arith.truncf %6 : vector<128x512xf32> to vector<128x512xbf16>
    %cst = arith.constant dense<0.000000e+00> : vector<64x512xf32>
    %8 = tpu.matmul %1, %5, %cst {dimension_numbers = #tpu.dot_dimension_numbers<[1], [0], [0], [1], [0, 0, 1, 1], [], []>} : vector<64x128xbf16>, vector<128x512xbf16>, vector<64x512xf32> -> vector<64x512xf32>
    %c0_7 = arith.constant 0 : index
    %c0_8 = arith.constant 0 : index
    %9 = vector.load %arg6[%c0_7, %c0_8] : memref<1x512xf32, #tpu.memory_space<vmem>>, vector<1x512xf32>
    %10 = vector.broadcast %9 : vector<1x512xf32> to vector<64x512xf32>
    %11 = arith.addf %8, %10 : vector<64x512xf32>
    %cst_9 = arith.constant dense<0.000000e+00> : vector<64x512xf32>
    %12 = tpu.matmul %3, %7, %cst_9 {dimension_numbers = #tpu.dot_dimension_numbers<[1], [0], [0], [1], [0, 0, 1, 1], [], []>} : vector<64x128xbf16>, vector<128x512xbf16>, vector<64x512xf32> -> vector<64x512xf32>
    %c0_10 = arith.constant 0 : index
    %c0_11 = arith.constant 0 : index
    %13 = vector.load %arg7[%c0_10, %c0_11] : memref<1x512xf32, #tpu.memory_space<vmem>>, vector<1x512xf32>
    %14 = vector.broadcast %13 : vector<1x512xf32> to vector<64x512xf32>
    %15 = arith.addf %12, %14 : vector<64x512xf32>
    %cst_12 = arith.constant dense<0.000000e+00> : vector<64xf32>
    %16 = vector.multi_reduction <add>, %11, %cst_12 [1] : vector<64x512xf32> to vector<64xf32>
    %17 = vector.shape_cast %16 : vector<64xf32> to vector<64x1xf32>
    %cst_13 = arith.constant 5.120000e+02 : f32
    %18 = vector.broadcast %cst_13 : f32 to vector<64x1xf32>
    %19 = arith.divf %17, %18 : vector<64x1xf32>
    %20 = vector.broadcast %19 : vector<64x1xf32> to vector<64x512xf32>
    %21 = arith.subf %11, %20 : vector<64x512xf32>
    %22 = arith.mulf %21, %21 : vector<64x512xf32>
    %cst_14 = arith.constant dense<0.000000e+00> : vector<64xf32>
    %23 = vector.multi_reduction <add>, %22, %cst_14 [1] : vector<64x512xf32> to vector<64xf32>
    %24 = vector.shape_cast %23 : vector<64xf32> to vector<64x1xf32>
    %cst_15 = arith.constant 5.120000e+02 : f32
    %25 = vector.broadcast %cst_15 : f32 to vector<64x1xf32>
    %26 = arith.divf %24, %25 : vector<64x1xf32>
    %cst_16 = arith.constant 9.99999974E-6 : f32
    %27 = vector.broadcast %cst_16 : f32 to vector<64x1xf32>
    %28 = arith.addf %26, %27 : vector<64x1xf32>
    %29 = math.rsqrt %28 : vector<64x1xf32>
    %30 = vector.broadcast %29 : vector<64x1xf32> to vector<64x512xf32>
    %31 = arith.mulf %21, %30 : vector<64x512xf32>
    %cst_17 = arith.constant dense<0.000000e+00> : vector<64xf32>
    %32 = vector.multi_reduction <add>, %15, %cst_17 [1] : vector<64x512xf32> to vector<64xf32>
    %33 = vector.shape_cast %32 : vector<64xf32> to vector<64x1xf32>
    %cst_18 = arith.constant 5.120000e+02 : f32
    %34 = vector.broadcast %cst_18 : f32 to vector<64x1xf32>
    %35 = arith.divf %33, %34 : vector<64x1xf32>
    %36 = vector.broadcast %35 : vector<64x1xf32> to vector<64x512xf32>
    %37 = arith.subf %15, %36 : vector<64x512xf32>
    %38 = arith.mulf %37, %37 : vector<64x512xf32>
    %cst_19 = arith.constant dense<0.000000e+00> : vector<64xf32>
    %39 = vector.multi_reduction <add>, %38, %cst_19 [1] : vector<64x512xf32> to vector<64xf32>
    %40 = vector.shape_cast %39 : vector<64xf32> to vector<64x1xf32>
    %cst_20 = arith.constant 5.120000e+02 : f32
    %41 = vector.broadcast %cst_20 : f32 to vector<64x1xf32>
    %42 = arith.divf %40, %41 : vector<64x1xf32>
    %cst_21 = arith.constant 9.99999974E-6 : f32
    %43 = vector.broadcast %cst_21 : f32 to vector<64x1xf32>
    %44 = arith.addf %42, %43 : vector<64x1xf32>
    %45 = math.rsqrt %44 : vector<64x1xf32>
    %46 = vector.broadcast %45 : vector<64x1xf32> to vector<64x512xf32>
    %47 = arith.mulf %37, %46 : vector<64x512xf32>
    %48 = arith.addf %31, %47 : vector<64x512xf32>
    %49 = vector.extract_strided_slice %48 {offsets = [0, 0], sizes = [64, 128], strides = [1, 1]} : vector<64x512xf32> to vector<64x128xf32>
    %50 = vector.extract_strided_slice %48 {offsets = [0, 128], sizes = [64, 128], strides = [1, 1]} : vector<64x512xf32> to vector<64x128xf32>
    %51 = vector.extract_strided_slice %48 {offsets = [0, 256], sizes = [64, 128], strides = [1, 1]} : vector<64x512xf32> to vector<64x128xf32>
    %52 = vector.extract_strided_slice %48 {offsets = [0, 384], sizes = [64, 128], strides = [1, 1]} : vector<64x512xf32> to vector<64x128xf32>
    %c0_22 = arith.constant 0 : index
    %c0_23 = arith.constant 0 : index
    %53 = vector.load %arg3[%c0_22, %c0_23] : memref<64x128xf32, #tpu.memory_space<vmem>>, vector<64x128xf32>
    %cst_24 = arith.constant 5.000000e-01 : f32
    %54 = vector.broadcast %cst_24 : f32 to vector<64x128xf32>
    %55 = arith.mulf %54, %49 : vector<64x128xf32>
    %56 = math.tanh %55 : vector<64x128xf32>
    %cst_25 = arith.constant 5.000000e-01 : f32
    %57 = vector.broadcast %cst_25 : f32 to vector<64x128xf32>
    %58 = arith.mulf %57, %56 : vector<64x128xf32>
    %cst_26 = arith.constant 5.000000e-01 : f32
    %59 = vector.broadcast %cst_26 : f32 to vector<64x128xf32>
    %60 = arith.addf %58, %59 : vector<64x128xf32>
    %61 = arith.mulf %60, %53 : vector<64x128xf32>
    %cst_27 = arith.constant 5.000000e-01 : f32
    %62 = vector.broadcast %cst_27 : f32 to vector<64x128xf32>
    %63 = arith.mulf %62, %50 : vector<64x128xf32>
    %64 = math.tanh %63 : vector<64x128xf32>
    %cst_28 = arith.constant 5.000000e-01 : f32
    %65 = vector.broadcast %cst_28 : f32 to vector<64x128xf32>
    %66 = arith.mulf %65, %64 : vector<64x128xf32>
    %cst_29 = arith.constant 5.000000e-01 : f32
    %67 = vector.broadcast %cst_29 : f32 to vector<64x128xf32>
    %68 = arith.addf %66, %67 : vector<64x128xf32>
    %69 = math.tanh %52 : vector<64x128xf32>
    %70 = arith.mulf %68, %69 : vector<64x128xf32>
    %71 = arith.addf %61, %70 : vector<64x128xf32>
    %cst_30 = arith.constant 5.000000e-01 : f32
    %72 = vector.broadcast %cst_30 : f32 to vector<64x128xf32>
    %73 = arith.mulf %72, %51 : vector<64x128xf32>
    %74 = math.tanh %73 : vector<64x128xf32>
    %cst_31 = arith.constant 5.000000e-01 : f32
    %75 = vector.broadcast %cst_31 : f32 to vector<64x128xf32>
    %76 = arith.mulf %75, %74 : vector<64x128xf32>
    %cst_32 = arith.constant 5.000000e-01 : f32
    %77 = vector.broadcast %cst_32 : f32 to vector<64x128xf32>
    %78 = arith.addf %76, %77 : vector<64x128xf32>
    %cst_33 = arith.constant dense<0.000000e+00> : vector<64xf32>
    %79 = vector.multi_reduction <add>, %71, %cst_33 [1] : vector<64x128xf32> to vector<64xf32>
    %80 = vector.shape_cast %79 : vector<64xf32> to vector<64x1xf32>
    %cst_34 = arith.constant 1.280000e+02 : f32
    %81 = vector.broadcast %cst_34 : f32 to vector<64x1xf32>
    %82 = arith.divf %80, %81 : vector<64x1xf32>
    %83 = vector.broadcast %82 : vector<64x1xf32> to vector<64x128xf32>
    %84 = arith.subf %71, %83 : vector<64x128xf32>
    %85 = arith.mulf %84, %84 : vector<64x128xf32>
    %cst_35 = arith.constant dense<0.000000e+00> : vector<64xf32>
    %86 = vector.multi_reduction <add>, %85, %cst_35 [1] : vector<64x128xf32> to vector<64xf32>
    %87 = vector.shape_cast %86 : vector<64xf32> to vector<64x1xf32>
    %cst_36 = arith.constant 1.280000e+02 : f32
    %88 = vector.broadcast %cst_36 : f32 to vector<64x1xf32>
    %89 = arith.divf %87, %88 : vector<64x1xf32>
    %cst_37 = arith.constant 9.99999974E-6 : f32
    %90 = vector.broadcast %cst_37 : f32 to vector<64x1xf32>
    %91 = arith.addf %89, %90 : vector<64x1xf32>
    %92 = math.rsqrt %91 : vector<64x1xf32>
    %93 = vector.broadcast %92 : vector<64x1xf32> to vector<64x128xf32>
    %94 = arith.mulf %84, %93 : vector<64x128xf32>
    %95 = math.tanh %94 : vector<64x128xf32>
    %96 = arith.mulf %78, %95 : vector<64x128xf32>
    %c0_38 = arith.constant 0 : index
    %c0_39 = arith.constant 0 : index
    %97 = vector.load %arg8[%c0_38, %c0_39] : memref<64x128xf32, #tpu.memory_space<vmem>>, vector<64x128xf32>
    tpu.vector_store %arg8[%c0_38, %c0_39], %96 {strides = array<i32>} : memref<64x128xf32, #tpu.memory_space<vmem>>, vector<64x128xf32>,
    %c0_40 = arith.constant 0 : index
    %c0_41 = arith.constant 0 : index
    %98 = vector.load %arg9[%c0_40, %c0_41] : memref<64x128xf32, #tpu.memory_space<vmem>>, vector<64x128xf32>
    tpu.vector_store %arg9[%c0_40, %c0_41], %71 {strides = array<i32>} : memref<64x128xf32, #tpu.memory_space<vmem>>, vector<64x128xf32>,
    return
  }
  func.func @transform_0(%arg0: i32) -> (i32, i32) {
    %c0_i32 = arith.constant 0 : i32
    %c0_i32_0 = arith.constant 0 : i32
    return %arg0, %c0_i32 : i32, i32
  }
  func.func @transform_1(%arg0: i32) -> (i32, i32) {
    %c0_i32 = arith.constant 0 : i32
    %c0_i32_0 = arith.constant 0 : i32
    return %arg0, %c0_i32 : i32, i32
  }
  func.func @transform_2(%arg0: i32) -> (i32, i32) {
    %c0_i32 = arith.constant 0 : i32
    %c0_i32_0 = arith.constant 0 : i32
    return %arg0, %c0_i32 : i32, i32
  }
  func.func @transform_3(%arg0: i32) -> (i32, i32) {
    %c0_i32 = arith.constant 0 : i32
    %c0_i32_0 = arith.constant 0 : i32
    %c0_i32_1 = arith.constant 0 : i32
    return %c0_i32, %c0_i32_0 : i32, i32
  }
  func.func @transform_4(%arg0: i32) -> (i32, i32) {
    %c0_i32 = arith.constant 0 : i32
    %c0_i32_0 = arith.constant 0 : i32
    %c0_i32_1 = arith.constant 0 : i32
    return %c0_i32, %c0_i32_0 : i32, i32
  }
  func.func @transform_5(%arg0: i32) -> (i32, i32) {
    %c0_i32 = arith.constant 0 : i32
    %c0_i32_0 = arith.constant 0 : i32
    %c0_i32_1 = arith.constant 0 : i32
    return %c0_i32, %c0_i32_0 : i32, i32
  }
  func.func @transform_6(%arg0: i32) -> (i32, i32) {
    %c0_i32 = arith.constant 0 : i32
    %c0_i32_0 = arith.constant 0 : i32
    %c0_i32_1 = arith.constant 0 : i32
    return %c0_i32, %c0_i32_0 : i32, i32
  }
  func.func @transform_7(%arg0: i32) -> (i32, i32) {
    %c0_i32 = arith.constant 0 : i32
    %c0_i32_0 = arith.constant 0 : i32
    return %arg0, %c0_i32 : i32, i32
  }
  func.func @transform_8(%arg0: i32) -> (i32, i32) {
    %c0_i32 = arith.constant 0 : i32
    %c0_i32_0 = arith.constant 0 : i32
    return %arg0, %c0_i32 : i32, i32
  }
}

module attributes {stable_mosaic.version = 11 : i64} {
  func.func @atn_lstm_kernel(%arg0: i32, %arg1: memref<64x128xf32, #tpu.memory_space<vmem>>, %arg2: memref<64x128xf32, #tpu.memory_space<vmem>>, %arg3: memref<64x128xf32, #tpu.memory_space<vmem>>, %arg4: memref<128x512xf32, #tpu.memory_space<vmem>>, %arg5: memref<128x512xf32, #tpu.memory_space<vmem>>, %arg6: memref<1x512xf32, #tpu.memory_space<vmem>>, %arg7: memref<1x512xf32, #tpu.memory_space<vmem>>, %arg8: memref<64x128xf32, #tpu.memory_space<vmem>>, %arg9: memref<64x128xf32, #tpu.memory_space<vmem>>) attributes {dimension_semantics = [#tpu.dimension_semantics<parallel>], iteration_bounds = array<i64: 2>, scalar_prefetch = 0 : i64, scratch_operands = 0 : i64, tpu.core_type = #tpu.core_type<tc>, window_params = [{transform_indices = @transform_0, window_bounds = array<i64: 64, 128>}, {transform_indices = @transform_1, window_bounds = array<i64: 64, 128>}, {transform_indices = @transform_2, window_bounds = array<i64: 64, 128>}, {pipeline_mode = #tpu.pipeline_mode<synchronous>, transform_indices = @transform_3, window_bounds = array<i64: 128, 512>}, {pipeline_mode = #tpu.pipeline_mode<synchronous>, transform_indices = @transform_4, window_bounds = array<i64: 128, 512>}, {pipeline_mode = #tpu.pipeline_mode<synchronous>, transform_indices = @transform_5, window_bounds = array<i64: 1, 512>}, {pipeline_mode = #tpu.pipeline_mode<synchronous>, transform_indices = @transform_6, window_bounds = array<i64: 1, 512>}, {transform_indices = @transform_7, window_bounds = array<i64: 64, 128>}, {transform_indices = @transform_8, window_bounds = array<i64: 64, 128>}]} {
    %c0 = arith.constant 0 : index
    %c0_0 = arith.constant 0 : index
    %0 = vector.load %arg2[%c0, %c0_0] : memref<64x128xf32, #tpu.memory_space<vmem>>, vector<64x128xf32>
    %1 = arith.truncf %0 : vector<64x128xf32> to vector<64x128xbf16>
    %c0_1 = arith.constant 0 : index
    %c0_2 = arith.constant 0 : index
    %2 = vector.load %arg1[%c0_1, %c0_2] : memref<64x128xf32, #tpu.memory_space<vmem>>, vector<64x128xf32>
    %3 = arith.truncf %2 : vector<64x128xf32> to vector<64x128xbf16>
    %c0_3 = arith.constant 0 : index
    %c0_4 = arith.constant 0 : index
    %4 = vector.load %arg5[%c0_3, %c0_4] : memref<128x512xf32, #tpu.memory_space<vmem>>, vector<128x512xf32>
    %5 = arith.truncf %4 : vector<128x512xf32> to vector<128x512xbf16>
    %c0_5 = arith.constant 0 : index
    %c0_6 = arith.constant 0 : index
    %6 = vector.load %arg4[%c0_5, %c0_6] : memref<128x512xf32, #tpu.memory_space<vmem>>, vector<128x512xf32>
    %7 = arith.truncf %6 : vector<128x512xf32> to vector<128x512xbf16>
    %cst = arith.constant dense<0.000000e+00> : vector<64x512xf32>
    %8 = tpu.matmul %1, %5, %cst {dimension_numbers = #tpu.dot_dimension_numbers<[1], [0], [0], [1], [0, 0, 1, 1], [], []>} : vector<64x128xbf16>, vector<128x512xbf16>, vector<64x512xf32> -> vector<64x512xf32>
    %c0_7 = arith.constant 0 : index
    %c0_8 = arith.constant 0 : index
    %9 = vector.load %arg6[%c0_7, %c0_8] : memref<1x512xf32, #tpu.memory_space<vmem>>, vector<1x512xf32>
    %10 = vector.broadcast %9 : vector<1x512xf32> to vector<64x512xf32>
    %11 = arith.addf %8, %10 : vector<64x512xf32>
    %cst_9 = arith.constant dense<0.000000e+00> : vector<64x512xf32>
    %12 = tpu.matmul %3, %7, %cst_9 {dimension_numbers = #tpu.dot_dimension_numbers<[1], [0], [0], [1], [0, 0, 1, 1], [], []>} : vector<64x128xbf16>, vector<128x512xbf16>, vector<64x512xf32> -> vector<64x512xf32>
    %c0_10 = arith.constant 0 : index
    %c0_11 = arith.constant 0 : index
    %13 = vector.load %arg7[%c0_10, %c0_11] : memref<1x512xf32, #tpu.memory_space<vmem>>, vector<1x512xf32>
    %14 = vector.broadcast %13 : vector<1x512xf32> to vector<64x512xf32>
    %15 = arith.addf %12, %14 : vector<64x512xf32>
    %cst_12 = arith.constant dense<0.000000e+00> : vector<64xf32>
    %16 = vector.multi_reduction <add>, %11, %cst_12 [1] : vector<64x512xf32> to vector<64xf32>
    %17 = vector.shape_cast %16 : vector<64xf32> to vector<64x1xf32>
    %cst_13 = arith.constant 5.120000e+02 : f32
    %18 = vector.broadcast %cst_13 : f32 to vector<64x1xf32>
    %19 = arith.divf %17, %18 : vector<64x1xf32>
    %20 = vector.broadcast %19 : vector<64x1xf32> to vector<64x512xf32>
    %21 = arith.subf %11, %20 : vector<64x512xf32>
    %22 = arith.mulf %21, %21 : vector<64x512xf32>
    %cst_14 = arith.constant dense<0.000000e+00> : vector<64xf32>
    %23 = vector.multi_reduction <add>, %22, %cst_14 [1] : vector<64x512xf32> to vector<64xf32>
    %24 = vector.shape_cast %23 : vector<64xf32> to vector<64x1xf32>
    %cst_15 = arith.constant 5.120000e+02 : f32
    %25 = vector.broadcast %cst_15 : f32 to vector<64x1xf32>
    %26 = arith.divf %24, %25 : vector<64x1xf32>
    %cst_16 = arith.constant 9.99999974E-6 : f32
    %27 = vector.broadcast %cst_16 : f32 to vector<64x1xf32>
    %28 = arith.addf %26, %27 : vector<64x1xf32>
    %29 = math.rsqrt %28 : vector<64x1xf32>
    %30 = vector.broadcast %29 : vector<64x1xf32> to vector<64x512xf32>
    %31 = arith.mulf %21, %30 : vector<64x512xf32>
    %cst_17 = arith.constant dense<0.000000e+00> : vector<64xf32>
    %32 = vector.multi_reduction <add>, %15, %cst_17 [1] : vector<64x512xf32> to vector<64xf32>
    %33 = vector.shape_cast %32 : vector<64xf32> to vector<64x1xf32>
    %cst_18 = arith.constant 5.120000e+02 : f32
    %34 = vector.broadcast %cst_18 : f32 to vector<64x1xf32>
    %35 = arith.divf %33, %34 : vector<64x1xf32>
    %36 = vector.broadcast %35 : vector<64x1xf32> to vector<64x512xf32>
    %37 = arith.subf %15, %36 : vector<64x512xf32>
    %38 = arith.mulf %37, %37 : vector<64x512xf32>
    %cst_19 = arith.constant dense<0.000000e+00> : vector<64xf32>
    %39 = vector.multi_reduction <add>, %38, %cst_19 [1] : vector<64x512xf32> to vector<64xf32>
    %40 = vector.shape_cast %39 : vector<64xf32> to vector<64x1xf32>
    %cst_20 = arith.constant 5.120000e+02 : f32
    %41 = vector.broadcast %cst_20 : f32 to vector<64x1xf32>
    %42 = arith.divf %40, %41 : vector<64x1xf32>
    %cst_21 = arith.constant 9.99999974E-6 : f32
    %43 = vector.broadcast %cst_21 : f32 to vector<64x1xf32>
    %44 = arith.addf %42, %43 : vector<64x1xf32>
    %45 = math.rsqrt %44 : vector<64x1xf32>
    %46 = vector.broadcast %45 : vector<64x1xf32> to vector<64x512xf32>
    %47 = arith.mulf %37, %46 : vector<64x512xf32>
    %48 = arith.addf %31, %47 : vector<64x512xf32>
    %49 = vector.extract_strided_slice %48 {offsets = [0, 0], sizes = [64, 128], strides = [1, 1]} : vector<64x512xf32> to vector<64x128xf32>
    %50 = vector.extract_strided_slice %48 {offsets = [0, 128], sizes = [64, 128], strides = [1, 1]} : vector<64x512xf32> to vector<64x128xf32>
    %51 = vector.extract_strided_slice %48 {offsets = [0, 256], sizes = [64, 128], strides = [1, 1]} : vector<64x512xf32> to vector<64x128xf32>
    %52 = vector.extract_strided_slice %48 {offsets = [0, 384], sizes = [64, 128], strides = [1, 1]} : vector<64x512xf32> to vector<64x128xf32>
    %c0_22 = arith.constant 0 : index
    %c0_23 = arith.constant 0 : index
    %53 = vector.load %arg3[%c0_22, %c0_23] : memref<64x128xf32, #tpu.memory_space<vmem>>, vector<64x128xf32>
    %cst_24 = arith.constant 5.000000e-01 : f32
    %54 = vector.broadcast %cst_24 : f32 to vector<64x128xf32>
    %55 = arith.mulf %54, %49 : vector<64x128xf32>
    %56 = math.tanh %55 : vector<64x128xf32>
    %cst_25 = arith.constant 5.000000e-01 : f32
    %57 = vector.broadcast %cst_25 : f32 to vector<64x128xf32>
    %58 = arith.mulf %57, %56 : vector<64x128xf32>
    %cst_26 = arith.constant 5.000000e-01 : f32
    %59 = vector.broadcast %cst_26 : f32 to vector<64x128xf32>
    %60 = arith.addf %58, %59 : vector<64x128xf32>
    %61 = arith.mulf %60, %53 : vector<64x128xf32>
    %cst_27 = arith.constant 5.000000e-01 : f32
    %62 = vector.broadcast %cst_27 : f32 to vector<64x128xf32>
    %63 = arith.mulf %62, %50 : vector<64x128xf32>
    %64 = math.tanh %63 : vector<64x128xf32>
    %cst_28 = arith.constant 5.000000e-01 : f32
    %65 = vector.broadcast %cst_28 : f32 to vector<64x128xf32>
    %66 = arith.mulf %65, %64 : vector<64x128xf32>
    %cst_29 = arith.constant 5.000000e-01 : f32
    %67 = vector.broadcast %cst_29 : f32 to vector<64x128xf32>
    %68 = arith.addf %66, %67 : vector<64x128xf32>
    %69 = math.tanh %52 : vector<64x128xf32>
    %70 = arith.mulf %68, %69 : vector<64x128xf32>
    %71 = arith.addf %61, %70 : vector<64x128xf32>
    %cst_30 = arith.constant 5.000000e-01 : f32
    %72 = vector.broadcast %cst_30 : f32 to vector<64x128xf32>
    %73 = arith.mulf %72, %51 : vector<64x128xf32>
    %74 = math.tanh %73 : vector<64x128xf32>
    %cst_31 = arith.constant 5.000000e-01 : f32
    %75 = vector.broadcast %cst_31 : f32 to vector<64x128xf32>
    %76 = arith.mulf %75, %74 : vector<64x128xf32>
    %cst_32 = arith.constant 5.000000e-01 : f32
    %77 = vector.broadcast %cst_32 : f32 to vector<64x128xf32>
    %78 = arith.addf %76, %77 : vector<64x128xf32>
    %cst_33 = arith.constant dense<0.000000e+00> : vector<64xf32>
    %79 = vector.multi_reduction <add>, %71, %cst_33 [1] : vector<64x128xf32> to vector<64xf32>
    %80 = vector.shape_cast %79 : vector<64xf32> to vector<64x1xf32>
    %cst_34 = arith.constant 1.280000e+02 : f32
    %81 = vector.broadcast %cst_34 : f32 to vector<64x1xf32>
    %82 = arith.divf %80, %81 : vector<64x1xf32>
    %83 = vector.broadcast %82 : vector<64x1xf32> to vector<64x128xf32>
    %84 = arith.subf %71, %83 : vector<64x128xf32>
    %85 = arith.mulf %84, %84 : vector<64x128xf32>
    %cst_35 = arith.constant dense<0.000000e+00> : vector<64xf32>
    %86 = vector.multi_reduction <add>, %85, %cst_35 [1] : vector<64x128xf32> to vector<64xf32>
    %87 = vector.shape_cast %86 : vector<64xf32> to vector<64x1xf32>
    %cst_36 = arith.constant 1.280000e+02 : f32
    %88 = vector.broadcast %cst_36 : f32 to vector<64x1xf32>
    %89 = arith.divf %87, %88 : vector<64x1xf32>
    %cst_37 = arith.constant 9.99999974E-6 : f32
    %90 = vector.broadcast %cst_37 : f32 to vector<64x1xf32>
    %91 = arith.addf %89, %90 : vector<64x1xf32>
    %92 = math.rsqrt %91 : vector<64x1xf32>
    %93 = vector.broadcast %92 : vector<64x1xf32> to vector<64x128xf32>
    %94 = arith.mulf %84, %93 : vector<64x128xf32>
    %95 = math.tanh %94 : vector<64x128xf32>
    %96 = arith.mulf %78, %95 : vector<64x128xf32>
    %c0_38 = arith.constant 0 : index
    %c0_39 = arith.constant 0 : index
    %97 = vector.load %arg8[%c0_38, %c0_39] : memref<64x128xf32, #tpu.memory_space<vmem>>, vector<64x128xf32>
    tpu.vector_store %arg8[%c0_38, %c0_39], %96 {strides = array<i32>} : memref<64x128xf32, #tpu.memory_space<vmem>>, vector<64x128xf32>,
    %c0_40 = arith.constant 0 : index
    %c0_41 = arith.constant 0 : index
    %98 = vector.load %arg9[%c0_40, %c0_41] : memref<64x128xf32, #tpu.memory_space<vmem>>, vector<64x128xf32>
    tpu.vector_store %arg9[%c0_40, %c0_41], %71 {strides = array<i32>} : memref<64x128xf32, #tpu.memory_space<vmem>>, vector<64x128xf32>,
    return
  }
  func.func @transform_0(%arg0: i32) -> (i32, i32) {
    %c0_i32 = arith.constant 0 : i32
    %c0_i32_0 = arith.constant 0 : i32
    return %arg0, %c0_i32 : i32, i32
  }
  func.func @transform_1(%arg0: i32) -> (i32, i32) {
    %c0_i32 = arith.constant 0 : i32
    %c0_i32_0 = arith.constant 0 : i32
    return %arg0, %c0_i32 : i32, i32
  }
  func.func @transform_2(%arg0: i32) -> (i32, i32) {
    %c0_i32 = arith.constant 0 : i32
    %c0_i32_0 = arith.constant 0 : i32
    return %arg0, %c0_i32 : i32, i32
  }
  func.func @transform_3(%arg0: i32) -> (i32, i32) {
    %c0_i32 = arith.constant 0 : i32
    %c0_i32_0 = arith.constant 0 : i32
    %c0_i32_1 = arith.constant 0 : i32
    return %c0_i32, %c0_i32_0 : i32, i32
  }
  func.func @transform_4(%arg0: i32) -> (i32, i32) {
    %c0_i32 = arith.constant 0 : i32
    %c0_i32_0 = arith.constant 0 : i32
    %c0_i32_1 = arith.constant 0 : i32
    return %c0_i32, %c0_i32_0 : i32, i32
  }
  func.func @transform_5(%arg0: i32) -> (i32, i32) {
    %c0_i32 = arith.constant 0 : i32
    %c0_i32_0 = arith.constant 0 : i32
    %c0_i32_1 = arith.constant 0 : i32
    return %c0_i32, %c0_i32_0 : i32, i32
  }
  func.func @transform_6(%arg0: i32) -> (i32, i32) {
    %c0_i32 = arith.constant 0 : i32
    %c0_i32_0 = arith.constant 0 : i32
    %c0_i32_1 = arith.constant 0 : i32
    return %c0_i32, %c0_i32_0 : i32, i32
  }
  func.func @transform_7(%arg0: i32) -> (i32, i32) {
    %c0_i32 = arith.constant 0 : i32
    %c0_i32_0 = arith.constant 0 : i32
    return %arg0, %c0_i32 : i32, i32
  }
  func.func @transform_8(%arg0: i32) -> (i32, i32) {
    %c0_i32 = arith.constant 0 : i32
    %c0_i32_0 = arith.constant 0 : i32
    return %arg0, %c0_i32 : i32, i32
  }
}

</mosaic_0001>

<llo_original>
// kernel: atn_lstm_cell.1
$region0: #{atn_lstm_cell.1}
  #allocation0 [shape = 'u32[]', space=smem, size = 0x4, offset = 0x4, fixed_abs, tag = 'smem constant byte address 0x4 - core index']
  #allocation1 [shape = 'u32[72,128]{1,0:T(1,128)}', space=vmem, size = 0x9000, scoped, tag = 'internal scratch']
  %s0 = inlined_call_operand.hbm [shape: f32[128,128], index: 0, kind: input, shape index: {}]
  %s1 = inlined_call_operand.hbm [shape: f32[128,128], index: 1, kind: input, shape index: {}]
  %s2 = inlined_call_operand.hbm [shape: f32[128,128], index: 2, kind: input, shape index: {}]
  %s3 = inlined_call_operand.hbm [shape: f32[128,512], index: 3, kind: input, shape index: {}]
  %s4 = inlined_call_operand.hbm [shape: f32[128,512], index: 4, kind: input, shape index: {}]
  %s5 = inlined_call_operand.vmem [shape: f32[1,512], index: 5, kind: input, shape index: {}]
  %s6 = inlined_call_operand.hbm [shape: f32[1,512], index: 6, kind: input, shape index: {}]
  %s7 = inlined_call_operand.hbm [shape: f32[128,128], index: 7, kind: output, shape index: {0}]
  %s8 = inlined_call_operand.hbm [shape: f32[128,128], index: 8, kind: output, shape index: {1}]
  %9 = xla_tuple %s7, %s8
  %s10 = sld [smem:[#allocation0]]
  $region93: #{atn_lstm_cell.1} parent=0
    _
  %s12 = ssub.s32 1, %s10
  %s13 = scalar_select 0, %s12, %s10
  $region1: #{atn_lstm_cell.1} parent=0
    #allocation2 [shape = 'u8[65536]{0}', space=vmem, size = 0x10000, scoped, tag = 'input window, operand 0']
    #allocation3 [shape = 's32[2]{0}', space=sflag, size = 0x8, scoped, tag = 'scoped memory for atn_lstm_cell.1']
    #allocation4 [shape = 's32[2]{0}', space=sflag, size = 0x8, scoped, tag = 'scoped memory for atn_lstm_cell.1']
    #allocation5 [shape = 'u8[65536]{0}', space=vmem, size = 0x10000, scoped, tag = 'input window, operand 1']
    #allocation6 [shape = 's32[2]{0}', space=sflag, size = 0x8, scoped, tag = 'scoped memory for atn_lstm_cell.1']
    #allocation7 [shape = 'u8[65536]{0}', space=vmem, size = 0x10000, scoped, tag = 'input window, operand 2']
    #allocation8 [shape = 'u8[262144]{0}', space=vmem, size = 0x40000, scoped, tag = 'input window, operand 3, single buffered']
    #allocation9 [shape = 's32[1]{0}', space=sflag, size = 0x4, scoped, tag = 'scoped memory for atn_lstm_cell.1']
    #allocation10 [shape = 'u8[262144]{0}', space=vmem, size = 0x40000, scoped, tag = 'input window, operand 4, single buffered']
    #allocation11 [shape = 'u8[2048]{0}', space=vmem, size = 0x800, scoped, tag = 'input window, operand 6, single buffered']
    #allocation12 [shape = 's32[1]{0}', space=sflag, size = 0x4, scoped, tag = 'scoped memory for atn_lstm_cell.1']
    #allocation13 [shape = 'u8[65536]{0}', space=vmem, size = 0x10000, scoped, tag = 'output window, operand 0']
    #allocation14 [shape = 'u8[65536]{0}', space=vmem, size = 0x10000, scoped, tag = 'output window, operand 1']
    #allocation15 [shape = 's32[2]{0}', space=sflag, size = 0x8, scoped, tag = 'scoped memory for atn_lstm_cell.1']
    %14 = vsyncpa [#allocation3], 0
    %s15 = scalar_lea.sflag [#allocation3], 1
    %16 = vsyncpa %s15, 0
    %17 = vsyncpa [#allocation6], 0
    %s18 = scalar_lea.sflag [#allocation6], 1
    %19 = vsyncpa %s18, 0
    %20 = vsyncpa [#allocation9], 0
    %21 = vsyncpa [#allocation12], 0
    %22 = vsyncpa [#allocation4], 0
    %s23 = scalar_lea.sflag [#allocation4], 1
    %24 = vsyncpa %s23, 0
    %25 = vsyncpa [#allocation15], 0
    %s26 = scalar_lea.sflag [#allocation15], 1
    %27 = vsyncpa %s26, 0
    loop: start=0, step=1, limit=4
    $region2: #{atn_lstm_cell.1} parent=1 // loop_pre_header
      _
    $region3: #{atn_lstm_cell.1} parent=1 // loop_header
      %s29 = sphi 0, %s33
      %p30 = scmp.ge.s32.totalorder %s29, 4
      %s39 = sphi 0, %s41
      %s42 = sphi 0, %s39
      %s43 = sphi 0, %s42
      %s59 = sphi 0, %s43
      %s65 = sphi 0, %s67
      %s68 = sphi 0, %s65
      %s69 = sphi 0, %s68
      %s85 = sphi 0, %s69
      %s91 = sphi 0, %s93
      %s94 = sphi 0, %s91
      %s95 = sphi 0, %s94
      %s111 = sphi 0, %s95
      %s115 = sphi 0, %s115
      %s117 = sphi 0, %s115
      %s118 = sphi 0, %s117
      %s132 = sphi 0, %s118
      %s136 = sphi 0, %s136
      %s138 = sphi 0, %s136
      %s139 = sphi 0, %s138
      %s153 = sphi 0, %s139
      %s157 = sphi 0, %s157
      %s159 = sphi 0, %s157
      %s160 = sphi 0, %s159
      %s174 = sphi 0, %s160
      %s178 = sphi 0, %s178
      %s180 = sphi 0, %s178
      %s181 = sphi 0, %s180
      %s195 = sphi 0, %s181
      %s201 = sphi 0, %s203
      %s204 = sphi 0, %s201
      %s205 = sphi 0, %s204
      %s221 = sphi 0, %s205
      %s227 = sphi 0, %s229
      %s230 = sphi 0, %s227
      %s231 = sphi 0, %s230
      %s247 = sphi 0, %s231
    $region4: #{atn_lstm_cell.1} parent=1 // loop_header_branch
      %32 = sbr.rel (%p30) target = $region8
    $region5: #{atn_lstm_cell.1} parent=1 // loop_body
      %s34 = ssub.s32 %s29, 1
      %s35 = ssub.s32 %s29, 2
      %s36 = sadd.s32 %s29, 1
      %s37 = ssub.s32 %s29, %s36
      %p38 = scmp.eq.s32.totalorder %s37, 0
      %s40 = sadd.s32 %s39, 1
      %s41 = scalar_select %p38, %s39, %s40
      %p44 = pneg %p38
      %p45 = scmp.eq.s32.totalorder %s29, 1
      %p46 = por %p44, %p45
      %p47 = scmp.ne.s32.totalorder %s39, %s42
      %p48 = scmp.eq.s32.totalorder %s29, 0
      %p49 = por %p47, %p48
      %p50 = scmp.ne.s32.totalorder %s39, %s42
      %p51 = scmp.eq.s32.totalorder %s34, 1
      %p52 = por %p50, %p51
      %p53 = scmp.ne.s32.totalorder %s42, %s43
      %p54 = scmp.eq.s32.totalorder %s34, 0
      %p55 = por %p53, %p54
      %p56 = scmp.ne.s32.totalorder %s42, %s43
      %p57 = scmp.eq.s32.totalorder %s35, 1
      %p58 = por %p56, %p57
      %p60 = scmp.ne.s32.totalorder %s43, %s59
      %p61 = scmp.eq.s32.totalorder %s35, 0
      %p62 = por %p60, %p61
      %s63 = ssub.s32 %s29, %s36
      %p64 = scmp.eq.s32.totalorder %s63, 0
      %s66 = sadd.s32 %s65, 1
      %s67 = scalar_select %p64, %s65, %s66
      %p70 = pneg %p64
      %p71 = scmp.eq.s32.totalorder %s29, 1
      %p72 = por %p70, %p71
      %p73 = scmp.ne.s32.totalorder %s65, %s68
      %p74 = scmp.eq.s32.totalorder %s29, 0
      %p75 = por %p73, %p74
      %p76 = scmp.ne.s32.totalorder %s65, %s68
      %p77 = scmp.eq.s32.totalorder %s34, 1
      %p78 = por %p76, %p77
      %p79 = scmp.ne.s32.totalorder %s68, %s69
      %p80 = scmp.eq.s32.totalorder %s34, 0
      %p81 = por %p79, %p80
      %p82 = scmp.ne.s32.totalorder %s68, %s69
      %p83 = scmp.eq.s32.totalorder %s35, 1
      %p84 = por %p82, %p83
      %p86 = scmp.ne.s32.totalorder %s69, %s85
      %p87 = scmp.eq.s32.totalorder %s35, 0
      %p88 = por %p86, %p87
      %s89 = ssub.s32 %s29, %s36
      %p90 = scmp.eq.s32.totalorder %s89, 0
      %s92 = sadd.s32 %s91, 1
      %s93 = scalar_select %p90, %s91, %s92
      %p96 = pneg %p90
      %p97 = scmp.eq.s32.totalorder %s29, 1
      %p98 = por %p96, %p97
      %p99 = scmp.ne.s32.totalorder %s91, %s94
      %p100 = scmp.eq.s32.totalorder %s29, 0
      %p101 = por %p99, %p100
      %p102 = scmp.ne.s32.totalorder %s91, %s94
      %p103 = scmp.eq.s32.totalorder %s34, 1
      %p104 = por %p102, %p103
      %p105 = scmp.ne.s32.totalorder %s94, %s95
      %p106 = scmp.eq.s32.totalorder %s34, 0
      %p107 = por %p105, %p106
      %p108 = scmp.ne.s32.totalorder %s94, %s95
      %p109 = scmp.eq.s32.totalorder %s35, 1
      %p110 = por %p108, %p109
      %p112 = scmp.ne.s32.totalorder %s95, %s111
      %p113 = scmp.eq.s32.totalorder %s35, 0
      %p114 = por %p112, %p113
      %s116 = sadd.s32 %s115, 1
      %p119 = scmp.eq.s32.totalorder %s29, 1
      %p120 = scmp.ne.s32.totalorder %s115, %s117
      %p121 = scmp.eq.s32.totalorder %s29, 0
      %p122 = por %p120, %p121
      %p123 = scmp.ne.s32.totalorder %s115, %s117
      %p124 = scmp.eq.s32.totalorder %s34, 1
      %p125 = por %p123, %p124
      %p126 = scmp.ne.s32.totalorder %s117, %s118
      %p127 = scmp.eq.s32.totalorder %s34, 0
      %p128 = por %p126, %p127
      %p129 = scmp.ne.s32.totalorder %s117, %s118
      %p130 = scmp.eq.s32.totalorder %s35, 1
      %p131 = por %p129, %p130
      %p133 = scmp.ne.s32.totalorder %s118, %s132
      %p134 = scmp.eq.s32.totalorder %s35, 0
      %p135 = por %p133, %p134
      %s137 = sadd.s32 %s136, 1
      %p140 = scmp.eq.s32.totalorder %s29, 1
      %p141 = scmp.ne.s32.totalorder %s136, %s138
      %p142 = scmp.eq.s32.totalorder %s29, 0
      %p143 = por %p141, %p142
      %p144 = scmp.ne.s32.totalorder %s136, %s138
      %p145 = scmp.eq.s32.totalorder %s34, 1
      %p146 = por %p144, %p145
      %p147 = scmp.ne.s32.totalorder %s138, %s139
      %p148 = scmp.eq.s32.totalorder %s34, 0
      %p149 = por %p147, %p148
      %p150 = scmp.ne.s32.totalorder %s138, %s139
      %p151 = scmp.eq.s32.totalorder %s35, 1
      %p152 = por %p150, %p151
      %p154 = scmp.ne.s32.totalorder %s139, %s153
      %p155 = scmp.eq.s32.totalorder %s35, 0
      %p156 = por %p154, %p155
      %s158 = sadd.s32 %s157, 1
      %p161 = scmp.eq.s32.totalorder %s29, 1
      %p162 = scmp.ne.s32.totalorder %s157, %s159
      %p163 = scmp.eq.s32.totalorder %s29, 0
      %p164 = por %p162, %p163
      %p165 = scmp.ne.s32.totalorder %s157, %s159
      %p166 = scmp.eq.s32.totalorder %s34, 1
      %p167 = por %p165, %p166
      %p168 = scmp.ne.s32.totalorder %s159, %s160
      %p169 = scmp.eq.s32.totalorder %s34, 0
      %p170 = por %p168, %p169
      %p171 = scmp.ne.s32.totalorder %s159, %s160
      %p172 = scmp.eq.s32.totalorder %s35, 1
      %p173 = por %p171, %p172
      %p175 = scmp.ne.s32.totalorder %s160, %s174
      %p176 = scmp.eq.s32.totalorder %s35, 0
      %p177 = por %p175, %p176
      %s179 = sadd.s32 %s178, 1
      %p182 = scmp.eq.s32.totalorder %s29, 1
      %p183 = scmp.ne.s32.totalorder %s178, %s180
      %p184 = scmp.eq.s32.totalorder %s29, 0
      %p185 = por %p183, %p184
      %p186 = scmp.ne.s32.totalorder %s178, %s180
      %p187 = scmp.eq.s32.totalorder %s34, 1
      %p188 = por %p186, %p187
      %p189 = scmp.ne.s32.totalorder %s180, %s181
      %p190 = scmp.eq.s32.totalorder %s34, 0
      %p191 = por %p189, %p190
      %p192 = scmp.ne.s32.totalorder %s180, %s181
      %p193 = scmp.eq.s32.totalorder %s35, 1
      %p194 = por %p192, %p193
      %p196 = scmp.ne.s32.totalorder %s181, %s195
      %p197 = scmp.eq.s32.totalorder %s35, 0
      %p198 = por %p196, %p197
      %s199 = ssub.s32 %s29, %s36
      %p200 = scmp.eq.s32.totalorder %s199, 0
      %s202 = sadd.s32 %s201, 1
      %s203 = scalar_select %p200, %s201, %s202
      %p206 = pneg %p200
      %p207 = scmp.eq.s32.totalorder %s29, 1
      %p208 = por %p206, %p207
      %p209 = scmp.ne.s32.totalorder %s201, %s204
      %p210 = scmp.eq.s32.totalorder %s29, 0
      %p211 = por %p209, %p210
      %p212 = scmp.ne.s32.totalorder %s201, %s204
      %p213 = scmp.eq.s32.totalorder %s34, 1
      %p214 = por %p212, %p213
      %p215 = scmp.ne.s32.totalorder %s204, %s205
      %p216 = scmp.eq.s32.totalorder %s34, 0
      %p217 = por %p215, %p216
      %p218 = scmp.ne.s32.totalorder %s204, %s205
      %p219 = scmp.eq.s32.totalorder %s35, 1
      %p220 = por %p218, %p219
      %p222 = scmp.ne.s32.totalorder %s205, %s221
      %p223 = scmp.eq.s32.totalorder %s35, 0
      %p224 = por %p222, %p223
      %s225 = ssub.s32 %s29, %s36
      %p226 = scmp.eq.s32.totalorder %s225, 0
      %s228 = sadd.s32 %s227, 1
      %s229 = scalar_select %p226, %s227, %s228
      %p232 = pneg %p226
      %p233 = scmp.eq.s32.totalorder %s29, 1
      %p234 = por %p232, %p233
      %p235 = scmp.ne.s32.totalorder %s227, %s230
      %p236 = scmp.eq.s32.totalorder %s29, 0
      %p237 = por %p235, %p236
      %p238 = scmp.ne.s32.totalorder %s227, %s230
      %p239 = scmp.eq.s32.totalorder %s34, 1
      %p240 = por %p238, %p239
      %p241 = scmp.ne.s32.totalorder %s230, %s231
      %p242 = scmp.eq.s32.totalorder %s34, 0
      %p243 = por %p241, %p242
      %p244 = scmp.ne.s32.totalorder %s230, %s231
      %p245 = scmp.eq.s32.totalorder %s35, 1
      %p246 = por %p244, %p245
      %p248 = scmp.ne.s32.totalorder %s231, %s247
      %p249 = scmp.eq.s32.totalorder %s35, 0
      %p250 = por %p248, %p249
      %p251 = scmp.le.s32.totalorder 1, %s29
      %p252 = scmp.lt.s32.totalorder %s29, 3
      %p253 = pnand %p251, %p252
      %p254 = pneg %p253
      // Predicated region
      $region9: #{atn_lstm_cell.1} parent=5 // pred_check
        _
      $region10: #{atn_lstm_cell.1} parent=5 // pred_check_branch
        %256 = sbr.rel (%p253) target = $region12
      $region11: #{atn_lstm_cell.1} parent=5 // pred_region
        %s257 = ssub.s32 %s29, 1
        // Predicated region
        $region13: #{atn_lstm_cell.1} parent=11 // pred_check
          %p258 = pneg %p128
        $region14: #{atn_lstm_cell.1} parent=11 // pred_check_branch
          %260 = sbr.rel (%p258) target = $region16
        $region15: #{atn_lstm_cell.1} parent=11 // pred_region
          %262 = vsyncadd [#allocation9], 0
          %s263 = sshll.u32 %s3, 4
          %s264 = int_to_ptr.hbm [resolvable:$true] %s263
          %s265 = sshll.u32 [#allocation8], 4
          %s266 = int_to_ptr.vmem [resolvable:$true] %s265
          %271 = dma.hbm_to_vmem [thread:$0]  %s264, 8192, %s266, [#allocation9], 512, 512, 32
        $region16: #{atn_lstm_cell.1} parent=11 // pred_fallthru
          _
        // Predicated region
        $region17: #{atn_lstm_cell.1} parent=11 // pred_check
          %p272 = pneg %p149
        $region18: #{atn_lstm_cell.1} parent=11 // pred_check_branch
          %274 = sbr.rel (%p272) target = $region20
        $region19: #{atn_lstm_cell.1} parent=11 // pred_region
          %276 = vsyncadd [#allocation9], 0
          %s277 = sshll.u32 %s4, 4
          %s278 = int_to_ptr.hbm [resolvable:$true] %s277
          %s279 = sshll.u32 [#allocation10], 4
          %s280 = int_to_ptr.vmem [resolvable:$true] %s279
          %285 = dma.hbm_to_vmem [thread:$0]  %s278, 8192, %s280, [#allocation9], 512, 512, 32
        $region20: #{atn_lstm_cell.1} parent=11 // pred_fallthru
          _
        // Predicated region
        $region21: #{atn_lstm_cell.1} parent=11 // pred_check
          %p286 = pneg %p170
        $region22: #{atn_lstm_cell.1} parent=11 // pred_check_branch
          %288 = sbr.rel (%p286) target = $region24
        $region23: #{atn_lstm_cell.1} parent=11 // pred_region
          _
        $region24: #{atn_lstm_cell.1} parent=11 // pred_fallthru
          _
        // Predicated region
        $region25: #{atn_lstm_cell.1} parent=11 // pred_check
          %p289 = pneg %p191
        $region26: #{atn_lstm_cell.1} parent=11 // pred_check_branch
          %291 = sbr.rel (%p289) target = $region28
        $region27: #{atn_lstm_cell.1} parent=11 // pred_region
          %293 = vsyncadd [#allocation12], 0
          %s295 = sshll.u32 %s6, 4
          %s296 = int_to_ptr.hbm [resolvable:$true] %s295
          %s297 = sshll.u32 [#allocation11], 4
          %s298 = int_to_ptr.vmem [resolvable:$true] %s297
          %300 = dma.hbm_to_vmem [thread:$0]  %s296, 64, %s298, [#allocation12]
        $region28: #{atn_lstm_cell.1} parent=11 // pred_fallthru
          _
      $region12: #{atn_lstm_cell.1} parent=5 // pred_fallthru
        _
      %p301 = scmp.lt.s32.totalorder %s29, 2
      // Predicated region
      $region29: #{atn_lstm_cell.1} parent=5 // pred_check
        %p302 = pneg %p301
      $region30: #{atn_lstm_cell.1} parent=5 // pred_check_branch
        %304 = sbr.rel (%p302) target = $region32
      $region31: #{atn_lstm_cell.1} parent=5 // pred_region
        // Predicated region
        $region33: #{atn_lstm_cell.1} parent=31 // pred_check
          %p305 = pneg %p49
        $region34: #{atn_lstm_cell.1} parent=31 // pred_check_branch
          %307 = sbr.rel (%p305) target = $region36
        $region35: #{atn_lstm_cell.1} parent=31 // pred_region
          %s308 = sand.u32 %s39, 1
          %s309 = scalar_lea.sflag [#allocation3], %s308
          %s310 = sand.u32 %s39, 1
          %s311 = smul.addr %s310, 64
          %s312 = scalar_lea.vmem [#allocation2], %s311
          %s313 = smul.u32 8, %s29
          %315 = vsyncadd %s309, 0
          %s316 = smul.addr %s313, 8
          %s317 = scalar_lea.hbm %s0, %s316
          %s318 = sshll.u32 %s317, 4
          %s319 = int_to_ptr.hbm [resolvable:$true] %s318
          %s320 = sshll.u32 %s312, 4
          %s321 = int_to_ptr.vmem [resolvable:$true] %s320
          %326 = dma.hbm_to_vmem [thread:$0]  %s319, 1024, %s321, %s309, 128, 128, 8
        $region36: #{atn_lstm_cell.1} parent=31 // pred_fallthru
          _
        // Predicated region
        $region37: #{atn_lstm_cell.1} parent=31 // pred_check
          %p327 = pneg %p75
        $region38: #{atn_lstm_cell.1} parent=31 // pred_check_branch
          %329 = sbr.rel (%p327) target = $region40
        $region39: #{atn_lstm_cell.1} parent=31 // pred_region
          %s330 = sand.u32 %s29, 1
          %s331 = scalar_lea.sflag [#allocation6], %s330
          %s332 = sand.u32 %s65, 1
          %s333 = smul.addr %s332, 64
          %s334 = scalar_lea.vmem [#allocation5], %s333
          %s335 = smul.u32 8, %s29
          %337 = vsyncadd %s331, 0
          %s338 = smul.addr %s335, 8
          %s339 = scalar_lea.hbm %s1, %s338
          %s340 = sshll.u32 %s339, 4
          %s341 = int_to_ptr.hbm [resolvable:$true] %s340
          %s342 = sshll.u32 %s334, 4
          %s343 = int_to_ptr.vmem [resolvable:$true] %s342
          %348 = dma.hbm_to_vmem [thread:$0]  %s341, 1024, %s343, %s331, 128, 128, 8
        $region40: #{atn_lstm_cell.1} parent=31 // pred_fallthru
          _
        // Predicated region
        $region41: #{atn_lstm_cell.1} parent=31 // pred_check
          %p349 = pneg %p101
        $region42: #{atn_lstm_cell.1} parent=31 // pred_check_branch
          %351 = sbr.rel (%p349) target = $region44
        $region43: #{atn_lstm_cell.1} parent=31 // pred_region
          %s352 = sand.u32 %s29, 1
          %s353 = scalar_lea.sflag [#allocation6], %s352
          %s354 = sand.u32 %s91, 1
          %s355 = smul.addr %s354, 64
          %s356 = scalar_lea.vmem [#allocation7], %s355
          %s357 = smul.u32 8, %s29
          %359 = vsyncadd %s353, 0
          %s360 = smul.addr %s357, 8
          %s361 = scalar_lea.hbm %s2, %s360
          %s362 = sshll.u32 %s361, 4
          %s363 = int_to_ptr.hbm [resolvable:$true] %s362
          %s364 = sshll.u32 %s356, 4
          %s365 = int_to_ptr.vmem [resolvable:$true] %s364
          %370 = dma.hbm_to_vmem [thread:$0]  %s363, 1024, %s365, %s353, 128, 128, 8
        $region44: #{atn_lstm_cell.1} parent=31 // pred_fallthru
          _
      $region32: #{atn_lstm_cell.1} parent=5 // pred_fallthru
        _
      %p371 = scmp.le.s32.totalorder 1, %s29
      %p372 = scmp.lt.s32.totalorder %s29, 3
      %p373 = pnand %p371, %p372
      %p374 = pneg %p373
      // Predicated region
      $region45: #{atn_lstm_cell.1} parent=5 // pred_check
        _
      $region46: #{atn_lstm_cell.1} parent=5 // pred_check_branch
        %376 = sbr.rel (%p373) target = $region48
      $region47: #{atn_lstm_cell.1} parent=5 // pred_region
        %s377 = ssub.s32 %s29, 1
        %s378 = sand.u32 %s42, 1
        %s379 = scalar_lea.sflag [#allocation3], %s378
        %s380 = sand.u32 %s42, 1
        %s381 = smul.addr %s380, 64
        %s382 = scalar_lea.vmem [#allocation2], %s381
        // Predicated region
        $region49: #{atn_lstm_cell.1} parent=47 // pred_check
          %p383 = pneg %p55
        $region50: #{atn_lstm_cell.1} parent=47 // pred_check_branch
          %385 = sbr.rel (%p383) target = $region52
        $region51: #{atn_lstm_cell.1} parent=47 // pred_region
          %387 = dma.done %s379, 1024
        $region52: #{atn_lstm_cell.1} parent=47 // pred_fallthru
          _
        %s388 = sand.u32 %s34, 1
        %s389 = scalar_lea.sflag [#allocation6], %s388
        %s390 = sand.u32 %s68, 1
        %s391 = smul.addr %s390, 64
        %s392 = scalar_lea.vmem [#allocation5], %s391
        // Predicated region
        $region53: #{atn_lstm_cell.1} parent=47 // pred_check
          %p393 = pneg %p81
        $region54: #{atn_lstm_cell.1} parent=47 // pred_check_branch
          %395 = sbr.rel (%p393) target = $region56
        $region55: #{atn_lstm_cell.1} parent=47 // pred_region
          %397 = dma.done %s389, 1024
        $region56: #{atn_lstm_cell.1} parent=47 // pred_fallthru
          _
        %s398 = sand.u32 %s34, 1
        %s399 = scalar_lea.sflag [#allocation6], %s398
        %s400 = sand.u32 %s94, 1
        %s401 = smul.addr %s400, 64
        %s402 = scalar_lea.vmem [#allocation7], %s401
        // Predicated region
        $region57: #{atn_lstm_cell.1} parent=47 // pred_check
          %p403 = pneg %p107
        $region58: #{atn_lstm_cell.1} parent=47 // pred_check_branch
          %405 = sbr.rel (%p403) target = $region60
        $region59: #{atn_lstm_cell.1} parent=47 // pred_region
          %407 = dma.done %s399, 1024
        $region60: #{atn_lstm_cell.1} parent=47 // pred_fallthru
          _
        // Predicated region
        $region61: #{atn_lstm_cell.1} parent=47 // pred_check
          %p408 = pneg %p128
        $region62: #{atn_lstm_cell.1} parent=47 // pred_check_branch
          %410 = sbr.rel (%p408) target = $region64
        $region63: #{atn_lstm_cell.1} parent=47 // pred_region
          %412 = dma.done [#allocation9], 8192
        $region64: #{atn_lstm_cell.1} parent=47 // pred_fallthru
          _
        // Predicated region
        $region65: #{atn_lstm_cell.1} parent=47 // pred_check
          %p413 = pneg %p149
        $region66: #{atn_lstm_cell.1} parent=47 // pred_check_branch
          %415 = sbr.rel (%p413) target = $region68
        $region67: #{atn_lstm_cell.1} parent=47 // pred_region
          %417 = dma.done [#allocation9], 8192
        $region68: #{atn_lstm_cell.1} parent=47 // pred_fallthru
          _
        // Predicated region
        $region69: #{atn_lstm_cell.1} parent=47 // pred_check
          %p418 = pneg %p191
        $region70: #{atn_lstm_cell.1} parent=47 // pred_check_branch
          %420 = sbr.rel (%p418) target = $region72
        $region71: #{atn_lstm_cell.1} parent=47 // pred_region
          %422 = dma.done [#allocation12], 64
        $region72: #{atn_lstm_cell.1} parent=47 // pred_fallthru
          _
        %s423 = sand.u32 %s42, 1
        %s424 = scalar_lea.sflag [#allocation3], %s423
        %s425 = sand.u32 %s42, 1
        %s426 = smul.addr %s425, 64
        %s427 = scalar_lea.vmem [#allocation2], %s426
        %p428 = pneg %p55
        %p429 = pneg %p52
        %s430 = sand.u32 %s34, 1
        %s431 = scalar_lea.sflag [#allocation6], %s430
        %s432 = sand.u32 %s68, 1
        %s433 = smul.addr %s432, 64
        %s434 = scalar_lea.vmem [#allocation5], %s433
        %p435 = pneg %p81
        %p436 = pneg %p78
        %s437 = sand.u32 %s34, 1
        %s438 = scalar_lea.sflag [#allocation6], %s437
        %s439 = sand.u32 %s94, 1
        %s440 = smul.addr %s439, 64
        %s441 = scalar_lea.vmem [#allocation7], %s440
        %p442 = pneg %p107
        %p443 = pneg %p104
        %p444 = pneg %p128
        %p445 = pneg %p125
        %p446 = pneg %p149
        %p447 = pneg %p146
        %p448 = pneg %p170
        %p449 = pneg %p167
        %p450 = pneg %p191
        %p451 = pneg %p188
        %p452 = pneg %p217
        %p453 = pneg %p214
        %s454 = sand.u32 %s204, 1
        %s455 = scalar_lea.sflag [#allocation4], %s454
        %s456 = sand.u32 %s204, 1
        %s457 = smul.addr %s456, 64
        %s458 = scalar_lea.vmem [#allocation13], %s457
        %p459 = pneg %p243
        %p460 = pneg %p240
        %s461 = sand.u32 %s230, 1
        %s462 = scalar_lea.sflag [#allocation15], %s461
        %s463 = sand.u32 %s230, 1
        %s464 = smul.addr %s463, 64
        %s465 = scalar_lea.vmem [#allocation14], %s464
        %s466 = smul.u32 8, %s34
        %s467 = smul.u32 8, %s34
        %s468 = smul.u32 8, %s34
        %s469 = smul.u32 8, %s34
        %s470 = smul.u32 8, %s34
        %v471 = vld [vmem:[%s392] sm:$0xff]
        %v472 = vld [vmem:[%s392 + $0x8] sm:$0xff]
        %v473 = vld [vmem:[%s392 + $0x10] sm:$0xff]
        %v474 = vld [vmem:[%s392 + $0x18] sm:$0xff]
        %v475 = vld [vmem:[%s392 + $0x20] sm:$0xff]
        %v476 = vld [vmem:[%s392 + $0x28] sm:$0xff]
        %v477 = vld [vmem:[%s392 + $0x30] sm:$0xff]
        %v478 = vld [vmem:[%s392 + $0x38] sm:$0xff]
        %v479 = vpack.c.bf16 %v472, %v471
        %v480 = vpack.c.bf16 %v474, %v473
        %v481 = vpack.c.bf16 %v476, %v475
        %v482 = vpack.c.bf16 %v478, %v477
        %v483 = vld [vmem:[%s382] sm:$0xff]
        %v484 = vld [vmem:[%s382 + $0x8] sm:$0xff]
        %v485 = vld [vmem:[%s382 + $0x10] sm:$0xff]
        %v486 = vld [vmem:[%s382 + $0x18] sm:$0xff]
        %v487 = vld [vmem:[%s382 + $0x20] sm:$0xff]
        %v488 = vld [vmem:[%s382 + $0x28] sm:$0xff]
        %v489 = vld [vmem:[%s382 + $0x30] sm:$0xff]
        %v490 = vld [vmem:[%s382 + $0x38] sm:$0xff]
        %v491 = vpack.c.bf16 %v484, %v483
        %v492 = vpack.c.bf16 %v486, %v485
        %v493 = vpack.c.bf16 %v488, %v487
        %v494 = vpack.c.bf16 %v490, %v489
        %v495 = vld [vmem:[#allocation10] sm:$0xff]
        %v496 = vld [vmem:[#allocation10 + $0x8] sm:$0xff]
        %v497 = vld [vmem:[#allocation10 + $0x10] sm:$0xff]
        %v498 = vld [vmem:[#allocation10 + $0x18] sm:$0xff]
        %v499 = vld [vmem:[#allocation10 + $0x20] sm:$0xff]
        %v500 = vld [vmem:[#allocation10 + $0x28] sm:$0xff]
        %v501 = vld [vmem:[#allocation10 + $0x30] sm:$0xff]
        %v502 = vld [vmem:[#allocation10 + $0x38] sm:$0xff]
        %v503 = vld [vmem:[#allocation10 + $0x40] sm:$0xff]
        %v504 = vld [vmem:[#allocation10 + $0x48] sm:$0xff]
        %v505 = vld [vmem:[#allocation10 + $0x50] sm:$0xff]
        %v506 = vld [vmem:[#allocation10 + $0x58] sm:$0xff]
        %v507 = vld [vmem:[#allocation10 + $0x60] sm:$0xff]
        %v508 = vld [vmem:[#allocation10 + $0x68] sm:$0xff]
        %v509 = vld [vmem:[#allocation10 + $0x70] sm:$0xff]
        %v510 = vld [vmem:[#allocation10 + $0x78] sm:$0xff]
        %v511 = vld [vmem:[#allocation10 + $0x80] sm:$0xff]
        %v512 = vld [vmem:[#allocation10 + $0x88] sm:$0xff]
        %v513 = vld [vmem:[#allocation10 + $0x90] sm:$0xff]
        %v514 = vld [vmem:[#allocation10 + $0x98] sm:$0xff]
        %v515 = vld [vmem:[#allocation10 + $0xa0] sm:$0xff]
        %v516 = vld [vmem:[#allocation10 + $0xa8] sm:$0xff]
        %v517 = vld [vmem:[#allocation10 + $0xb0] sm:$0xff]
        %v518 = vld [vmem:[#allocation10 + $0xb8] sm:$0xff]
        %v519 = vld [vmem:[#allocation10 + $0xc0] sm:$0xff]
        %v520 = vld [vmem:[#allocation10 + $0xc8] sm:$0xff]
        %v521 = vld [vmem:[#allocation10 + $0xd0] sm:$0xff]
        %v522 = vld [vmem:[#allocation10 + $0xd8] sm:$0xff]
        %v523 = vld [vmem:[#allocation10 + $0xe0] sm:$0xff]
        %v524 = vld [vmem:[#allocation10 + $0xe8] sm:$0xff]
        %v525 = vld [vmem:[#allocation10 + $0xf0] sm:$0xff]
        %v526 = vld [vmem:[#allocation10 + $0xf8] sm:$0xff]
        %v527 = vld [vmem:[#allocation10 + $0x100] sm:$0xff]
        %v528 = vld [vmem:[#allocation10 + $0x108] sm:$0xff]
        %v529 = vld [vmem:[#allocation10 + $0x110] sm:$0xff]
        %v530 = vld [vmem:[#allocation10 + $0x118] sm:$0xff]
        %v531 = vld [vmem:[#allocation10 + $0x120] sm:$0xff]
        %v532 = vld [vmem:[#allocation10 + $0x128] sm:$0xff]
        %v533 = vld [vmem:[#allocation10 + $0x130] sm:$0xff]
        %v534 = vld [vmem:[#allocation10 + $0x138] sm:$0xff]
        %v535 = vld [vmem:[#allocation10 + $0x140] sm:$0xff]
        %v536 = vld [vmem:[#allocation10 + $0x148] sm:$0xff]
        %v537 = vld [vmem:[#allocation10 + $0x150] sm:$0xff]
        %v538 = vld [vmem:[#allocation10 + $0x158] sm:$0xff]
        %v539 = vld [vmem:[#allocation10 + $0x160] sm:$0xff]
        %v540 = vld [vmem:[#allocation10 + $0x168] sm:$0xff]
        %v541 = vld [vmem:[#allocation10 + $0x170] sm:$0xff]
        %v542 = vld [vmem:[#allocation10 + $0x178] sm:$0xff]
        %v543 = vld [vmem:[#allocation10 + $0x180] sm:$0xff]
        %v544 = vld [vmem:[#allocation10 + $0x188] sm:$0xff]
        %v545 = vld [vmem:[#allocation10 + $0x190] sm:$0xff]
        %v546 = vld [vmem:[#allocation10 + $0x198] sm:$0xff]
        %v547 = vld [vmem:[#allocation10 + $0x1a0] sm:$0xff]
        %v548 = vld [vmem:[#allocation10 + $0x1a8] sm:$0xff]
        %v549 = vld [vmem:[#allocation10 + $0x1b0] sm:$0xff]
        %v550 = vld [vmem:[#allocation10 + $0x1b8] sm:$0xff]
        %v551 = vld [vmem:[#allocation10 + $0x1c0] sm:$0xff]
        %v552 = vld [vmem:[#allocation10 + $0x1c8] sm:$0xff]
        %v553 = vld [vmem:[#allocation10 + $0x1d0] sm:$0xff]
        %v554 = vld [vmem:[#allocation10 + $0x1d8] sm:$0xff]
        %v555 = vld [vmem:[#allocation10 + $0x1e0] sm:$0xff]
        %v556 = vld [vmem:[#allocation10 + $0x1e8] sm:$0xff]
        %v557 = vld [vmem:[#allocation10 + $0x1f0] sm:$0xff]
        %v558 = vld [vmem:[#allocation10 + $0x1f8] sm:$0xff]
        %v559 = vpack.c.bf16 %v499, %v495
        %v560 = vpack.c.bf16 %v500, %v496
        %v561 = vpack.c.bf16 %v501, %v497
        %v562 = vpack.c.bf16 %v502, %v498
        %v563 = vpack.c.bf16 %v507, %v503
        %v564 = vpack.c.bf16 %v508, %v504
        %v565 = vpack.c.bf16 %v509, %v505
        %v566 = vpack.c.bf16 %v510, %v506
        %v567 = vpack.c.bf16 %v515, %v511
        %v568 = vpack.c.bf16 %v516, %v512
        %v569 = vpack.c.bf16 %v517, %v513
        %v570 = vpack.c.bf16 %v518, %v514
        %v571 = vpack.c.bf16 %v523, %v519
        %v572 = vpack.c.bf16 %v524, %v520
        %v573 = vpack.c.bf16 %v525, %v521
        %v574 = vpack.c.bf16 %v526, %v522
        %v575 = vpack.c.bf16 %v531, %v527
        %v576 = vpack.c.bf16 %v532, %v528
        %v577 = vpack.c.bf16 %v533, %v529
        %v578 = vpack.c.bf16 %v534, %v530
        %v579 = vpack.c.bf16 %v539, %v535
        %v580 = vpack.c.bf16 %v540, %v536
        %v581 = vpack.c.bf16 %v541, %v537
        %v582 = vpack.c.bf16 %v542, %v538
        %v583 = vpack.c.bf16 %v547, %v543
        %v584 = vpack.c.bf16 %v548, %v544
        %v585 = vpack.c.bf16 %v549, %v545
        %v586 = vpack.c.bf16 %v550, %v546
        %v587 = vpack.c.bf16 %v555, %v551
        %v588 = vpack.c.bf16 %v556, %v552
        %v589 = vpack.c.bf16 %v557, %v553
        %v590 = vpack.c.bf16 %v558, %v554
        %v591 = vld [vmem:[#allocation8] sm:$0xff]
        %v592 = vld [vmem:[#allocation8 + $0x8] sm:$0xff]
        %v593 = vld [vmem:[#allocation8 + $0x10] sm:$0xff]
        %v594 = vld [vmem:[#allocation8 + $0x18] sm:$0xff]
        %v595 = vld [vmem:[#allocation8 + $0x20] sm:$0xff]
        %v596 = vld [vmem:[#allocation8 + $0x28] sm:$0xff]
        %v597 = vld [vmem:[#allocation8 + $0x30] sm:$0xff]
        %v598 = vld [vmem:[#allocation8 + $0x38] sm:$0xff]
        %v599 = vld [vmem:[#allocation8 + $0x40] sm:$0xff]
        %v600 = vld [vmem:[#allocation8 + $0x48] sm:$0xff]
        %v601 = vld [vmem:[#allocation8 + $0x50] sm:$0xff]
        %v602 = vld [vmem:[#allocation8 + $0x58] sm:$0xff]
        %v603 = vld [vmem:[#allocation8 + $0x60] sm:$0xff]
        %v604 = vld [vmem:[#allocation8 + $0x68] sm:$0xff]
        %v605 = vld [vmem:[#allocation8 + $0x70] sm:$0xff]
        %v606 = vld [vmem:[#allocation8 + $0x78] sm:$0xff]
        %v607 = vld [vmem:[#allocation8 + $0x80] sm:$0xff]
        %v608 = vld [vmem:[#allocation8 + $0x88] sm:$0xff]
        %v609 = vld [vmem:[#allocation8 + $0x90] sm:$0xff]
        %v610 = vld [vmem:[#allocation8 + $0x98] sm:$0xff]
        %v611 = vld [vmem:[#allocation8 + $0xa0] sm:$0xff]
        %v612 = vld [vmem:[#allocation8 + $0xa8] sm:$0xff]
        %v613 = vld [vmem:[#allocation8 + $0xb0] sm:$0xff]
        %v614 = vld [vmem:[#allocation8 + $0xb8] sm:$0xff]
        %v615 = vld [vmem:[#allocation8 + $0xc0] sm:$0xff]
        %v616 = vld [vmem:[#allocation8 + $0xc8] sm:$0xff]
        %v617 = vld [vmem:[#allocation8 + $0xd0] sm:$0xff]
        %v618 = vld [vmem:[#allocation8 + $0xd8] sm:$0xff]
        %v619 = vld [vmem:[#allocation8 + $0xe0] sm:$0xff]
        %v620 = vld [vmem:[#allocation8 + $0xe8] sm:$0xff]
        %v621 = vld [vmem:[#allocation8 + $0xf0] sm:$0xff]
        %v622 = vld [vmem:[#allocation8 + $0xf8] sm:$0xff]
        %v623 = vld [vmem:[#allocation8 + $0x100] sm:$0xff]
        %v624 = vld [vmem:[#allocation8 + $0x108] sm:$0xff]
        %v625 = vld [vmem:[#allocation8 + $0x110] sm:$0xff]
        %v626 = vld [vmem:[#allocation8 + $0x118] sm:$0xff]
        %v627 = vld [vmem:[#allocation8 + $0x120] sm:$0xff]
        %v628 = vld [vmem:[#allocation8 + $0x128] sm:$0xff]
        %v629 = vld [vmem:[#allocation8 + $0x130] sm:$0xff]
        %v630 = vld [vmem:[#allocation8 + $0x138] sm:$0xff]
        %v631 = vld [vmem:[#allocation8 + $0x140] sm:$0xff]
        %v632 = vld [vmem:[#allocation8 + $0x148] sm:$0xff]
        %v633 = vld [vmem:[#allocation8 + $0x150] sm:$0xff]
        %v634 = vld [vmem:[#allocation8 + $0x158] sm:$0xff]
        %v635 = vld [vmem:[#allocation8 + $0x160] sm:$0xff]
        %v636 = vld [vmem:[#allocation8 + $0x168] sm:$0xff]
        %v637 = vld [vmem:[#allocation8 + $0x170] sm:$0xff]
        %v638 = vld [vmem:[#allocation8 + $0x178] sm:$0xff]
        %v639 = vld [vmem:[#allocation8 + $0x180] sm:$0xff]
        %v640 = vld [vmem:[#allocation8 + $0x188] sm:$0xff]
        %v641 = vld [vmem:[#allocation8 + $0x190] sm:$0xff]
        %v642 = vld [vmem:[#allocation8 + $0x198] sm:$0xff]
        %v643 = vld [vmem:[#allocation8 + $0x1a0] sm:$0xff]
        %v644 = vld [vmem:[#allocation8 + $0x1a8] sm:$0xff]
        %v645 = vld [vmem:[#allocation8 + $0x1b0] sm:$0xff]
        %v646 = vld [vmem:[#allocation8 + $0x1b8] sm:$0xff]
        %v647 = vld [vmem:[#allocation8 + $0x1c0] sm:$0xff]
        %v648 = vld [vmem:[#allocation8 + $0x1c8] sm:$0xff]
        %v649 = vld [vmem:[#allocation8 + $0x1d0] sm:$0xff]
        %v650 = vld [vmem:[#allocation8 + $0x1d8] sm:$0xff]
        %v651 = vld [vmem:[#allocation8 + $0x1e0] sm:$0xff]
        %v652 = vld [vmem:[#allocation8 + $0x1e8] sm:$0xff]
        %v653 = vld [vmem:[#allocation8 + $0x1f0] sm:$0xff]
        %v654 = vld [vmem:[#allocation8 + $0x1f8] sm:$0xff]
        %v655 = vpack.c.bf16 %v595, %v591
        %v656 = vpack.c.bf16 %v596, %v592
        %v657 = vpack.c.bf16 %v597, %v593
        %v658 = vpack.c.bf16 %v598, %v594
        %v659 = vpack.c.bf16 %v603, %v599
        %v660 = vpack.c.bf16 %v604, %v600
        %v661 = vpack.c.bf16 %v605, %v601
        %v662 = vpack.c.bf16 %v606, %v602
        %v663 = vpack.c.bf16 %v611, %v607
        %v664 = vpack.c.bf16 %v612, %v608
        %v665 = vpack.c.bf16 %v613, %v609
        %v666 = vpack.c.bf16 %v614, %v610
        %v667 = vpack.c.bf16 %v619, %v615
        %v668 = vpack.c.bf16 %v620, %v616
        %v669 = vpack.c.bf16 %v621, %v617
        %v670 = vpack.c.bf16 %v622, %v618
        %v671 = vpack.c.bf16 %v627, %v623
        %v672 = vpack.c.bf16 %v628, %v624
        %v673 = vpack.c.bf16 %v629, %v625
        %v674 = vpack.c.bf16 %v630, %v626
        %v675 = vpack.c.bf16 %v635, %v631
        %v676 = vpack.c.bf16 %v636, %v632
        %v677 = vpack.c.bf16 %v637, %v633
        %v678 = vpack.c.bf16 %v638, %v634
        %v679 = vpack.c.bf16 %v643, %v639
        %v680 = vpack.c.bf16 %v644, %v640
        %v681 = vpack.c.bf16 %v645, %v641
        %v682 = vpack.c.bf16 %v646, %v642
        %v683 = vpack.c.bf16 %v651, %v647
        %v684 = vpack.c.bf16 %v652, %v648
        %v685 = vpack.c.bf16 %v653, %v649
        %v686 = vpack.c.bf16 %v654, %v650
        %v687 = vld [vmem:[%s5] sm:$0xf]
        %v689 = vperm.slane %v687, 0
        %v690 = vperm.slane %v687, 1
        %v691 = vperm.slane %v687, 2
        %v692 = vperm.slane %v687, 3
        %697 = vmatpush.bf16.msra.mxu0 %v587
        %698 = vmatpush.bf16.msra.mxu0 %v583
        %699 = vmatpush.bf16.msra.mxu0 %v579
        %700 = vmatpush.bf16.msra.mxu0 %v575
        %701 = vmatpush.bf16.msra.mxu0 %v571
        %702 = vmatpush.bf16.msra.mxu0 %v567
        %703 = vmatpush.bf16.msra.mxu0 %v563
        %704 = vmatpush.bf16.msra.mxu0 %v559
        %705 = vmatmul.bf16.gmra.mxu0 %v479
        %v706 = vpop.f32.mrf.mxu0
        %v707 = vadd.f32 %v689, %v706
        %v708 = vpop.f32.mrf.mxu0
        %v709 = vadd.f32 %v689, %v708
        %710 = vmatmul.bf16.gmra.mxu0 %v480
        %v711 = vpop.f32.mrf.mxu0
        %v712 = vadd.f32 %v689, %v711
        %v713 = vpop.f32.mrf.mxu0
        %v714 = vadd.f32 %v689, %v713
        %715 = vmatmul.bf16.gmra.mxu0 %v481
        %v716 = vpop.f32.mrf.mxu0
        %v717 = vadd.f32 %v689, %v716
        %v718 = vpop.f32.mrf.mxu0
        %v719 = vadd.f32 %v689, %v718
        %720 = vmatmul.bf16.gmra.mxu0 %v482
        %v721 = vpop.f32.mrf.mxu0
        %v722 = vadd.f32 %v689, %v721
        %v723 = vpop.f32.mrf.mxu0
        %v724 = vadd.f32 %v689, %v723
        %725 = vdwg.mxu0
        %726 = vmatpush.bf16.msra.mxu0 %v588
        %727 = vmatpush.bf16.msra.mxu0 %v584
        %728 = vmatpush.bf16.msra.mxu0 %v580
        %729 = vmatpush.bf16.msra.mxu0 %v576
        %730 = vmatpush.bf16.msra.mxu0 %v572
        %731 = vmatpush.bf16.msra.mxu0 %v568
        %732 = vmatpush.bf16.msra.mxu0 %v564
        %733 = vmatpush.bf16.msra.mxu0 %v560
        %734 = vmatmul.bf16.gmra.mxu0 %v479
        %v735 = vpop.f32.mrf.mxu0
        %v736 = vadd.f32 %v690, %v735
        %v737 = vpop.f32.mrf.mxu0
        %v738 = vadd.f32 %v690, %v737
        %739 = vmatmul.bf16.gmra.mxu0 %v480
        %v740 = vpop.f32.mrf.mxu0
        %v741 = vadd.f32 %v690, %v740
        %v742 = vpop.f32.mrf.mxu0
        %v743 = vadd.f32 %v690, %v742
        %744 = vmatmul.bf16.gmra.mxu0 %v481
        %v745 = vpop.f32.mrf.mxu0
        %v746 = vadd.f32 %v690, %v745
        %v747 = vpop.f32.mrf.mxu0
        %v748 = vadd.f32 %v690, %v747
        %749 = vmatmul.bf16.gmra.mxu0 %v482
        %v750 = vpop.f32.mrf.mxu0
        %v751 = vadd.f32 %v690, %v750
        %v752 = vpop.f32.mrf.mxu0
        %v753 = vadd.f32 %v690, %v752
        %754 = vdwg.mxu0
        %755 = vmatpush.bf16.msra.mxu0 %v589
        %756 = vmatpush.bf16.msra.mxu0 %v585
        %757 = vmatpush.bf16.msra.mxu0 %v581
        %758 = vmatpush.bf16.msra.mxu0 %v577
        %759 = vmatpush.bf16.msra.mxu0 %v573
        %760 = vmatpush.bf16.msra.mxu0 %v569
        %761 = vmatpush.bf16.msra.mxu0 %v565
        %762 = vmatpush.bf16.msra.mxu0 %v561
        %763 = vmatmul.bf16.gmra.mxu0 %v479
        %v764 = vpop.f32.mrf.mxu0
        %v765 = vadd.f32 %v691, %v764
        %v766 = vpop.f32.mrf.mxu0
        %v767 = vadd.f32 %v691, %v766
        %768 = vmatmul.bf16.gmra.mxu0 %v480
        %v769 = vpop.f32.mrf.mxu0
        %v770 = vadd.f32 %v691, %v769
        %v771 = vpop.f32.mrf.mxu0
        %v772 = vadd.f32 %v691, %v771
        %773 = vmatmul.bf16.gmra.mxu0 %v481
        %v774 = vpop.f32.mrf.mxu0
        %v775 = vadd.f32 %v691, %v774
        %v776 = vpop.f32.mrf.mxu0
        %v777 = vadd.f32 %v691, %v776
        %778 = vmatmul.bf16.gmra.mxu0 %v482
        %v779 = vpop.f32.mrf.mxu0
        %v780 = vadd.f32 %v691, %v779
        %v781 = vpop.f32.mrf.mxu0
        %v782 = vadd.f32 %v691, %v781
        %783 = vdwg.mxu0
        %784 = vmatpush.bf16.msra.mxu0 %v590
        %785 = vmatpush.bf16.msra.mxu0 %v586
        %786 = vmatpush.bf16.msra.mxu0 %v582
        %787 = vmatpush.bf16.msra.mxu0 %v578
        %788 = vmatpush.bf16.msra.mxu0 %v574
        %789 = vmatpush.bf16.msra.mxu0 %v570
        %790 = vmatpush.bf16.msra.mxu0 %v566
        %791 = vmatpush.bf16.msra.mxu0 %v562
        %792 = vmatmul.bf16.gmra.mxu0 %v479
        %v793 = vpop.f32.mrf.mxu0
        %v794 = vadd.f32 %v692, %v793
        %v795 = vpop.f32.mrf.mxu0
        %v796 = vadd.f32 %v692, %v795
        %797 = vmatmul.bf16.gmra.mxu0 %v480
        %v798 = vpop.f32.mrf.mxu0
        %v799 = vadd.f32 %v692, %v798
        %v800 = vpop.f32.mrf.mxu0
        %v801 = vadd.f32 %v692, %v800
        %802 = vmatmul.bf16.gmra.mxu0 %v481
        %v803 = vpop.f32.mrf.mxu0
        %v804 = vadd.f32 %v692, %v803
        %v805 = vpop.f32.mrf.mxu0
        %v806 = vadd.f32 %v692, %v805
        %807 = vmatmul.bf16.gmra.mxu0 %v482
        %v808 = vpop.f32.mrf.mxu0
        %v809 = vadd.f32 %v692, %v808
        %v810 = vpop.f32.mrf.mxu0
        %v811 = vadd.f32 %v692, %v810
        %812 = vdwg.mxu0
        %v813 = vld [vmem:[#allocation11] sm:$0xf]
        %v815 = vperm.slane %v813, 0
        %v816 = vperm.slane %v813, 1
        %v817 = vperm.slane %v813, 2
        %v818 = vperm.slane %v813, 3
        %823 = vmatpush.bf16.msra.mxu0 %v683
        %824 = vmatpush.bf16.msra.mxu0 %v679
        %825 = vmatpush.bf16.msra.mxu0 %v675
        %826 = vmatpush.bf16.msra.mxu0 %v671
        %827 = vmatpush.bf16.msra.mxu0 %v667
        %828 = vmatpush.bf16.msra.mxu0 %v663
        %829 = vmatpush.bf16.msra.mxu0 %v659
        %830 = vmatpush.bf16.msra.mxu0 %v655
        %831 = vmatmul.bf16.gmra.mxu0 %v491
        %v832 = vpop.f32.mrf.mxu0
        %v833 = vadd.f32 %v815, %v832
        %v834 = vpop.f32.mrf.mxu0
        %v835 = vadd.f32 %v815, %v834
        %836 = vmatmul.bf16.gmra.mxu0 %v492
        %v837 = vpop.f32.mrf.mxu0
        %v838 = vadd.f32 %v815, %v837
        %v839 = vpop.f32.mrf.mxu0
        %v840 = vadd.f32 %v815, %v839
        %841 = vmatmul.bf16.gmra.mxu0 %v493
        %v842 = vpop.f32.mrf.mxu0
        %v843 = vadd.f32 %v815, %v842
        %v844 = vpop.f32.mrf.mxu0
        %v845 = vadd.f32 %v815, %v844
        %846 = vmatmul.bf16.gmra.mxu0 %v494
        %v847 = vpop.f32.mrf.mxu0
        %v848 = vadd.f32 %v815, %v847
        %v849 = vpop.f32.mrf.mxu0
        %v850 = vadd.f32 %v815, %v849
        %851 = vdwg.mxu0
        %852 = vmatpush.bf16.msra.mxu0 %v684
        %853 = vmatpush.bf16.msra.mxu0 %v680
        %854 = vmatpush.bf16.msra.mxu0 %v676
        %855 = vmatpush.bf16.msra.mxu0 %v672
        %856 = vmatpush.bf16.msra.mxu0 %v668
        %857 = vmatpush.bf16.msra.mxu0 %v664
        %858 = vmatpush.bf16.msra.mxu0 %v660
        %859 = vmatpush.bf16.msra.mxu0 %v656
        %860 = vmatmul.bf16.gmra.mxu0 %v491
        %v861 = vpop.f32.mrf.mxu0
        %v862 = vadd.f32 %v816, %v861
        %v863 = vpop.f32.mrf.mxu0
        %v864 = vadd.f32 %v816, %v863
        %865 = vmatmul.bf16.gmra.mxu0 %v492
        %v866 = vpop.f32.mrf.mxu0
        %v867 = vadd.f32 %v816, %v866
        %v868 = vpop.f32.mrf.mxu0
        %v869 = vadd.f32 %v816, %v868
        %870 = vmatmul.bf16.gmra.mxu0 %v493
        %v871 = vpop.f32.mrf.mxu0
        %v872 = vadd.f32 %v816, %v871
        %v873 = vpop.f32.mrf.mxu0
        %v874 = vadd.f32 %v816, %v873
        %875 = vmatmul.bf16.gmra.mxu0 %v494
        %v876 = vpop.f32.mrf.mxu0
        %v877 = vadd.f32 %v816, %v876
        %v878 = vpop.f32.mrf.mxu0
        %v879 = vadd.f32 %v816, %v878
        %880 = vdwg.mxu0
        %881 = vmatpush.bf16.msra.mxu0 %v685
        %882 = vmatpush.bf16.msra.mxu0 %v681
        %883 = vmatpush.bf16.msra.mxu0 %v677
        %884 = vmatpush.bf16.msra.mxu0 %v673
        %885 = vmatpush.bf16.msra.mxu0 %v669
        %886 = vmatpush.bf16.msra.mxu0 %v665
        %887 = vmatpush.bf16.msra.mxu0 %v661
        %888 = vmatpush.bf16.msra.mxu0 %v657
        %889 = vmatmul.bf16.gmra.mxu0 %v491
        %v890 = vpop.f32.mrf.mxu0
        %v891 = vadd.f32 %v817, %v890
        %v892 = vpop.f32.mrf.mxu0
        %v893 = vadd.f32 %v817, %v892
        %894 = vmatmul.bf16.gmra.mxu0 %v492
        %v895 = vpop.f32.mrf.mxu0
        %v896 = vadd.f32 %v817, %v895
        %v897 = vpop.f32.mrf.mxu0
        %v898 = vadd.f32 %v817, %v897
        %899 = vmatmul.bf16.gmra.mxu0 %v493
        %v900 = vpop.f32.mrf.mxu0
        %v901 = vadd.f32 %v817, %v900
        %v902 = vpop.f32.mrf.mxu0
        %v903 = vadd.f32 %v817, %v902
        %904 = vmatmul.bf16.gmra.mxu0 %v494
        %v905 = vpop.f32.mrf.mxu0
        %v906 = vadd.f32 %v817, %v905
        %v907 = vpop.f32.mrf.mxu0
        %v908 = vadd.f32 %v817, %v907
        %909 = vdwg.mxu0
        %910 = vmatpush.bf16.msra.mxu0 %v686
        %911 = vmatpush.bf16.msra.mxu0 %v682
        %912 = vmatpush.bf16.msra.mxu0 %v678
        %913 = vmatpush.bf16.msra.mxu0 %v674
        %914 = vmatpush.bf16.msra.mxu0 %v670
        %915 = vmatpush.bf16.msra.mxu0 %v666
        %916 = vmatpush.bf16.msra.mxu0 %v662
        %917 = vmatpush.bf16.msra.mxu0 %v658
        %918 = vmatmul.bf16.gmra.mxu0 %v491
        %v919 = vpop.f32.mrf.mxu0
        %v920 = vadd.f32 %v818, %v919
        %v921 = vpop.f32.mrf.mxu0
        %v922 = vadd.f32 %v818, %v921
        %923 = vmatmul.bf16.gmra.mxu0 %v492
        %v924 = vpop.f32.mrf.mxu0
        %v925 = vadd.f32 %v818, %v924
        %v926 = vpop.f32.mrf.mxu0
        %v927 = vadd.f32 %v818, %v926
        %928 = vmatmul.bf16.gmra.mxu0 %v493
        %v929 = vpop.f32.mrf.mxu0
        %v930 = vadd.f32 %v818, %v929
        %v931 = vpop.f32.mrf.mxu0
        %v932 = vadd.f32 %v818, %v931
        %933 = vmatmul.bf16.gmra.mxu0 %v494
        %v934 = vpop.f32.mrf.mxu0
        %v935 = vadd.f32 %v818, %v934
        %v936 = vpop.f32.mrf.mxu0
        %v937 = vadd.f32 %v818, %v936
        %938 = vdwg.mxu0
        %v939 = vadd.f32 %v707, %v736
        %v940 = vadd.f32 %v939, %v765
        %v941 = vadd.f32 %v940, %v794
        %942 = vadd.xlane.f32.xlu0 %v941
        %v943 = vpop.xlane.xlu0 %942
        %v944 = vadd.f32 %v709, %v738
        %v945 = vadd.f32 %v944, %v767
        %v946 = vadd.f32 %v945, %v796
        %947 = vadd.xlane.f32.xlu0 %v946
        %v948 = vpop.xlane.xlu0 %947
        %v949 = vadd.f32 %v712, %v741
        %v950 = vadd.f32 %v949, %v770
        %v951 = vadd.f32 %v950, %v799
        %952 = vadd.xlane.f32.xlu0 %v951
        %v953 = vpop.xlane.xlu0 %952
        %v954 = vadd.f32 %v714, %v743
        %v955 = vadd.f32 %v954, %v772
        %v956 = vadd.f32 %v955, %v801
        %957 = vadd.xlane.f32.xlu0 %v956
        %v958 = vpop.xlane.xlu0 %957
        %v959 = vadd.f32 %v717, %v746
        %v960 = vadd.f32 %v959, %v775
        %v961 = vadd.f32 %v960, %v804
        %962 = vadd.xlane.f32.xlu0 %v961
        %v963 = vpop.xlane.xlu0 %962
        %v964 = vadd.f32 %v719, %v748
        %v965 = vadd.f32 %v964, %v777
        %v966 = vadd.f32 %v965, %v806
        %967 = vadd.xlane.f32.xlu0 %v966
        %v968 = vpop.xlane.xlu0 %967
        %v969 = vadd.f32 %v722, %v751
        %v970 = vadd.f32 %v969, %v780
        %v971 = vadd.f32 %v970, %v809
        %972 = vadd.xlane.f32.xlu0 %v971
        %v973 = vpop.xlane.xlu0 %972
        %v974 = vadd.f32 %v724, %v753
        %v975 = vadd.f32 %v974, %v782
        %v976 = vadd.f32 %v975, %v811
        %977 = vadd.xlane.f32.xlu0 %v976
        %v978 = vpop.xlane.xlu0 %977
        %v979 = vrcp.pop 512.0
        %v980 = vmul.f32 512.0, %v979
        %v981 = vsub.f32 1.0, %v980
        %v982 = vmul.f32 %v979, %v981
        %v983 = vadd.f32 %v979, %v982
        %vm984 = vweird.f32 %v979
        %v985 = vsel %vm984, %v979, %v983
        %v986 = vmul.f32 %v943, %v985
        %v987 = vmul.f32 %v948, %v985
        %v988 = vmul.f32 %v953, %v985
        %v989 = vmul.f32 %v958, %v985
        %v990 = vmul.f32 %v963, %v985
        %v991 = vmul.f32 %v968, %v985
        %v992 = vmul.f32 %v973, %v985
        %v993 = vmul.f32 %v978, %v985
        %v994 = vsub.f32 %v707, %v986
        %v995 = vsub.f32 %v736, %v986
        %v996 = vsub.f32 %v765, %v986
        %v997 = vsub.f32 %v794, %v986
        %v998 = vsub.f32 %v709, %v987
        %v999 = vsub.f32 %v738, %v987
        %v1000 = vsub.f32 %v767, %v987
        %v1001 = vsub.f32 %v796, %v987
        %v1002 = vsub.f32 %v712, %v988
        %v1003 = vsub.f32 %v741, %v988
        %v1004 = vsub.f32 %v770, %v988
        %v1005 = vsub.f32 %v799, %v988
        %v1006 = vsub.f32 %v714, %v989
        %v1007 = vsub.f32 %v743, %v989
        %v1008 = vsub.f32 %v772, %v989
        %v1009 = vsub.f32 %v801, %v989
        %v1010 = vsub.f32 %v717, %v990
        %v1011 = vsub.f32 %v746, %v990
        %v1012 = vsub.f32 %v775, %v990
        %v1013 = vsub.f32 %v804, %v990
        %v1014 = vsub.f32 %v719, %v991
        %v1015 = vsub.f32 %v748, %v991
        %v1016 = vsub.f32 %v777, %v991
        %v1017 = vsub.f32 %v806, %v991
        %v1018 = vsub.f32 %v722, %v992
        %v1019 = vsub.f32 %v751, %v992
        %v1020 = vsub.f32 %v780, %v992
        %v1021 = vsub.f32 %v809, %v992
        %v1022 = vsub.f32 %v724, %v993
        %v1023 = vsub.f32 %v753, %v993
        %v1024 = vsub.f32 %v782, %v993
        %v1025 = vsub.f32 %v811, %v993
        %v1026 = vmul.f32 %v994, %v994
        %v1027 = vmul.f32 %v995, %v995
        %v1028 = vmul.f32 %v996, %v996
        %v1029 = vmul.f32 %v997, %v997
        %v1030 = vmul.f32 %v998, %v998
        %v1031 = vmul.f32 %v999, %v999
        %v1032 = vmul.f32 %v1000, %v1000
        %v1033 = vmul.f32 %v1001, %v1001
        %v1034 = vmul.f32 %v1002, %v1002
        %v1035 = vmul.f32 %v1003, %v1003
        %v1036 = vmul.f32 %v1004, %v1004
        %v1037 = vmul.f32 %v1005, %v1005
        %v1038 = vmul.f32 %v1006, %v1006
        %v1039 = vmul.f32 %v1007, %v1007
        %v1040 = vmul.f32 %v1008, %v1008
        %v1041 = vmul.f32 %v1009, %v1009
        %v1042 = vmul.f32 %v1010, %v1010
        %v1043 = vmul.f32 %v1011, %v1011
        %v1044 = vmul.f32 %v1012, %v1012
        %v1045 = vmul.f32 %v1013, %v1013
        %v1046 = vmul.f32 %v1014, %v1014
        %v1047 = vmul.f32 %v1015, %v1015
        %v1048 = vmul.f32 %v1016, %v1016
        %v1049 = vmul.f32 %v1017, %v1017
        %v1050 = vmul.f32 %v1018, %v1018
        %v1051 = vmul.f32 %v1019, %v1019
        %v1052 = vmul.f32 %v1020, %v1020
        %v1053 = vmul.f32 %v1021, %v1021
        %v1054 = vmul.f32 %v1022, %v1022
        %v1055 = vmul.f32 %v1023, %v1023
        %v1056 = vmul.f32 %v1024, %v1024
        %v1057 = vmul.f32 %v1025, %v1025
        %v1058 = vadd.f32 %v1026, %v1027
        %v1059 = vadd.f32 %v1058, %v1028
        %v1060 = vadd.f32 %v1059, %v1029
        %1061 = vadd.xlane.f32.xlu0 %v1060
        %v1062 = vpop.xlane.xlu0 %1061
        %v1063 = vadd.f32 %v1030, %v1031
        %v1064 = vadd.f32 %v1063, %v1032
        %v1065 = vadd.f32 %v1064, %v1033
        %1066 = vadd.xlane.f32.xlu0 %v1065
        %v1067 = vpop.xlane.xlu0 %1066
        %v1068 = vadd.f32 %v1034, %v1035
        %v1069 = vadd.f32 %v1068, %v1036
        %v1070 = vadd.f32 %v1069, %v1037
        %1071 = vadd.xlane.f32.xlu0 %v1070
        %v1072 = vpop.xlane.xlu0 %1071
        %v1073 = vadd.f32 %v1038, %v1039
        %v1074 = vadd.f32 %v1073, %v1040
        %v1075 = vadd.f32 %v1074, %v1041
        %1076 = vadd.xlane.f32.xlu0 %v1075
        %v1077 = vpop.xlane.xlu0 %1076
        %v1078 = vadd.f32 %v1042, %v1043
        %v1079 = vadd.f32 %v1078, %v1044
        %v1080 = vadd.f32 %v1079, %v1045
        %1081 = vadd.xlane.f32.xlu0 %v1080
        %v1082 = vpop.xlane.xlu0 %1081
        %v1083 = vadd.f32 %v1046, %v1047
        %v1084 = vadd.f32 %v1083, %v1048
        %v1085 = vadd.f32 %v1084, %v1049
        %1086 = vadd.xlane.f32.xlu0 %v1085
        %v1087 = vpop.xlane.xlu0 %1086
        %v1088 = vadd.f32 %v1050, %v1051
        %v1089 = vadd.f32 %v1088, %v1052
        %v1090 = vadd.f32 %v1089, %v1053
        %1091 = vadd.xlane.f32.xlu0 %v1090
        %v1092 = vpop.xlane.xlu0 %1091
        %v1093 = vadd.f32 %v1054, %v1055
        %v1094 = vadd.f32 %v1093, %v1056
        %v1095 = vadd.f32 %v1094, %v1057
        %1096 = vadd.xlane.f32.xlu0 %v1095
        %v1097 = vpop.xlane.xlu0 %1096
        %v1098 = vmul.f32 %v1062, %v985
        %v1099 = vmul.f32 %v1067, %v985
        %v1100 = vmul.f32 %v1072, %v985
        %v1101 = vmul.f32 %v1077, %v985
        %v1102 = vmul.f32 %v1082, %v985
        %v1103 = vmul.f32 %v1087, %v985
        %v1104 = vmul.f32 %v1092, %v985
        %v1105 = vmul.f32 %v1097, %v985
        %v1106 = vadd.f32 %v1098, 1e-05
        %v1107 = vadd.f32 %v1099, 1e-05
        %v1108 = vadd.f32 %v1100, 1e-05
        %v1109 = vadd.f32 %v1101, 1e-05
        %v1110 = vadd.f32 %v1102, 1e-05
        %v1111 = vadd.f32 %v1103, 1e-05
        %v1112 = vadd.f32 %v1104, 1e-05
        %v1113 = vadd.f32 %v1105, 1e-05
        %v1114 = vrsqrt.pop %v1106
        %v1115 = vmul.f32 %v1114, %v1106
        %v1116 = vmul.f32 %v1115, %v1114
        %v1117 = vmul.f32 0.5, %v1116
        %v1118 = vsub.f32 1.5, %v1117
        %v1119 = vmul.f32 %v1114, %v1118
        %vm1120 = vweird.f32 %v1106
        %vm1121 = vweird.f32 %v1114
        %vm1122 = vmor %vm1120, %vm1121
        %v1123 = vsel %vm1122, %v1114, %v1119
        %v1124 = vrsqrt.pop %v1107
        %v1125 = vmul.f32 %v1124, %v1107
        %v1126 = vmul.f32 %v1125, %v1124
        %v1127 = vmul.f32 0.5, %v1126
        %v1128 = vsub.f32 1.5, %v1127
        %v1129 = vmul.f32 %v1124, %v1128
        %vm1130 = vweird.f32 %v1107
        %vm1131 = vweird.f32 %v1124
        %vm1132 = vmor %vm1130, %vm1131
        %v1133 = vsel %vm1132, %v1124, %v1129
        %v1134 = vrsqrt.pop %v1108
        %v1135 = vmul.f32 %v1134, %v1108
        %v1136 = vmul.f32 %v1135, %v1134
        %v1137 = vmul.f32 0.5, %v1136
        %v1138 = vsub.f32 1.5, %v1137
        %v1139 = vmul.f32 %v1134, %v1138
        %vm1140 = vweird.f32 %v1108
        %vm1141 = vweird.f32 %v1134
        %vm1142 = vmor %vm1140, %vm1141
        %v1143 = vsel %vm1142, %v1134, %v1139
        %v1144 = vrsqrt.pop %v1109
        %v1145 = vmul.f32 %v1144, %v1109
        %v1146 = vmul.f32 %v1145, %v1144
        %v1147 = vmul.f32 0.5, %v1146
        %v1148 = vsub.f32 1.5, %v1147
        %v1149 = vmul.f32 %v1144, %v1148
        %vm1150 = vweird.f32 %v1109
        %vm1151 = vweird.f32 %v1144
        %vm1152 = vmor %vm1150, %vm1151
        %v1153 = vsel %vm1152, %v1144, %v1149
        %v1154 = vrsqrt.pop %v1110
        %v1155 = vmul.f32 %v1154, %v1110
        %v1156 = vmul.f32 %v1155, %v1154
        %v1157 = vmul.f32 0.5, %v1156
        %v1158 = vsub.f32 1.5, %v1157
        %v1159 = vmul.f32 %v1154, %v1158
        %vm1160 = vweird.f32 %v1110
        %vm1161 = vweird.f32 %v1154
        %vm1162 = vmor %vm1160, %vm1161
        %v1163 = vsel %vm1162, %v1154, %v1159
        %v1164 = vrsqrt.pop %v1111
        %v1165 = vmul.f32 %v1164, %v1111
        %v1166 = vmul.f32 %v1165, %v1164
        %v1167 = vmul.f32 0.5, %v1166
        %v1168 = vsub.f32 1.5, %v1167
        %v1169 = vmul.f32 %v1164, %v1168
        %vm1170 = vweird.f32 %v1111
        %vm1171 = vweird.f32 %v1164
        %vm1172 = vmor %vm1170, %vm1171
        %v1173 = vsel %vm1172, %v1164, %v1169
        %v1174 = vrsqrt.pop %v1112
        %v1175 = vmul.f32 %v1174, %v1112
        %v1176 = vmul.f32 %v1175, %v1174
        %v1177 = vmul.f32 0.5, %v1176
        %v1178 = vsub.f32 1.5, %v1177
        %v1179 = vmul.f32 %v1174, %v1178
        %vm1180 = vweird.f32 %v1112
        %vm1181 = vweird.f32 %v1174
        %vm1182 = vmor %vm1180, %vm1181
        %v1183 = vsel %vm1182, %v1174, %v1179
        %v1184 = vrsqrt.pop %v1113
        %v1185 = vmul.f32 %v1184, %v1113
        %v1186 = vmul.f32 %v1185, %v1184
        %v1187 = vmul.f32 0.5, %v1186
        %v1188 = vsub.f32 1.5, %v1187
        %v1189 = vmul.f32 %v1184, %v1188
        %vm1190 = vweird.f32 %v1113
        %vm1191 = vweird.f32 %v1184
        %vm1192 = vmor %vm1190, %vm1191
        %v1193 = vsel %vm1192, %v1184, %v1189
        %v1194 = vmul.f32 %v994, %v1123
        %v1195 = vmul.f32 %v995, %v1123
        %v1196 = vmul.f32 %v996, %v1123
        %v1197 = vmul.f32 %v997, %v1123
        %v1198 = vmul.f32 %v998, %v1133
        %v1199 = vmul.f32 %v999, %v1133
        %v1200 = vmul.f32 %v1000, %v1133
        %v1201 = vmul.f32 %v1001, %v1133
        %v1202 = vmul.f32 %v1002, %v1143
        %v1203 = vmul.f32 %v1003, %v1143
        %v1204 = vmul.f32 %v1004, %v1143
        %v1205 = vmul.f32 %v1005, %v1143
        %v1206 = vmul.f32 %v1006, %v1153
        %v1207 = vmul.f32 %v1007, %v1153
        %v1208 = vmul.f32 %v1008, %v1153
        %v1209 = vmul.f32 %v1009, %v1153
        %v1210 = vmul.f32 %v1010, %v1163
        %v1211 = vmul.f32 %v1011, %v1163
        %v1212 = vmul.f32 %v1012, %v1163
        %v1213 = vmul.f32 %v1013, %v1163
        %v1214 = vmul.f32 %v1014, %v1173
        %v1215 = vmul.f32 %v1015, %v1173
        %v1216 = vmul.f32 %v1016, %v1173
        %v1217 = vmul.f32 %v1017, %v1173
        %v1218 = vmul.f32 %v1018, %v1183
        %v1219 = vmul.f32 %v1019, %v1183
        %v1220 = vmul.f32 %v1020, %v1183
        %v1221 = vmul.f32 %v1021, %v1183
        %v1222 = vmul.f32 %v1022, %v1193
        %v1223 = vmul.f32 %v1023, %v1193
        %v1224 = vmul.f32 %v1024, %v1193
        %v1225 = vmul.f32 %v1025, %v1193
        %v1226 = vadd.f32 %v833, %v862
        %v1227 = vadd.f32 %v1226, %v891
        %v1228 = vadd.f32 %v1227, %v920
        %1229 = vadd.xlane.f32.xlu0 %v1228
        %v1230 = vpop.xlane.xlu0 %1229
        %v1231 = vadd.f32 %v835, %v864
        %v1232 = vadd.f32 %v1231, %v893
        %v1233 = vadd.f32 %v1232, %v922
        %1234 = vadd.xlane.f32.xlu0 %v1233
        %v1235 = vpop.xlane.xlu0 %1234
        %v1236 = vadd.f32 %v838, %v867
        %v1237 = vadd.f32 %v1236, %v896
        %v1238 = vadd.f32 %v1237, %v925
        %1239 = vadd.xlane.f32.xlu0 %v1238
        %v1240 = vpop.xlane.xlu0 %1239
        %v1241 = vadd.f32 %v840, %v869
        %v1242 = vadd.f32 %v1241, %v898
        %v1243 = vadd.f32 %v1242, %v927
        %1244 = vadd.xlane.f32.xlu0 %v1243
        %v1245 = vpop.xlane.xlu0 %1244
        %v1246 = vadd.f32 %v843, %v872
        %v1247 = vadd.f32 %v1246, %v901
        %v1248 = vadd.f32 %v1247, %v930
        %1249 = vadd.xlane.f32.xlu0 %v1248
        %v1250 = vpop.xlane.xlu0 %1249
        %v1251 = vadd.f32 %v845, %v874
        %v1252 = vadd.f32 %v1251, %v903
        %v1253 = vadd.f32 %v1252, %v932
        %1254 = vadd.xlane.f32.xlu0 %v1253
        %v1255 = vpop.xlane.xlu0 %1254
        %v1256 = vadd.f32 %v848, %v877
        %v1257 = vadd.f32 %v1256, %v906
        %v1258 = vadd.f32 %v1257, %v935
        %1259 = vadd.xlane.f32.xlu0 %v1258
        %v1260 = vpop.xlane.xlu0 %1259
        %v1261 = vadd.f32 %v850, %v879
        %v1262 = vadd.f32 %v1261, %v908
        %v1263 = vadd.f32 %v1262, %v937
        %1264 = vadd.xlane.f32.xlu0 %v1263
        %v1265 = vpop.xlane.xlu0 %1264
        %v1266 = vmul.f32 %v1230, %v985
        %v1267 = vmul.f32 %v1235, %v985
        %v1268 = vmul.f32 %v1240, %v985
        %v1269 = vmul.f32 %v1245, %v985
        %v1270 = vmul.f32 %v1250, %v985
        %v1271 = vmul.f32 %v1255, %v985
        %v1272 = vmul.f32 %v1260, %v985
        %v1273 = vmul.f32 %v1265, %v985
        %v1274 = vsub.f32 %v833, %v1266
        %v1275 = vsub.f32 %v862, %v1266
        %v1276 = vsub.f32 %v891, %v1266
        %v1277 = vsub.f32 %v920, %v1266
        %v1278 = vsub.f32 %v835, %v1267
        %v1279 = vsub.f32 %v864, %v1267
        %v1280 = vsub.f32 %v893, %v1267
        %v1281 = vsub.f32 %v922, %v1267
        %v1282 = vsub.f32 %v838, %v1268
        %v1283 = vsub.f32 %v867, %v1268
        %v1284 = vsub.f32 %v896, %v1268
        %v1285 = vsub.f32 %v925, %v1268
        %v1286 = vsub.f32 %v840, %v1269
        %v1287 = vsub.f32 %v869, %v1269
        %v1288 = vsub.f32 %v898, %v1269
        %v1289 = vsub.f32 %v927, %v1269
        %v1290 = vsub.f32 %v843, %v1270
        %v1291 = vsub.f32 %v872, %v1270
        %v1292 = vsub.f32 %v901, %v1270
        %v1293 = vsub.f32 %v930, %v1270
        %v1294 = vsub.f32 %v845, %v1271
        %v1295 = vsub.f32 %v874, %v1271
        %v1296 = vsub.f32 %v903, %v1271
        %v1297 = vsub.f32 %v932, %v1271
        %v1298 = vsub.f32 %v848, %v1272
        %v1299 = vsub.f32 %v877, %v1272
        %v1300 = vsub.f32 %v906, %v1272
        %v1301 = vsub.f32 %v935, %v1272
        %v1302 = vsub.f32 %v850, %v1273
        %v1303 = vsub.f32 %v879, %v1273
        %v1304 = vsub.f32 %v908, %v1273
        %v1305 = vsub.f32 %v937, %v1273
        %v1306 = vmul.f32 %v1274, %v1274
        %v1307 = vmul.f32 %v1275, %v1275
        %v1308 = vmul.f32 %v1276, %v1276
        %v1309 = vmul.f32 %v1277, %v1277
        %v1310 = vmul.f32 %v1278, %v1278
        %v1311 = vmul.f32 %v1279, %v1279
        %v1312 = vmul.f32 %v1280, %v1280
        %v1313 = vmul.f32 %v1281, %v1281
        %v1314 = vmul.f32 %v1282, %v1282
        %v1315 = vmul.f32 %v1283, %v1283
        %v1316 = vmul.f32 %v1284, %v1284
        %v1317 = vmul.f32 %v1285, %v1285
        %v1318 = vmul.f32 %v1286, %v1286
        %v1319 = vmul.f32 %v1287, %v1287
        %v1320 = vmul.f32 %v1288, %v1288
        %v1321 = vmul.f32 %v1289, %v1289
        %v1322 = vmul.f32 %v1290, %v1290
        %v1323 = vmul.f32 %v1291, %v1291
        %v1324 = vmul.f32 %v1292, %v1292
        %v1325 = vmul.f32 %v1293, %v1293
        %v1326 = vmul.f32 %v1294, %v1294
        %v1327 = vmul.f32 %v1295, %v1295
        %v1328 = vmul.f32 %v1296, %v1296
        %v1329 = vmul.f32 %v1297, %v1297
        %v1330 = vmul.f32 %v1298, %v1298
        %v1331 = vmul.f32 %v1299, %v1299
        %v1332 = vmul.f32 %v1300, %v1300
        %v1333 = vmul.f32 %v1301, %v1301
        %v1334 = vmul.f32 %v1302, %v1302
        %v1335 = vmul.f32 %v1303, %v1303
        %v1336 = vmul.f32 %v1304, %v1304
        %v1337 = vmul.f32 %v1305, %v1305
        %v1338 = vadd.f32 %v1306, %v1307
        %v1339 = vadd.f32 %v1338, %v1308
        %v1340 = vadd.f32 %v1339, %v1309
        %1341 = vadd.xlane.f32.xlu0 %v1340
        %v1342 = vpop.xlane.xlu0 %1341
        %v1343 = vadd.f32 %v1310, %v1311
        %v1344 = vadd.f32 %v1343, %v1312
        %v1345 = vadd.f32 %v1344, %v1313
        %1346 = vadd.xlane.f32.xlu0 %v1345
        %v1347 = vpop.xlane.xlu0 %1346
        %v1348 = vadd.f32 %v1314, %v1315
        %v1349 = vadd.f32 %v1348, %v1316
        %v1350 = vadd.f32 %v1349, %v1317
        %1351 = vadd.xlane.f32.xlu0 %v1350
        %v1352 = vpop.xlane.xlu0 %1351
        %v1353 = vadd.f32 %v1318, %v1319
        %v1354 = vadd.f32 %v1353, %v1320
        %v1355 = vadd.f32 %v1354, %v1321
        %1356 = vadd.xlane.f32.xlu0 %v1355
        %v1357 = vpop.xlane.xlu0 %1356
        %v1358 = vadd.f32 %v1322, %v1323
        %v1359 = vadd.f32 %v1358, %v1324
        %v1360 = vadd.f32 %v1359, %v1325
        %1361 = vadd.xlane.f32.xlu0 %v1360
        %v1362 = vpop.xlane.xlu0 %1361
        %v1363 = vadd.f32 %v1326, %v1327
        %v1364 = vadd.f32 %v1363, %v1328
        %v1365 = vadd.f32 %v1364, %v1329
        %1366 = vadd.xlane.f32.xlu0 %v1365
        %v1367 = vpop.xlane.xlu0 %1366
        %v1368 = vadd.f32 %v1330, %v1331
        %v1369 = vadd.f32 %v1368, %v1332
        %v1370 = vadd.f32 %v1369, %v1333
        %1371 = vadd.xlane.f32.xlu0 %v1370
        %v1372 = vpop.xlane.xlu0 %1371
        %v1373 = vadd.f32 %v1334, %v1335
        %v1374 = vadd.f32 %v1373, %v1336
        %v1375 = vadd.f32 %v1374, %v1337
        %1376 = vadd.xlane.f32.xlu0 %v1375
        %v1377 = vpop.xlane.xlu0 %1376
        %v1378 = vmul.f32 %v1342, %v985
        %v1379 = vmul.f32 %v1347, %v985
        %v1380 = vmul.f32 %v1352, %v985
        %v1381 = vmul.f32 %v1357, %v985
        %v1382 = vmul.f32 %v1362, %v985
        %v1383 = vmul.f32 %v1367, %v985
        %v1384 = vmul.f32 %v1372, %v985
        %v1385 = vmul.f32 %v1377, %v985
        %v1386 = vadd.f32 %v1378, 1e-05
        %v1387 = vadd.f32 %v1379, 1e-05
        %v1388 = vadd.f32 %v1380, 1e-05
        %v1389 = vadd.f32 %v1381, 1e-05
        %v1390 = vadd.f32 %v1382, 1e-05
        %v1391 = vadd.f32 %v1383, 1e-05
        %v1392 = vadd.f32 %v1384, 1e-05
        %v1393 = vadd.f32 %v1385, 1e-05
        %v1394 = vrsqrt.pop %v1386
        %v1395 = vmul.f32 %v1394, %v1386
        %v1396 = vmul.f32 %v1395, %v1394
        %v1397 = vmul.f32 0.5, %v1396
        %v1398 = vsub.f32 1.5, %v1397
        %v1399 = vmul.f32 %v1394, %v1398
        %vm1400 = vweird.f32 %v1386
        %vm1401 = vweird.f32 %v1394
        %vm1402 = vmor %vm1400, %vm1401
        %v1403 = vsel %vm1402, %v1394, %v1399
        %v1404 = vrsqrt.pop %v1387
        %v1405 = vmul.f32 %v1404, %v1387
        %v1406 = vmul.f32 %v1405, %v1404
        %v1407 = vmul.f32 0.5, %v1406
        %v1408 = vsub.f32 1.5, %v1407
        %v1409 = vmul.f32 %v1404, %v1408
        %vm1410 = vweird.f32 %v1387
        %vm1411 = vweird.f32 %v1404
        %vm1412 = vmor %vm1410, %vm1411
        %v1413 = vsel %vm1412, %v1404, %v1409
        %v1414 = vrsqrt.pop %v1388
        %v1415 = vmul.f32 %v1414, %v1388
        %v1416 = vmul.f32 %v1415, %v1414
        %v1417 = vmul.f32 0.5, %v1416
        %v1418 = vsub.f32 1.5, %v1417
        %v1419 = vmul.f32 %v1414, %v1418
        %vm1420 = vweird.f32 %v1388
        %vm1421 = vweird.f32 %v1414
        %vm1422 = vmor %vm1420, %vm1421
        %v1423 = vsel %vm1422, %v1414, %v1419
        %v1424 = vrsqrt.pop %v1389
        %v1425 = vmul.f32 %v1424, %v1389
        %v1426 = vmul.f32 %v1425, %v1424
        %v1427 = vmul.f32 0.5, %v1426
        %v1428 = vsub.f32 1.5, %v1427
        %v1429 = vmul.f32 %v1424, %v1428
        %vm1430 = vweird.f32 %v1389
        %vm1431 = vweird.f32 %v1424
        %vm1432 = vmor %vm1430, %vm1431
        %v1433 = vsel %vm1432, %v1424, %v1429
        %v1434 = vrsqrt.pop %v1390
        %v1435 = vmul.f32 %v1434, %v1390
        %v1436 = vmul.f32 %v1435, %v1434
        %v1437 = vmul.f32 0.5, %v1436
        %v1438 = vsub.f32 1.5, %v1437
        %v1439 = vmul.f32 %v1434, %v1438
        %vm1440 = vweird.f32 %v1390
        %vm1441 = vweird.f32 %v1434
        %vm1442 = vmor %vm1440, %vm1441
        %v1443 = vsel %vm1442, %v1434, %v1439
        %v1444 = vrsqrt.pop %v1391
        %v1445 = vmul.f32 %v1444, %v1391
        %v1446 = vmul.f32 %v1445, %v1444
        %v1447 = vmul.f32 0.5, %v1446
        %v1448 = vsub.f32 1.5, %v1447
        %v1449 = vmul.f32 %v1444, %v1448
        %vm1450 = vweird.f32 %v1391
        %vm1451 = vweird.f32 %v1444
        %vm1452 = vmor %vm1450, %vm1451
        %v1453 = vsel %vm1452, %v1444, %v1449
        %v1454 = vrsqrt.pop %v1392
        %v1455 = vmul.f32 %v1454, %v1392
        %v1456 = vmul.f32 %v1455, %v1454
        %v1457 = vmul.f32 0.5, %v1456
        %v1458 = vsub.f32 1.5, %v1457
        %v1459 = vmul.f32 %v1454, %v1458
        %vm1460 = vweird.f32 %v1392
        %vm1461 = vweird.f32 %v1454
        %vm1462 = vmor %vm1460, %vm1461
        %v1463 = vsel %vm1462, %v1454, %v1459
        %v1464 = vrsqrt.pop %v1393
        %v1465 = vmul.f32 %v1464, %v1393
        %v1466 = vmul.f32 %v1465, %v1464
        %v1467 = vmul.f32 0.5, %v1466
        %v1468 = vsub.f32 1.5, %v1467
        %v1469 = vmul.f32 %v1464, %v1468
        %vm1470 = vweird.f32 %v1393
        %vm1471 = vweird.f32 %v1464
        %vm1472 = vmor %vm1470, %vm1471
        %v1473 = vsel %vm1472, %v1464, %v1469
        %v1474 = vmul.f32 %v1274, %v1403
        %v1475 = vmul.f32 %v1275, %v1403
        %v1476 = vmul.f32 %v1276, %v1403
        %v1477 = vmul.f32 %v1277, %v1403
        %v1478 = vmul.f32 %v1278, %v1413
        %v1479 = vmul.f32 %v1279, %v1413
        %v1480 = vmul.f32 %v1280, %v1413
        %v1481 = vmul.f32 %v1281, %v1413
        %v1482 = vmul.f32 %v1282, %v1423
        %v1483 = vmul.f32 %v1283, %v1423
        %v1484 = vmul.f32 %v1284, %v1423
        %v1485 = vmul.f32 %v1285, %v1423
        %v1486 = vmul.f32 %v1286, %v1433
        %v1487 = vmul.f32 %v1287, %v1433
        %v1488 = vmul.f32 %v1288, %v1433
        %v1489 = vmul.f32 %v1289, %v1433
        %v1490 = vmul.f32 %v1290, %v1443
        %v1491 = vmul.f32 %v1291, %v1443
        %v1492 = vmul.f32 %v1292, %v1443
        %v1493 = vmul.f32 %v1293, %v1443
        %v1494 = vmul.f32 %v1294, %v1453
        %v1495 = vmul.f32 %v1295, %v1453
        %v1496 = vmul.f32 %v1296, %v1453
        %v1497 = vmul.f32 %v1297, %v1453
        %v1498 = vmul.f32 %v1298, %v1463
        %v1499 = vmul.f32 %v1299, %v1463
        %v1500 = vmul.f32 %v1300, %v1463
        %v1501 = vmul.f32 %v1301, %v1463
        %v1502 = vmul.f32 %v1302, %v1473
        %v1503 = vmul.f32 %v1303, %v1473
        %v1504 = vmul.f32 %v1304, %v1473
        %v1505 = vmul.f32 %v1305, %v1473
        %v1506 = vadd.f32 %v1194, %v1474
        %v1507 = vadd.f32 %v1195, %v1475
        %v1508 = vadd.f32 %v1196, %v1476
        %v1509 = vadd.f32 %v1197, %v1477
        %v1510 = vadd.f32 %v1198, %v1478
        %v1511 = vadd.f32 %v1199, %v1479
        %v1512 = vadd.f32 %v1200, %v1480
        %v1513 = vadd.f32 %v1201, %v1481
        %v1514 = vadd.f32 %v1202, %v1482
        %v1515 = vadd.f32 %v1203, %v1483
        %v1516 = vadd.f32 %v1204, %v1484
        %v1517 = vadd.f32 %v1205, %v1485
        %v1518 = vadd.f32 %v1206, %v1486
        %v1519 = vadd.f32 %v1207, %v1487
        %v1520 = vadd.f32 %v1208, %v1488
        %v1521 = vadd.f32 %v1209, %v1489
        %v1522 = vadd.f32 %v1210, %v1490
        %v1523 = vadd.f32 %v1211, %v1491
        %v1524 = vadd.f32 %v1212, %v1492
        %v1525 = vadd.f32 %v1213, %v1493
        %v1526 = vadd.f32 %v1214, %v1494
        %v1527 = vadd.f32 %v1215, %v1495
        %v1528 = vadd.f32 %v1216, %v1496
        %v1529 = vadd.f32 %v1217, %v1497
        %v1530 = vadd.f32 %v1218, %v1498
        %v1531 = vadd.f32 %v1219, %v1499
        %v1532 = vadd.f32 %v1220, %v1500
        %v1533 = vadd.f32 %v1221, %v1501
        %v1534 = vadd.f32 %v1222, %v1502
        %v1535 = vadd.f32 %v1223, %v1503
        %v1536 = vadd.f32 %v1224, %v1504
        %v1537 = vadd.f32 %v1225, %v1505
        %v1538 = vld [vmem:[%s402] sm:$0xff]
        %v1539 = vld [vmem:[%s402 + $0x8] sm:$0xff]
        %v1540 = vld [vmem:[%s402 + $0x10] sm:$0xff]
        %v1541 = vld [vmem:[%s402 + $0x18] sm:$0xff]
        %v1542 = vld [vmem:[%s402 + $0x20] sm:$0xff]
        %v1543 = vld [vmem:[%s402 + $0x28] sm:$0xff]
        %v1544 = vld [vmem:[%s402 + $0x30] sm:$0xff]
        %v1545 = vld [vmem:[%s402 + $0x38] sm:$0xff]
        %v1546 = vmul.f32 %v1506, 0.5
        %v1547 = vmul.f32 %v1510, 0.5
        %v1548 = vmul.f32 %v1514, 0.5
        %v1549 = vmul.f32 %v1518, 0.5
        %v1550 = vmul.f32 %v1522, 0.5
        %v1551 = vmul.f32 %v1526, 0.5
        %v1552 = vmul.f32 %v1530, 0.5
        %v1553 = vmul.f32 %v1534, 0.5
        %v1554 = vtanh.pop %v1546
        %v1555 = vtanh.pop %v1547
        %v1556 = vtanh.pop %v1548
        %v1557 = vtanh.pop %v1549
        %v1558 = vtanh.pop %v1550
        %v1559 = vtanh.pop %v1551
        %v1560 = vtanh.pop %v1552
        %v1561 = vtanh.pop %v1553
        %v1562 = vmul.f32 %v1554, 0.5
        %v1563 = vmul.f32 %v1555, 0.5
        %v1564 = vmul.f32 %v1556, 0.5
        %v1565 = vmul.f32 %v1557, 0.5
        %v1566 = vmul.f32 %v1558, 0.5
        %v1567 = vmul.f32 %v1559, 0.5
        %v1568 = vmul.f32 %v1560, 0.5
        %v1569 = vmul.f32 %v1561, 0.5
        %v1570 = vadd.f32 %v1562, 0.5
        %v1571 = vadd.f32 %v1563, 0.5
        %v1572 = vadd.f32 %v1564, 0.5
        %v1573 = vadd.f32 %v1565, 0.5
        %v1574 = vadd.f32 %v1566, 0.5
        %v1575 = vadd.f32 %v1567, 0.5
        %v1576 = vadd.f32 %v1568, 0.5
        %v1577 = vadd.f32 %v1569, 0.5
        %v1578 = vmul.f32 %v1570, %v1538
        %v1579 = vmul.f32 %v1571, %v1539
        %v1580 = vmul.f32 %v1572, %v1540
        %v1581 = vmul.f32 %v1573, %v1541
        %v1582 = vmul.f32 %v1574, %v1542
        %v1583 = vmul.f32 %v1575, %v1543
        %v1584 = vmul.f32 %v1576, %v1544
        %v1585 = vmul.f32 %v1577, %v1545
        %v1586 = vmul.f32 %v1507, 0.5
        %v1587 = vmul.f32 %v1511, 0.5
        %v1588 = vmul.f32 %v1515, 0.5
        %v1589 = vmul.f32 %v1519, 0.5
        %v1590 = vmul.f32 %v1523, 0.5
        %v1591 = vmul.f32 %v1527, 0.5
        %v1592 = vmul.f32 %v1531, 0.5
        %v1593 = vmul.f32 %v1535, 0.5
        %v1594 = vtanh.pop %v1586
        %v1595 = vtanh.pop %v1587
        %v1596 = vtanh.pop %v1588
        %v1597 = vtanh.pop %v1589
        %v1598 = vtanh.pop %v1590
        %v1599 = vtanh.pop %v1591
        %v1600 = vtanh.pop %v1592
        %v1601 = vtanh.pop %v1593
        %v1602 = vmul.f32 %v1594, 0.5
        %v1603 = vmul.f32 %v1595, 0.5
        %v1604 = vmul.f32 %v1596, 0.5
        %v1605 = vmul.f32 %v1597, 0.5
        %v1606 = vmul.f32 %v1598, 0.5
        %v1607 = vmul.f32 %v1599, 0.5
        %v1608 = vmul.f32 %v1600, 0.5
        %v1609 = vmul.f32 %v1601, 0.5
        %v1610 = vadd.f32 %v1602, 0.5
        %v1611 = vadd.f32 %v1603, 0.5
        %v1612 = vadd.f32 %v1604, 0.5
        %v1613 = vadd.f32 %v1605, 0.5
        %v1614 = vadd.f32 %v1606, 0.5
        %v1615 = vadd.f32 %v1607, 0.5
        %v1616 = vadd.f32 %v1608, 0.5
        %v1617 = vadd.f32 %v1609, 0.5
        %v1618 = vtanh.pop %v1509
        %v1619 = vtanh.pop %v1513
        %v1620 = vtanh.pop %v1517
        %v1621 = vtanh.pop %v1521
        %v1622 = vtanh.pop %v1525
        %v1623 = vtanh.pop %v1529
        %v1624 = vtanh.pop %v1533
        %v1625 = vtanh.pop %v1537
        %v1626 = vmul.f32 %v1610, %v1618
        %v1627 = vmul.f32 %v1611, %v1619
        %v1628 = vmul.f32 %v1612, %v1620
        %v1629 = vmul.f32 %v1613, %v1621
        %v1630 = vmul.f32 %v1614, %v1622
        %v1631 = vmul.f32 %v1615, %v1623
        %v1632 = vmul.f32 %v1616, %v1624
        %v1633 = vmul.f32 %v1617, %v1625
        %v1634 = vadd.f32 %v1578, %v1626
        %v1635 = vadd.f32 %v1579, %v1627
        %v1636 = vadd.f32 %v1580, %v1628
        %v1637 = vadd.f32 %v1581, %v1629
        %v1638 = vadd.f32 %v1582, %v1630
        %v1639 = vadd.f32 %v1583, %v1631
        %v1640 = vadd.f32 %v1584, %v1632
        %v1641 = vadd.f32 %v1585, %v1633
        %v1642 = vmul.f32 %v1508, 0.5
        %v1643 = vmul.f32 %v1512, 0.5
        %v1644 = vmul.f32 %v1516, 0.5
        %v1645 = vmul.f32 %v1520, 0.5
        %v1646 = vmul.f32 %v1524, 0.5
        %v1647 = vmul.f32 %v1528, 0.5
        %v1648 = vmul.f32 %v1532, 0.5
        %v1649 = vmul.f32 %v1536, 0.5
        %v1650 = vtanh.pop %v1642
        %v1651 = vtanh.pop %v1643
        %v1652 = vtanh.pop %v1644
        %v1653 = vtanh.pop %v1645
        %v1654 = vtanh.pop %v1646
        %v1655 = vtanh.pop %v1647
        %v1656 = vtanh.pop %v1648
        %v1657 = vtanh.pop %v1649
        %v1658 = vmul.f32 %v1650, 0.5
        %v1659 = vmul.f32 %v1651, 0.5
        %v1660 = vmul.f32 %v1652, 0.5
        %v1661 = vmul.f32 %v1653, 0.5
        %v1662 = vmul.f32 %v1654, 0.5
        %v1663 = vmul.f32 %v1655, 0.5
        %v1664 = vmul.f32 %v1656, 0.5
        %v1665 = vmul.f32 %v1657, 0.5
        %v1666 = vadd.f32 %v1658, 0.5
        %v1667 = vadd.f32 %v1659, 0.5
        %v1668 = vadd.f32 %v1660, 0.5
        %v1669 = vadd.f32 %v1661, 0.5
        %v1670 = vadd.f32 %v1662, 0.5
        %v1671 = vadd.f32 %v1663, 0.5
        %v1672 = vadd.f32 %v1664, 0.5
        %v1673 = vadd.f32 %v1665, 0.5
        %1674 = vadd.xlane.f32.xlu0 %v1634
        %v1675 = vpop.xlane.xlu0 %1674
        %1676 = vadd.xlane.f32.xlu0 %v1635
        %v1677 = vpop.xlane.xlu0 %1676
        %1678 = vadd.xlane.f32.xlu0 %v1636
        %v1679 = vpop.xlane.xlu0 %1678
        %1680 = vadd.xlane.f32.xlu0 %v1637
        %v1681 = vpop.xlane.xlu0 %1680
        %1682 = vadd.xlane.f32.xlu0 %v1638
        %v1683 = vpop.xlane.xlu0 %1682
        %1684 = vadd.xlane.f32.xlu0 %v1639
        %v1685 = vpop.xlane.xlu0 %1684
        %1686 = vadd.xlane.f32.xlu0 %v1640
        %v1687 = vpop.xlane.xlu0 %1686
        %1688 = vadd.xlane.f32.xlu0 %v1641
        %v1689 = vpop.xlane.xlu0 %1688
        %v1690 = vrcp.pop 128.0
        %v1691 = vmul.f32 128.0, %v1690
        %v1692 = vsub.f32 1.0, %v1691
        %v1693 = vmul.f32 %v1690, %v1692
        %v1694 = vadd.f32 %v1690, %v1693
        %vm1695 = vweird.f32 %v1690
        %v1696 = vsel %vm1695, %v1690, %v1694
        %v1697 = vmul.f32 %v1675, %v1696
        %v1698 = vmul.f32 %v1677, %v1696
        %v1699 = vmul.f32 %v1679, %v1696
        %v1700 = vmul.f32 %v1681, %v1696
        %v1701 = vmul.f32 %v1683, %v1696
        %v1702 = vmul.f32 %v1685, %v1696
        %v1703 = vmul.f32 %v1687, %v1696
        %v1704 = vmul.f32 %v1689, %v1696
        %v1705 = vsub.f32 %v1634, %v1697
        %v1706 = vsub.f32 %v1635, %v1698
        %v1707 = vsub.f32 %v1636, %v1699
        %v1708 = vsub.f32 %v1637, %v1700
        %v1709 = vsub.f32 %v1638, %v1701
        %v1710 = vsub.f32 %v1639, %v1702
        %v1711 = vsub.f32 %v1640, %v1703
        %v1712 = vsub.f32 %v1641, %v1704
        %v1713 = vmul.f32 %v1705, %v1705
        %v1714 = vmul.f32 %v1706, %v1706
        %v1715 = vmul.f32 %v1707, %v1707
        %v1716 = vmul.f32 %v1708, %v1708
        %v1717 = vmul.f32 %v1709, %v1709
        %v1718 = vmul.f32 %v1710, %v1710
        %v1719 = vmul.f32 %v1711, %v1711
        %v1720 = vmul.f32 %v1712, %v1712
        %1721 = vadd.xlane.f32.xlu0 %v1713
        %v1722 = vpop.xlane.xlu0 %1721
        %1723 = vadd.xlane.f32.xlu0 %v1714
        %v1724 = vpop.xlane.xlu0 %1723
        %1725 = vadd.xlane.f32.xlu0 %v1715
        %v1726 = vpop.xlane.xlu0 %1725
        %1727 = vadd.xlane.f32.xlu0 %v1716
        %v1728 = vpop.xlane.xlu0 %1727
        %1729 = vadd.xlane.f32.xlu0 %v1717
        %v1730 = vpop.xlane.xlu0 %1729
        %1731 = vadd.xlane.f32.xlu0 %v1718
        %v1732 = vpop.xlane.xlu0 %1731
        %1733 = vadd.xlane.f32.xlu0 %v1719
        %v1734 = vpop.xlane.xlu0 %1733
        %1735 = vadd.xlane.f32.xlu0 %v1720
        %v1736 = vpop.xlane.xlu0 %1735
        %v1737 = vmul.f32 %v1722, %v1696
        %v1738 = vmul.f32 %v1724, %v1696
        %v1739 = vmul.f32 %v1726, %v1696
        %v1740 = vmul.f32 %v1728, %v1696
        %v1741 = vmul.f32 %v1730, %v1696
        %v1742 = vmul.f32 %v1732, %v1696
        %v1743 = vmul.f32 %v1734, %v1696
        %v1744 = vmul.f32 %v1736, %v1696
        %v1745 = vadd.f32 %v1737, 1e-05
        %v1746 = vadd.f32 %v1738, 1e-05
        %v1747 = vadd.f32 %v1739, 1e-05
        %v1748 = vadd.f32 %v1740, 1e-05
        %v1749 = vadd.f32 %v1741, 1e-05
        %v1750 = vadd.f32 %v1742, 1e-05
        %v1751 = vadd.f32 %v1743, 1e-05
        %v1752 = vadd.f32 %v1744, 1e-05
        %v1753 = vrsqrt.pop %v1745
        %v1754 = vmul.f32 %v1753, %v1745
        %v1755 = vmul.f32 %v1754, %v1753
        %v1756 = vmul.f32 0.5, %v1755
        %v1757 = vsub.f32 1.5, %v1756
        %v1758 = vmul.f32 %v1753, %v1757
        %vm1759 = vweird.f32 %v1745
        %vm1760 = vweird.f32 %v1753
        %vm1761 = vmor %vm1759, %vm1760
        %v1762 = vsel %vm1761, %v1753, %v1758
        %v1763 = vrsqrt.pop %v1746
        %v1764 = vmul.f32 %v1763, %v1746
        %v1765 = vmul.f32 %v1764, %v1763
        %v1766 = vmul.f32 0.5, %v1765
        %v1767 = vsub.f32 1.5, %v1766
        %v1768 = vmul.f32 %v1763, %v1767
        %vm1769 = vweird.f32 %v1746
        %vm1770 = vweird.f32 %v1763
        %vm1771 = vmor %vm1769, %vm1770
        %v1772 = vsel %vm1771, %v1763, %v1768
        %v1773 = vrsqrt.pop %v1747
        %v1774 = vmul.f32 %v1773, %v1747
        %v1775 = vmul.f32 %v1774, %v1773
        %v1776 = vmul.f32 0.5, %v1775
        %v1777 = vsub.f32 1.5, %v1776
        %v1778 = vmul.f32 %v1773, %v1777
        %vm1779 = vweird.f32 %v1747
        %vm1780 = vweird.f32 %v1773
        %vm1781 = vmor %vm1779, %vm1780
        %v1782 = vsel %vm1781, %v1773, %v1778
        %v1783 = vrsqrt.pop %v1748
        %v1784 = vmul.f32 %v1783, %v1748
        %v1785 = vmul.f32 %v1784, %v1783
        %v1786 = vmul.f32 0.5, %v1785
        %v1787 = vsub.f32 1.5, %v1786
        %v1788 = vmul.f32 %v1783, %v1787
        %vm1789 = vweird.f32 %v1748
        %vm1790 = vweird.f32 %v1783
        %vm1791 = vmor %vm1789, %vm1790
        %v1792 = vsel %vm1791, %v1783, %v1788
        %v1793 = vrsqrt.pop %v1749
        %v1794 = vmul.f32 %v1793, %v1749
        %v1795 = vmul.f32 %v1794, %v1793
        %v1796 = vmul.f32 0.5, %v1795
        %v1797 = vsub.f32 1.5, %v1796
        %v1798 = vmul.f32 %v1793, %v1797
        %vm1799 = vweird.f32 %v1749
        %vm1800 = vweird.f32 %v1793
        %vm1801 = vmor %vm1799, %vm1800
        %v1802 = vsel %vm1801, %v1793, %v1798
        %v1803 = vrsqrt.pop %v1750
        %v1804 = vmul.f32 %v1803, %v1750
        %v1805 = vmul.f32 %v1804, %v1803
        %v1806 = vmul.f32 0.5, %v1805
        %v1807 = vsub.f32 1.5, %v1806
        %v1808 = vmul.f32 %v1803, %v1807
        %vm1809 = vweird.f32 %v1750
        %vm1810 = vweird.f32 %v1803
        %vm1811 = vmor %vm1809, %vm1810
        %v1812 = vsel %vm1811, %v1803, %v1808
        %v1813 = vrsqrt.pop %v1751
        %v1814 = vmul.f32 %v1813, %v1751
        %v1815 = vmul.f32 %v1814, %v1813
        %v1816 = vmul.f32 0.5, %v1815
        %v1817 = vsub.f32 1.5, %v1816
        %v1818 = vmul.f32 %v1813, %v1817
        %vm1819 = vweird.f32 %v1751
        %vm1820 = vweird.f32 %v1813
        %vm1821 = vmor %vm1819, %vm1820
        %v1822 = vsel %vm1821, %v1813, %v1818
        %v1823 = vrsqrt.pop %v1752
        %v1824 = vmul.f32 %v1823, %v1752
        %v1825 = vmul.f32 %v1824, %v1823
        %v1826 = vmul.f32 0.5, %v1825
        %v1827 = vsub.f32 1.5, %v1826
        %v1828 = vmul.f32 %v1823, %v1827
        %vm1829 = vweird.f32 %v1752
        %vm1830 = vweird.f32 %v1823
        %vm1831 = vmor %vm1829, %vm1830
        %v1832 = vsel %vm1831, %v1823, %v1828
        %v1833 = vmul.f32 %v1705, %v1762
        %v1834 = vmul.f32 %v1706, %v1772
        %v1835 = vmul.f32 %v1707, %v1782
        %v1836 = vmul.f32 %v1708, %v1792
        %v1837 = vmul.f32 %v1709, %v1802
        %v1838 = vmul.f32 %v1710, %v1812
        %v1839 = vmul.f32 %v1711, %v1822
        %v1840 = vmul.f32 %v1712, %v1832
        %v1841 = vtanh.pop %v1833
        %v1842 = vtanh.pop %v1834
        %v1843 = vtanh.pop %v1835
        %v1844 = vtanh.pop %v1836
        %v1845 = vtanh.pop %v1837
        %v1846 = vtanh.pop %v1838
        %v1847 = vtanh.pop %v1839
        %v1848 = vtanh.pop %v1840
        %v1849 = vmul.f32 %v1666, %v1841
        %v1850 = vmul.f32 %v1667, %v1842
        %v1851 = vmul.f32 %v1668, %v1843
        %v1852 = vmul.f32 %v1669, %v1844
        %v1853 = vmul.f32 %v1670, %v1845
        %v1854 = vmul.f32 %v1671, %v1846
        %v1855 = vmul.f32 %v1672, %v1847
        %v1856 = vmul.f32 %v1673, %v1848
        %1857 = vst [vmem:[%s458] sm:$0xff] %v1849
        %1858 = vst [vmem:[%s458 + $0x8] sm:$0xff] %v1850
        %1859 = vst [vmem:[%s458 + $0x10] sm:$0xff] %v1851
        %1860 = vst [vmem:[%s458 + $0x18] sm:$0xff] %v1852
        %1861 = vst [vmem:[%s458 + $0x20] sm:$0xff] %v1853
        %1862 = vst [vmem:[%s458 + $0x28] sm:$0xff] %v1854
        %1863 = vst [vmem:[%s458 + $0x30] sm:$0xff] %v1855
        %1864 = vst [vmem:[%s458 + $0x38] sm:$0xff] %v1856
        %1865 = vst [vmem:[%s465] sm:$0xff] %v1634
        %1866 = vst [vmem:[%s465 + $0x8] sm:$0xff] %v1635
        %1867 = vst [vmem:[%s465 + $0x10] sm:$0xff] %v1636
        %1868 = vst [vmem:[%s465 + $0x18] sm:$0xff] %v1637
        %1869 = vst [vmem:[%s465 + $0x20] sm:$0xff] %v1638
        %1870 = vst [vmem:[%s465 + $0x28] sm:$0xff] %v1639
        %1871 = vst [vmem:[%s465 + $0x30] sm:$0xff] %v1640
        %1872 = vst [vmem:[%s465 + $0x38] sm:$0xff] %v1641
        %s1873 = sand.u32 %s204, 1
        %s1874 = scalar_lea.sflag [#allocation4], %s1873
        %s1875 = sand.u32 %s204, 1
        %s1876 = smul.addr %s1875, 64
        %s1877 = scalar_lea.vmem [#allocation13], %s1876
        %s1878 = sand.u32 %s230, 1
        %s1879 = scalar_lea.sflag [#allocation15], %s1878
        %s1880 = sand.u32 %s230, 1
        %s1881 = smul.addr %s1880, 64
        %s1882 = scalar_lea.vmem [#allocation14], %s1881
        // Predicated region
        $region73: #{atn_lstm_cell.1} parent=47 // pred_check
          %p1883 = pneg %p214
        $region74: #{atn_lstm_cell.1} parent=47 // pred_check_branch
          %1885 = sbr.rel (%p1883) target = $region76
        $region75: #{atn_lstm_cell.1} parent=47 // pred_region
          %s1886 = smul.u32 8, %s34
          %1888 = vsyncadd %s1874, 0
          %s1889 = smul.addr %s1886, 8
          %s1890 = scalar_lea.hbm %s7, %s1889
          %s1891 = sshll.u32 %s1877, 4
          %s1892 = int_to_ptr.vmem [resolvable:$true] %s1891
          %s1893 = sshll.u32 %s1890, 4
          %s1894 = int_to_ptr.hbm [resolvable:$true] %s1893
          %1899 = dma.vmem_to_hbm [thread:$0]  %s1892, 1024, %s1894, %s1874, 128, 128, 8
        $region76: #{atn_lstm_cell.1} parent=47 // pred_fallthru
          _
        // Predicated region
        $region77: #{atn_lstm_cell.1} parent=47 // pred_check
          %p1900 = pneg %p240
        $region78: #{atn_lstm_cell.1} parent=47 // pred_check_branch
          %1902 = sbr.rel (%p1900) target = $region80
        $region79: #{atn_lstm_cell.1} parent=47 // pred_region
          %s1903 = smul.u32 8, %s34
          %1905 = vsyncadd %s1879, 0
          %s1906 = smul.addr %s1903, 8
          %s1907 = scalar_lea.hbm %s8, %s1906
          %s1908 = sshll.u32 %s1882, 4
          %s1909 = int_to_ptr.vmem [resolvable:$true] %s1908
          %s1910 = sshll.u32 %s1907, 4
          %s1911 = int_to_ptr.hbm [resolvable:$true] %s1910
          %1916 = dma.vmem_to_hbm [thread:$0]  %s1909, 1024, %s1911, %s1879, 128, 128, 8
        $region80: #{atn_lstm_cell.1} parent=47 // pred_fallthru
          _
      $region48: #{atn_lstm_cell.1} parent=5 // pred_fallthru
        _
      %p1917 = scmp.le.s32.totalorder 2, %s29
      // Predicated region
      $region81: #{atn_lstm_cell.1} parent=5 // pred_check
        %p1918 = pneg %p1917
      $region82: #{atn_lstm_cell.1} parent=5 // pred_check_branch
        %1920 = sbr.rel (%p1918) target = $region84
      $region83: #{atn_lstm_cell.1} parent=5 // pred_region
        %s1921 = ssub.s32 %s29, 2
        // Predicated region
        $region85: #{atn_lstm_cell.1} parent=83 // pred_check
          %p1922 = pneg %p220
        $region86: #{atn_lstm_cell.1} parent=83 // pred_check_branch
          %1924 = sbr.rel (%p1922) target = $region88
        $region87: #{atn_lstm_cell.1} parent=83 // pred_region
          %s1925 = sand.u32 %s205, 1
          %s1926 = scalar_lea.sflag [#allocation4], %s1925
          %s1927 = sand.u32 %s205, 1
          %s1928 = smul.addr %s1927, 64
          %s1929 = scalar_lea.vmem [#allocation13], %s1928
          %1931 = dma.done %s1926, 1024
        $region88: #{atn_lstm_cell.1} parent=83 // pred_fallthru
          _
        // Predicated region
        $region89: #{atn_lstm_cell.1} parent=83 // pred_check
          %p1932 = pneg %p246
        $region90: #{atn_lstm_cell.1} parent=83 // pred_check_branch
          %1934 = sbr.rel (%p1932) target = $region92
        $region91: #{atn_lstm_cell.1} parent=83 // pred_region
          %s1935 = sand.u32 %s231, 1
          %s1936 = scalar_lea.sflag [#allocation15], %s1935
          %s1937 = sand.u32 %s231, 1
          %s1938 = smul.addr %s1937, 64
          %s1939 = scalar_lea.vmem [#allocation14], %s1938
          %1941 = dma.done %s1936, 1024
        $region92: #{atn_lstm_cell.1} parent=83 // pred_fallthru
          _
      $region84: #{atn_lstm_cell.1} parent=5 // pred_fallthru
        _
    $region6: #{atn_lstm_cell.1} parent=1 // loop_footer
      %s33 = sadd.s32 1, %s29
    $region7: #{atn_lstm_cell.1} parent=1 // loop_footer_branch
      %28 = sbr.rel target = $region3
    $region8: #{atn_lstm_cell.1} parent=1 // loop_exit
      _
    %1942 = vsyncpa [#allocation3], 1
    %s1943 = scalar_lea.sflag [#allocation3], 1
    %1944 = vsyncpa %s1943, 1
    %1945 = vsyncpa [#allocation6], 1
    %s1946 = scalar_lea.sflag [#allocation6], 1
    %1947 = vsyncpa %s1946, 1
    %1948 = vsyncpa [#allocation9], 1
    %1949 = vsyncpa [#allocation12], 1
    %1950 = vsyncpa [#allocation4], 1
    %s1951 = scalar_lea.sflag [#allocation4], 1
    %1952 = vsyncpa %s1951, 1
    %1953 = vsyncpa [#allocation15], 1
    %s1954 = scalar_lea.sflag [#allocation15], 1
    %1955 = vsyncpa %s1954, 1

// kernel: atn_lstm_cell.1
$region0: #{atn_lstm_cell.1}
  #allocation0 [shape = 'u32[]', space=smem, size = 0x4, offset = 0x4, fixed_abs, tag = 'smem constant byte address 0x4 - core index']
  #allocation1 [shape = 'u32[72,128]{1,0:T(1,128)}', space=vmem, size = 0x9000, scoped, tag = 'internal scratch']
  %s0 = inlined_call_operand.hbm [shape: f32[128,128], index: 0, kind: input, shape index: {}]
  %s1 = inlined_call_operand.hbm [shape: f32[128,128], index: 1, kind: input, shape index: {}]
  %s2 = inlined_call_operand.hbm [shape: f32[128,128], index: 2, kind: input, shape index: {}]
  %s3 = inlined_call_operand.hbm [shape: f32[128,512], index: 3, kind: input, shape index: {}]
  %s4 = inlined_call_operand.hbm [shape: f32[128,512], index: 4, kind: input, shape index: {}]
  %s5 = inlined_call_operand.vmem [shape: f32[1,512], index: 5, kind: input, shape index: {}]
  %s6 = inlined_call_operand.hbm [shape: f32[1,512], index: 6, kind: input, shape index: {}]
  %s7 = inlined_call_operand.hbm [shape: f32[128,128], index: 7, kind: output, shape index: {0}]
  %s8 = inlined_call_operand.hbm [shape: f32[128,128], index: 8, kind: output, shape index: {1}]
  %9 = xla_tuple %s7, %s8
  %s10 = sld [smem:[#allocation0]]
  $region93: #{atn_lstm_cell.1} parent=0
    _
  %s12 = ssub.s32 1, %s10
  %s13 = scalar_select 0, %s12, %s10
  $region1: #{atn_lstm_cell.1} parent=0
    #allocation2 [shape = 'u8[65536]{0}', space=vmem, size = 0x10000, scoped, tag = 'input window, operand 0']
    #allocation3 [shape = 's32[2]{0}', space=sflag, size = 0x8, scoped, tag = 'scoped memory for atn_lstm_cell.1']
    #allocation4 [shape = 's32[2]{0}', space=sflag, size = 0x8, scoped, tag = 'scoped memory for atn_lstm_cell.1']
    #allocation5 [shape = 'u8[65536]{0}', space=vmem, size = 0x10000, scoped, tag = 'input window, operand 1']
    #allocation6 [shape = 's32[2]{0}', space=sflag, size = 0x8, scoped, tag = 'scoped memory for atn_lstm_cell.1']
    #allocation7 [shape = 'u8[65536]{0}', space=vmem, size = 0x10000, scoped, tag = 'input window, operand 2']
    #allocation8 [shape = 'u8[262144]{0}', space=vmem, size = 0x40000, scoped, tag = 'input window, operand 3, single buffered']
    #allocation9 [shape = 's32[1]{0}', space=sflag, size = 0x4, scoped, tag = 'scoped memory for atn_lstm_cell.1']
    #allocation10 [shape = 'u8[262144]{0}', space=vmem, size = 0x40000, scoped, tag = 'input window, operand 4, single buffered']
    #allocation11 [shape = 'u8[2048]{0}', space=vmem, size = 0x800, scoped, tag = 'input window, operand 6, single buffered']
    #allocation12 [shape = 's32[1]{0}', space=sflag, size = 0x4, scoped, tag = 'scoped memory for atn_lstm_cell.1']
    #allocation13 [shape = 'u8[65536]{0}', space=vmem, size = 0x10000, scoped, tag = 'output window, operand 0']
    #allocation14 [shape = 'u8[65536]{0}', space=vmem, size = 0x10000, scoped, tag = 'output window, operand 1']
    #allocation15 [shape = 's32[2]{0}', space=sflag, size = 0x8, scoped, tag = 'scoped memory for atn_lstm_cell.1']
    %14 = vsyncpa [#allocation3], 0
    %s15 = scalar_lea.sflag [#allocation3], 1
    %16 = vsyncpa %s15, 0
    %17 = vsyncpa [#allocation6], 0
    %s18 = scalar_lea.sflag [#allocation6], 1
    %19 = vsyncpa %s18, 0
    %20 = vsyncpa [#allocation9], 0
    %21 = vsyncpa [#allocation12], 0
    %22 = vsyncpa [#allocation4], 0
    %s23 = scalar_lea.sflag [#allocation4], 1
    %24 = vsyncpa %s23, 0
    %25 = vsyncpa [#allocation15], 0
    %s26 = scalar_lea.sflag [#allocation15], 1
    %27 = vsyncpa %s26, 0
    loop: start=0, step=1, limit=4
    $region2: #{atn_lstm_cell.1} parent=1 // loop_pre_header
      _
    $region3: #{atn_lstm_cell.1} parent=1 // loop_header
      %s29 = sphi 0, %s33
      %p30 = scmp.ge.s32.totalorder %s29, 4
      %s39 = sphi 0, %s41
      %s42 = sphi 0, %s39
      %s43 = sphi 0, %s42
      %s59 = sphi 0, %s43
      %s65 = sphi 0, %s67
      %s68 = sphi 0, %s65
      %s69 = sphi 0, %s68
      %s85 = sphi 0, %s69
      %s91 = sphi 0, %s93
      %s94 = sphi 0, %s91
      %s95 = sphi 0, %s94
      %s111 = sphi 0, %s95
      %s115 = sphi 0, %s115
      %s117 = sphi 0, %s115
      %s118 = sphi 0, %s117
      %s132 = sphi 0, %s118
      %s136 = sphi 0, %s136
      %s138 = sphi 0, %s136
      %s139 = sphi 0, %s138
      %s153 = sphi 0, %s139
      %s157 = sphi 0, %s157
      %s159 = sphi 0, %s157
      %s160 = sphi 0, %s159
      %s174 = sphi 0, %s160
      %s178 = sphi 0, %s178
      %s180 = sphi 0, %s178
      %s181 = sphi 0, %s180
      %s195 = sphi 0, %s181
      %s201 = sphi 0, %s203
      %s204 = sphi 0, %s201
      %s205 = sphi 0, %s204
      %s221 = sphi 0, %s205
      %s227 = sphi 0, %s229
      %s230 = sphi 0, %s227
      %s231 = sphi 0, %s230
      %s247 = sphi 0, %s231
    $region4: #{atn_lstm_cell.1} parent=1 // loop_header_branch
      %32 = sbr.rel (%p30) target = $region8
    $region5: #{atn_lstm_cell.1} parent=1 // loop_body
      %s34 = ssub.s32 %s29, 1
      %s35 = ssub.s32 %s29, 2
      %s36 = sadd.s32 %s29, 1
      %s37 = ssub.s32 %s29, %s36
      %p38 = scmp.eq.s32.totalorder %s37, 0
      %s40 = sadd.s32 %s39, 1
      %s41 = scalar_select %p38, %s39, %s40
      %p44 = pneg %p38
      %p45 = scmp.eq.s32.totalorder %s29, 1
      %p46 = por %p44, %p45
      %p47 = scmp.ne.s32.totalorder %s39, %s42
      %p48 = scmp.eq.s32.totalorder %s29, 0
      %p49 = por %p47, %p48
      %p50 = scmp.ne.s32.totalorder %s39, %s42
      %p51 = scmp.eq.s32.totalorder %s34, 1
      %p52 = por %p50, %p51
      %p53 = scmp.ne.s32.totalorder %s42, %s43
      %p54 = scmp.eq.s32.totalorder %s34, 0
      %p55 = por %p53, %p54
      %p56 = scmp.ne.s32.totalorder %s42, %s43
      %p57 = scmp.eq.s32.totalorder %s35, 1
      %p58 = por %p56, %p57
      %p60 = scmp.ne.s32.totalorder %s43, %s59
      %p61 = scmp.eq.s32.totalorder %s35, 0
      %p62 = por %p60, %p61
      %s63 = ssub.s32 %s29, %s36
      %p64 = scmp.eq.s32.totalorder %s63, 0
      %s66 = sadd.s32 %s65, 1
      %s67 = scalar_select %p64, %s65, %s66
      %p70 = pneg %p64
      %p71 = scmp.eq.s32.totalorder %s29, 1
      %p72 = por %p70, %p71
      %p73 = scmp.ne.s32.totalorder %s65, %s68
      %p74 = scmp.eq.s32.totalorder %s29, 0
      %p75 = por %p73, %p74
      %p76 = scmp.ne.s32.totalorder %s65, %s68
      %p77 = scmp.eq.s32.totalorder %s34, 1
      %p78 = por %p76, %p77
      %p79 = scmp.ne.s32.totalorder %s68, %s69
      %p80 = scmp.eq.s32.totalorder %s34, 0
      %p81 = por %p79, %p80
      %p82 = scmp.ne.s32.totalorder %s68, %s69
      %p83 = scmp.eq.s32.totalorder %s35, 1
      %p84 = por %p82, %p83
      %p86 = scmp.ne.s32.totalorder %s69, %s85
      %p87 = scmp.eq.s32.totalorder %s35, 0
      %p88 = por %p86, %p87
      %s89 = ssub.s32 %s29, %s36
      %p90 = scmp.eq.s32.totalorder %s89, 0
      %s92 = sadd.s32 %s91, 1
      %s93 = scalar_select %p90, %s91, %s92
      %p96 = pneg %p90
      %p97 = scmp.eq.s32.totalorder %s29, 1
      %p98 = por %p96, %p97
      %p99 = scmp.ne.s32.totalorder %s91, %s94
      %p100 = scmp.eq.s32.totalorder %s29, 0
      %p101 = por %p99, %p100
      %p102 = scmp.ne.s32.totalorder %s91, %s94
      %p103 = scmp.eq.s32.totalorder %s34, 1
      %p104 = por %p102, %p103
      %p105 = scmp.ne.s32.totalorder %s94, %s95
      %p106 = scmp.eq.s32.totalorder %s34, 0
      %p107 = por %p105, %p106
      %p108 = scmp.ne.s32.totalorder %s94, %s95
      %p109 = scmp.eq.s32.totalorder %s35, 1
      %p110 = por %p108, %p109
      %p112 = scmp.ne.s32.totalorder %s95, %s111
      %p113 = scmp.eq.s32.totalorder %s35, 0
      %p114 = por %p112, %p113
      %s116 = sadd.s32 %s115, 1
      %p119 = scmp.eq.s32.totalorder %s29, 1
      %p120 = scmp.ne.s32.totalorder %s115, %s117
      %p121 = scmp.eq.s32.totalorder %s29, 0
      %p122 = por %p120, %p121
      %p123 = scmp.ne.s32.totalorder %s115, %s117
      %p124 = scmp.eq.s32.totalorder %s34, 1
      %p125 = por %p123, %p124
      %p126 = scmp.ne.s32.totalorder %s117, %s118
      %p127 = scmp.eq.s32.totalorder %s34, 0
      %p128 = por %p126, %p127
      %p129 = scmp.ne.s32.totalorder %s117, %s118
      %p130 = scmp.eq.s32.totalorder %s35, 1
      %p131 = por %p129, %p130
      %p133 = scmp.ne.s32.totalorder %s118, %s132
      %p134 = scmp.eq.s32.totalorder %s35, 0
      %p135 = por %p133, %p134
      %s137 = sadd.s32 %s136, 1
      %p140 = scmp.eq.s32.totalorder %s29, 1
      %p141 = scmp.ne.s32.totalorder %s136, %s138
      %p142 = scmp.eq.s32.totalorder %s29, 0
      %p143 = por %p141, %p142
      %p144 = scmp.ne.s32.totalorder %s136, %s138
      %p145 = scmp.eq.s32.totalorder %s34, 1
      %p146 = por %p144, %p145
      %p147 = scmp.ne.s32.totalorder %s138, %s139
      %p148 = scmp.eq.s32.totalorder %s34, 0
      %p149 = por %p147, %p148
      %p150 = scmp.ne.s32.totalorder %s138, %s139
      %p151 = scmp.eq.s32.totalorder %s35, 1
      %p152 = por %p150, %p151
      %p154 = scmp.ne.s32.totalorder %s139, %s153
      %p155 = scmp.eq.s32.totalorder %s35, 0
      %p156 = por %p154, %p155
      %s158 = sadd.s32 %s157, 1
      %p161 = scmp.eq.s32.totalorder %s29, 1
      %p162 = scmp.ne.s32.totalorder %s157, %s159
      %p163 = scmp.eq.s32.totalorder %s29, 0
      %p164 = por %p162, %p163
      %p165 = scmp.ne.s32.totalorder %s157, %s159
      %p166 = scmp.eq.s32.totalorder %s34, 1
      %p167 = por %p165, %p166
      %p168 = scmp.ne.s32.totalorder %s159, %s160
      %p169 = scmp.eq.s32.totalorder %s34, 0
      %p170 = por %p168, %p169
      %p171 = scmp.ne.s32.totalorder %s159, %s160
      %p172 = scmp.eq.s32.totalorder %s35, 1
      %p173 = por %p171, %p172
      %p175 = scmp.ne.s32.totalorder %s160, %s174
      %p176 = scmp.eq.s32.totalorder %s35, 0
      %p177 = por %p175, %p176
      %s179 = sadd.s32 %s178, 1
      %p182 = scmp.eq.s32.totalorder %s29, 1
      %p183 = scmp.ne.s32.totalorder %s178, %s180
      %p184 = scmp.eq.s32.totalorder %s29, 0
      %p185 = por %p183, %p184
      %p186 = scmp.ne.s32.totalorder %s178, %s180
      %p187 = scmp.eq.s32.totalorder %s34, 1
      %p188 = por %p186, %p187
      %p189 = scmp.ne.s32.totalorder %s180, %s181
      %p190 = scmp.eq.s32.totalorder %s34, 0
      %p191 = por %p189, %p190
      %p192 = scmp.ne.s32.totalorder %s180, %s181
      %p193 = scmp.eq.s32.totalorder %s35, 1
      %p194 = por %p192, %p193
      %p196 = scmp.ne.s32.totalorder %s181, %s195
      %p197 = scmp.eq.s32.totalorder %s35, 0
      %p198 = por %p196, %p197
      %s199 = ssub.s32 %s29, %s36
      %p200 = scmp.eq.s32.totalorder %s199, 0
      %s202 = sadd.s32 %s201, 1
      %s203 = scalar_select %p200, %s201, %s202
      %p206 = pneg %p200
      %p207 = scmp.eq.s32.totalorder %s29, 1
      %p208 = por %p206, %p207
      %p209 = scmp.ne.s32.totalorder %s201, %s204
      %p210 = scmp.eq.s32.totalorder %s29, 0
      %p211 = por %p209, %p210
      %p212 = scmp.ne.s32.totalorder %s201, %s204
      %p213 = scmp.eq.s32.totalorder %s34, 1
      %p214 = por %p212, %p213
      %p215 = scmp.ne.s32.totalorder %s204, %s205
      %p216 = scmp.eq.s32.totalorder %s34, 0
      %p217 = por %p215, %p216
      %p218 = scmp.ne.s32.totalorder %s204, %s205
      %p219 = scmp.eq.s32.totalorder %s35, 1
      %p220 = por %p218, %p219
      %p222 = scmp.ne.s32.totalorder %s205, %s221
      %p223 = scmp.eq.s32.totalorder %s35, 0
      %p224 = por %p222, %p223
      %s225 = ssub.s32 %s29, %s36
      %p226 = scmp.eq.s32.totalorder %s225, 0
      %s228 = sadd.s32 %s227, 1
      %s229 = scalar_select %p226, %s227, %s228
      %p232 = pneg %p226
      %p233 = scmp.eq.s32.totalorder %s29, 1
      %p234 = por %p232, %p233
      %p235 = scmp.ne.s32.totalorder %s227, %s230
      %p236 = scmp.eq.s32.totalorder %s29, 0
      %p237 = por %p235, %p236
      %p238 = scmp.ne.s32.totalorder %s227, %s230
      %p239 = scmp.eq.s32.totalorder %s34, 1
      %p240 = por %p238, %p239
      %p241 = scmp.ne.s32.totalorder %s230, %s231
      %p242 = scmp.eq.s32.totalorder %s34, 0
      %p243 = por %p241, %p242
      %p244 = scmp.ne.s32.totalorder %s230, %s231
      %p245 = scmp.eq.s32.totalorder %s35, 1
      %p246 = por %p244, %p245
      %p248 = scmp.ne.s32.totalorder %s231, %s247
      %p249 = scmp.eq.s32.totalorder %s35, 0
      %p250 = por %p248, %p249
      %p251 = scmp.le.s32.totalorder 1, %s29
      %p252 = scmp.lt.s32.totalorder %s29, 3
      %p253 = pnand %p251, %p252
      %p254 = pneg %p253
      // Predicated region
      $region9: #{atn_lstm_cell.1} parent=5 // pred_check
        _
      $region10: #{atn_lstm_cell.1} parent=5 // pred_check_branch
        %256 = sbr.rel (%p253) target = $region12
      $region11: #{atn_lstm_cell.1} parent=5 // pred_region
        %s257 = ssub.s32 %s29, 1
        // Predicated region
        $region13: #{atn_lstm_cell.1} parent=11 // pred_check
          %p258 = pneg %p128
        $region14: #{atn_lstm_cell.1} parent=11 // pred_check_branch
          %260 = sbr.rel (%p258) target = $region16
        $region15: #{atn_lstm_cell.1} parent=11 // pred_region
          %262 = vsyncadd [#allocation9], 0
          %s263 = sshll.u32 %s3, 4
          %s264 = int_to_ptr.hbm [resolvable:$true] %s263
          %s265 = sshll.u32 [#allocation8], 4
          %s266 = int_to_ptr.vmem [resolvable:$true] %s265
          %271 = dma.hbm_to_vmem [thread:$0]  %s264, 8192, %s266, [#allocation9], 512, 512, 32
        $region16: #{atn_lstm_cell.1} parent=11 // pred_fallthru
          _
        // Predicated region
        $region17: #{atn_lstm_cell.1} parent=11 // pred_check
          %p272 = pneg %p149
        $region18: #{atn_lstm_cell.1} parent=11 // pred_check_branch
          %274 = sbr.rel (%p272) target = $region20
        $region19: #{atn_lstm_cell.1} parent=11 // pred_region
          %276 = vsyncadd [#allocation9], 0
          %s277 = sshll.u32 %s4, 4
          %s278 = int_to_ptr.hbm [resolvable:$true] %s277
          %s279 = sshll.u32 [#allocation10], 4
          %s280 = int_to_ptr.vmem [resolvable:$true] %s279
          %285 = dma.hbm_to_vmem [thread:$0]  %s278, 8192, %s280, [#allocation9], 512, 512, 32
        $region20: #{atn_lstm_cell.1} parent=11 // pred_fallthru
          _
        // Predicated region
        $region21: #{atn_lstm_cell.1} parent=11 // pred_check
          %p286 = pneg %p170
        $region22: #{atn_lstm_cell.1} parent=11 // pred_check_branch
          %288 = sbr.rel (%p286) target = $region24
        $region23: #{atn_lstm_cell.1} parent=11 // pred_region
          _
        $region24: #{atn_lstm_cell.1} parent=11 // pred_fallthru
          _
        // Predicated region
        $region25: #{atn_lstm_cell.1} parent=11 // pred_check
          %p289 = pneg %p191
        $region26: #{atn_lstm_cell.1} parent=11 // pred_check_branch
          %291 = sbr.rel (%p289) target = $region28
        $region27: #{atn_lstm_cell.1} parent=11 // pred_region
          %293 = vsyncadd [#allocation12], 0
          %s295 = sshll.u32 %s6, 4
          %s296 = int_to_ptr.hbm [resolvable:$true] %s295
          %s297 = sshll.u32 [#allocation11], 4
          %s298 = int_to_ptr.vmem [resolvable:$true] %s297
          %300 = dma.hbm_to_vmem [thread:$0]  %s296, 64, %s298, [#allocation12]
        $region28: #{atn_lstm_cell.1} parent=11 // pred_fallthru
          _
      $region12: #{atn_lstm_cell.1} parent=5 // pred_fallthru
        _
      %p301 = scmp.lt.s32.totalorder %s29, 2
      // Predicated region
      $region29: #{atn_lstm_cell.1} parent=5 // pred_check
        %p302 = pneg %p301
      $region30: #{atn_lstm_cell.1} parent=5 // pred_check_branch
        %304 = sbr.rel (%p302) target = $region32
      $region31: #{atn_lstm_cell.1} parent=5 // pred_region
        // Predicated region
        $region33: #{atn_lstm_cell.1} parent=31 // pred_check
          %p305 = pneg %p49
        $region34: #{atn_lstm_cell.1} parent=31 // pred_check_branch
          %307 = sbr.rel (%p305) target = $region36
        $region35: #{atn_lstm_cell.1} parent=31 // pred_region
          %s308 = sand.u32 %s39, 1
          %s309 = scalar_lea.sflag [#allocation3], %s308
          %s310 = sand.u32 %s39, 1
          %s311 = smul.addr %s310, 64
          %s312 = scalar_lea.vmem [#allocation2], %s311
          %s313 = smul.u32 8, %s29
          %315 = vsyncadd %s309, 0
          %s316 = smul.addr %s313, 8
          %s317 = scalar_lea.hbm %s0, %s316
          %s318 = sshll.u32 %s317, 4
          %s319 = int_to_ptr.hbm [resolvable:$true] %s318
          %s320 = sshll.u32 %s312, 4
          %s321 = int_to_ptr.vmem [resolvable:$true] %s320
          %326 = dma.hbm_to_vmem [thread:$0]  %s319, 1024, %s321, %s309, 128, 128, 8
        $region36: #{atn_lstm_cell.1} parent=31 // pred_fallthru
          _
        // Predicated region
        $region37: #{atn_lstm_cell.1} parent=31 // pred_check
          %p327 = pneg %p75
        $region38: #{atn_lstm_cell.1} parent=31 // pred_check_branch
          %329 = sbr.rel (%p327) target = $region40
        $region39: #{atn_lstm_cell.1} parent=31 // pred_region
          %s330 = sand.u32 %s29, 1
          %s331 = scalar_lea.sflag [#allocation6], %s330
          %s332 = sand.u32 %s65, 1
          %s333 = smul.addr %s332, 64
          %s334 = scalar_lea.vmem [#allocation5], %s333
          %s335 = smul.u32 8, %s29
          %337 = vsyncadd %s331, 0
          %s338 = smul.addr %s335, 8
          %s339 = scalar_lea.hbm %s1, %s338
          %s340 = sshll.u32 %s339, 4
          %s341 = int_to_ptr.hbm [resolvable:$true] %s340
          %s342 = sshll.u32 %s334, 4
          %s343 = int_to_ptr.vmem [resolvable:$true] %s342
          %348 = dma.hbm_to_vmem [thread:$0]  %s341, 1024, %s343, %s331, 128, 128, 8
        $region40: #{atn_lstm_cell.1} parent=31 // pred_fallthru
          _
        // Predicated region
        $region41: #{atn_lstm_cell.1} parent=31 // pred_check
          %p349 = pneg %p101
        $region42: #{atn_lstm_cell.1} parent=31 // pred_check_branch
          %351 = sbr.rel (%p349) target = $region44
        $region43: #{atn_lstm_cell.1} parent=31 // pred_region
          %s352 = sand.u32 %s29, 1
          %s353 = scalar_lea.sflag [#allocation6], %s352
          %s354 = sand.u32 %s91, 1
          %s355 = smul.addr %s354, 64
          %s356 = scalar_lea.vmem [#allocation7], %s355
          %s357 = smul.u32 8, %s29
          %359 = vsyncadd %s353, 0
          %s360 = smul.addr %s357, 8
          %s361 = scalar_lea.hbm %s2, %s360
          %s362 = sshll.u32 %s361, 4
          %s363 = int_to_ptr.hbm [resolvable:$true] %s362
          %s364 = sshll.u32 %s356, 4
          %s365 = int_to_ptr.vmem [resolvable:$true] %s364
          %370 = dma.hbm_to_vmem [thread:$0]  %s363, 1024, %s365, %s353, 128, 128, 8
        $region44: #{atn_lstm_cell.1} parent=31 // pred_fallthru
          _
      $region32: #{atn_lstm_cell.1} parent=5 // pred_fallthru
        _
      %p371 = scmp.le.s32.totalorder 1, %s29
      %p372 = scmp.lt.s32.totalorder %s29, 3
      %p373 = pnand %p371, %p372
      %p374 = pneg %p373
      // Predicated region
      $region45: #{atn_lstm_cell.1} parent=5 // pred_check
        _
      $region46: #{atn_lstm_cell.1} parent=5 // pred_check_branch
        %376 = sbr.rel (%p373) target = $region48
      $region47: #{atn_lstm_cell.1} parent=5 // pred_region
        %s377 = ssub.s32 %s29, 1
        %s378 = sand.u32 %s42, 1
        %s379 = scalar_lea.sflag [#allocation3], %s378
        %s380 = sand.u32 %s42, 1
        %s381 = smul.addr %s380, 64
        %s382 = scalar_lea.vmem [#allocation2], %s381
        // Predicated region
        $region49: #{atn_lstm_cell.1} parent=47 // pred_check
          %p383 = pneg %p55
        $region50: #{atn_lstm_cell.1} parent=47 // pred_check_branch
          %385 = sbr.rel (%p383) target = $region52
        $region51: #{atn_lstm_cell.1} parent=47 // pred_region
          %387 = dma.done %s379, 1024
        $region52: #{atn_lstm_cell.1} parent=47 // pred_fallthru
          _
        %s388 = sand.u32 %s34, 1
        %s389 = scalar_lea.sflag [#allocation6], %s388
        %s390 = sand.u32 %s68, 1
        %s391 = smul.addr %s390, 64
        %s392 = scalar_lea.vmem [#allocation5], %s391
        // Predicated region
        $region53: #{atn_lstm_cell.1} parent=47 // pred_check
          %p393 = pneg %p81
        $region54: #{atn_lstm_cell.1} parent=47 // pred_check_branch
          %395 = sbr.rel (%p393) target = $region56
        $region55: #{atn_lstm_cell.1} parent=47 // pred_region
          %397 = dma.done %s389, 1024
        $region56: #{atn_lstm_cell.1} parent=47 // pred_fallthru
          _
        %s398 = sand.u32 %s34, 1
        %s399 = scalar_lea.sflag [#allocation6], %s398
        %s400 = sand.u32 %s94, 1
        %s401 = smul.addr %s400, 64
        %s402 = scalar_lea.vmem [#allocation7], %s401
        // Predicated region
        $region57: #{atn_lstm_cell.1} parent=47 // pred_check
          %p403 = pneg %p107
        $region58: #{atn_lstm_cell.1} parent=47 // pred_check_branch
          %405 = sbr.rel (%p403) target = $region60
        $region59: #{atn_lstm_cell.1} parent=47 // pred_region
          %407 = dma.done %s399, 1024
        $region60: #{atn_lstm_cell.1} parent=47 // pred_fallthru
          _
        // Predicated region
        $region61: #{atn_lstm_cell.1} parent=47 // pred_check
          %p408 = pneg %p128
        $region62: #{atn_lstm_cell.1} parent=47 // pred_check_branch
          %410 = sbr.rel (%p408) target = $region64
        $region63: #{atn_lstm_cell.1} parent=47 // pred_region
          %412 = dma.done [#allocation9], 8192
        $region64: #{atn_lstm_cell.1} parent=47 // pred_fallthru
          _
        // Predicated region
        $region65: #{atn_lstm_cell.1} parent=47 // pred_check
          %p413 = pneg %p149
        $region66: #{atn_lstm_cell.1} parent=47 // pred_check_branch
          %415 = sbr.rel (%p413) target = $region68
        $region67: #{atn_lstm_cell.1} parent=47 // pred_region
          %417 = dma.done [#allocation9], 8192
        $region68: #{atn_lstm_cell.1} parent=47 // pred_fallthru
          _
        // Predicated region
        $region69: #{atn_lstm_cell.1} parent=47 // pred_check
          %p418 = pneg %p191
        $region70: #{atn_lstm_cell.1} parent=47 // pred_check_branch
          %420 = sbr.rel (%p418) target = $region72
        $region71: #{atn_lstm_cell.1} parent=47 // pred_region
          %422 = dma.done [#allocation12], 64
        $region72: #{atn_lstm_cell.1} parent=47 // pred_fallthru
          _
        %s423 = sand.u32 %s42, 1
        %s424 = scalar_lea.sflag [#allocation3], %s423
        %s425 = sand.u32 %s42, 1
        %s426 = smul.addr %s425, 64
        %s427 = scalar_lea.vmem [#allocation2], %s426
        %p428 = pneg %p55
        %p429 = pneg %p52
        %s430 = sand.u32 %s34, 1
        %s431 = scalar_lea.sflag [#allocation6], %s430
        %s432 = sand.u32 %s68, 1
        %s433 = smul.addr %s432, 64
        %s434 = scalar_lea.vmem [#allocation5], %s433
        %p435 = pneg %p81
        %p436 = pneg %p78
        %s437 = sand.u32 %s34, 1
        %s438 = scalar_lea.sflag [#allocation6], %s437
        %s439 = sand.u32 %s94, 1
        %s440 = smul.addr %s439, 64
        %s441 = scalar_lea.vmem [#allocation7], %s440
        %p442 = pneg %p107
        %p443 = pneg %p104
        %p444 = pneg %p128
        %p445 = pneg %p125
        %p446 = pneg %p149
        %p447 = pneg %p146
        %p448 = pneg %p170
        %p449 = pneg %p167
        %p450 = pneg %p191
        %p451 = pneg %p188
        %p452 = pneg %p217
        %p453 = pneg %p214
        %s454 = sand.u32 %s204, 1
        %s455 = scalar_lea.sflag [#allocation4], %s454
        %s456 = sand.u32 %s204, 1
        %s457 = smul.addr %s456, 64
        %s458 = scalar_lea.vmem [#allocation13], %s457
        %p459 = pneg %p243
        %p460 = pneg %p240
        %s461 = sand.u32 %s230, 1
        %s462 = scalar_lea.sflag [#allocation15], %s461
        %s463 = sand.u32 %s230, 1
        %s464 = smul.addr %s463, 64
        %s465 = scalar_lea.vmem [#allocation14], %s464
        %s466 = smul.u32 8, %s34
        %s467 = smul.u32 8, %s34
        %s468 = smul.u32 8, %s34
        %s469 = smul.u32 8, %s34
        %s470 = smul.u32 8, %s34
        %v471 = vld [vmem:[%s392] sm:$0xff]
        %v472 = vld [vmem:[%s392 + $0x8] sm:$0xff]
        %v473 = vld [vmem:[%s392 + $0x10] sm:$0xff]
        %v474 = vld [vmem:[%s392 + $0x18] sm:$0xff]
        %v475 = vld [vmem:[%s392 + $0x20] sm:$0xff]
        %v476 = vld [vmem:[%s392 + $0x28] sm:$0xff]
        %v477 = vld [vmem:[%s392 + $0x30] sm:$0xff]
        %v478 = vld [vmem:[%s392 + $0x38] sm:$0xff]
        %v479 = vpack.c.bf16 %v472, %v471
        %v480 = vpack.c.bf16 %v474, %v473
        %v481 = vpack.c.bf16 %v476, %v475
        %v482 = vpack.c.bf16 %v478, %v477
        %v483 = vld [vmem:[%s382] sm:$0xff]
        %v484 = vld [vmem:[%s382 + $0x8] sm:$0xff]
        %v485 = vld [vmem:[%s382 + $0x10] sm:$0xff]
        %v486 = vld [vmem:[%s382 + $0x18] sm:$0xff]
        %v487 = vld [vmem:[%s382 + $0x20] sm:$0xff]
        %v488 = vld [vmem:[%s382 + $0x28] sm:$0xff]
        %v489 = vld [vmem:[%s382 + $0x30] sm:$0xff]
        %v490 = vld [vmem:[%s382 + $0x38] sm:$0xff]
        %v491 = vpack.c.bf16 %v484, %v483
        %v492 = vpack.c.bf16 %v486, %v485
        %v493 = vpack.c.bf16 %v488, %v487
        %v494 = vpack.c.bf16 %v490, %v489
        %v495 = vld [vmem:[#allocation10] sm:$0xff]
        %v496 = vld [vmem:[#allocation10 + $0x8] sm:$0xff]
        %v497 = vld [vmem:[#allocation10 + $0x10] sm:$0xff]
        %v498 = vld [vmem:[#allocation10 + $0x18] sm:$0xff]
        %v499 = vld [vmem:[#allocation10 + $0x20] sm:$0xff]
        %v500 = vld [vmem:[#allocation10 + $0x28] sm:$0xff]
        %v501 = vld [vmem:[#allocation10 + $0x30] sm:$0xff]
        %v502 = vld [vmem:[#allocation10 + $0x38] sm:$0xff]
        %v503 = vld [vmem:[#allocation10 + $0x40] sm:$0xff]
        %v504 = vld [vmem:[#allocation10 + $0x48] sm:$0xff]
        %v505 = vld [vmem:[#allocation10 + $0x50] sm:$0xff]
        %v506 = vld [vmem:[#allocation10 + $0x58] sm:$0xff]
        %v507 = vld [vmem:[#allocation10 + $0x60] sm:$0xff]
        %v508 = vld [vmem:[#allocation10 + $0x68] sm:$0xff]
        %v509 = vld [vmem:[#allocation10 + $0x70] sm:$0xff]
        %v510 = vld [vmem:[#allocation10 + $0x78] sm:$0xff]
        %v511 = vld [vmem:[#allocation10 + $0x80] sm:$0xff]
        %v512 = vld [vmem:[#allocation10 + $0x88] sm:$0xff]
        %v513 = vld [vmem:[#allocation10 + $0x90] sm:$0xff]
        %v514 = vld [vmem:[#allocation10 + $0x98] sm:$0xff]
        %v515 = vld [vmem:[#allocation10 + $0xa0] sm:$0xff]
        %v516 = vld [vmem:[#allocation10 + $0xa8] sm:$0xff]
        %v517 = vld [vmem:[#allocation10 + $0xb0] sm:$0xff]
        %v518 = vld [vmem:[#allocation10 + $0xb8] sm:$0xff]
        %v519 = vld [vmem:[#allocation10 + $0xc0] sm:$0xff]
        %v520 = vld [vmem:[#allocation10 + $0xc8] sm:$0xff]
        %v521 = vld [vmem:[#allocation10 + $0xd0] sm:$0xff]
        %v522 = vld [vmem:[#allocation10 + $0xd8] sm:$0xff]
        %v523 = vld [vmem:[#allocation10 + $0xe0] sm:$0xff]
        %v524 = vld [vmem:[#allocation10 + $0xe8] sm:$0xff]
        %v525 = vld [vmem:[#allocation10 + $0xf0] sm:$0xff]
        %v526 = vld [vmem:[#allocation10 + $0xf8] sm:$0xff]
        %v527 = vld [vmem:[#allocation10 + $0x100] sm:$0xff]
        %v528 = vld [vmem:[#allocation10 + $0x108] sm:$0xff]
        %v529 = vld [vmem:[#allocation10 + $0x110] sm:$0xff]
        %v530 = vld [vmem:[#allocation10 + $0x118] sm:$0xff]
        %v531 = vld [vmem:[#allocation10 + $0x120] sm:$0xff]
        %v532 = vld [vmem:[#allocation10 + $0x128] sm:$0xff]
        %v533 = vld [vmem:[#allocation10 + $0x130] sm:$0xff]
        %v534 = vld [vmem:[#allocation10 + $0x138] sm:$0xff]
        %v535 = vld [vmem:[#allocation10 + $0x140] sm:$0xff]
        %v536 = vld [vmem:[#allocation10 + $0x148] sm:$0xff]
        %v537 = vld [vmem:[#allocation10 + $0x150] sm:$0xff]
        %v538 = vld [vmem:[#allocation10 + $0x158] sm:$0xff]
        %v539 = vld [vmem:[#allocation10 + $0x160] sm:$0xff]
        %v540 = vld [vmem:[#allocation10 + $0x168] sm:$0xff]
        %v541 = vld [vmem:[#allocation10 + $0x170] sm:$0xff]
        %v542 = vld [vmem:[#allocation10 + $0x178] sm:$0xff]
        %v543 = vld [vmem:[#allocation10 + $0x180] sm:$0xff]
        %v544 = vld [vmem:[#allocation10 + $0x188] sm:$0xff]
        %v545 = vld [vmem:[#allocation10 + $0x190] sm:$0xff]
        %v546 = vld [vmem:[#allocation10 + $0x198] sm:$0xff]
        %v547 = vld [vmem:[#allocation10 + $0x1a0] sm:$0xff]
        %v548 = vld [vmem:[#allocation10 + $0x1a8] sm:$0xff]
        %v549 = vld [vmem:[#allocation10 + $0x1b0] sm:$0xff]
        %v550 = vld [vmem:[#allocation10 + $0x1b8] sm:$0xff]
        %v551 = vld [vmem:[#allocation10 + $0x1c0] sm:$0xff]
        %v552 = vld [vmem:[#allocation10 + $0x1c8] sm:$0xff]
        %v553 = vld [vmem:[#allocation10 + $0x1d0] sm:$0xff]
        %v554 = vld [vmem:[#allocation10 + $0x1d8] sm:$0xff]
        %v555 = vld [vmem:[#allocation10 + $0x1e0] sm:$0xff]
        %v556 = vld [vmem:[#allocation10 + $0x1e8] sm:$0xff]
        %v557 = vld [vmem:[#allocation10 + $0x1f0] sm:$0xff]
        %v558 = vld [vmem:[#allocation10 + $0x1f8] sm:$0xff]
        %v559 = vpack.c.bf16 %v499, %v495
        %v560 = vpack.c.bf16 %v500, %v496
        %v561 = vpack.c.bf16 %v501, %v497
        %v562 = vpack.c.bf16 %v502, %v498
        %v563 = vpack.c.bf16 %v507, %v503
        %v564 = vpack.c.bf16 %v508, %v504
        %v565 = vpack.c.bf16 %v509, %v505
        %v566 = vpack.c.bf16 %v510, %v506
        %v567 = vpack.c.bf16 %v515, %v511
        %v568 = vpack.c.bf16 %v516, %v512
        %v569 = vpack.c.bf16 %v517, %v513
        %v570 = vpack.c.bf16 %v518, %v514
        %v571 = vpack.c.bf16 %v523, %v519
        %v572 = vpack.c.bf16 %v524, %v520
        %v573 = vpack.c.bf16 %v525, %v521
        %v574 = vpack.c.bf16 %v526, %v522
        %v575 = vpack.c.bf16 %v531, %v527
        %v576 = vpack.c.bf16 %v532, %v528
        %v577 = vpack.c.bf16 %v533, %v529
        %v578 = vpack.c.bf16 %v534, %v530
        %v579 = vpack.c.bf16 %v539, %v535
        %v580 = vpack.c.bf16 %v540, %v536
        %v581 = vpack.c.bf16 %v541, %v537
        %v582 = vpack.c.bf16 %v542, %v538
        %v583 = vpack.c.bf16 %v547, %v543
        %v584 = vpack.c.bf16 %v548, %v544
        %v585 = vpack.c.bf16 %v549, %v545
        %v586 = vpack.c.bf16 %v550, %v546
        %v587 = vpack.c.bf16 %v555, %v551
        %v588 = vpack.c.bf16 %v556, %v552
        %v589 = vpack.c.bf16 %v557, %v553
        %v590 = vpack.c.bf16 %v558, %v554
        %v591 = vld [vmem:[#allocation8] sm:$0xff]
        %v592 = vld [vmem:[#allocation8 + $0x8] sm:$0xff]
        %v593 = vld [vmem:[#allocation8 + $0x10] sm:$0xff]
        %v594 = vld [vmem:[#allocation8 + $0x18] sm:$0xff]
        %v595 = vld [vmem:[#allocation8 + $0x20] sm:$0xff]
        %v596 = vld [vmem:[#allocation8 + $0x28] sm:$0xff]
        %v597 = vld [vmem:[#allocation8 + $0x30] sm:$0xff]
        %v598 = vld [vmem:[#allocation8 + $0x38] sm:$0xff]
        %v599 = vld [vmem:[#allocation8 + $0x40] sm:$0xff]
        %v600 = vld [vmem:[#allocation8 + $0x48] sm:$0xff]
        %v601 = vld [vmem:[#allocation8 + $0x50] sm:$0xff]
        %v602 = vld [vmem:[#allocation8 + $0x58] sm:$0xff]
        %v603 = vld [vmem:[#allocation8 + $0x60] sm:$0xff]
        %v604 = vld [vmem:[#allocation8 + $0x68] sm:$0xff]
        %v605 = vld [vmem:[#allocation8 + $0x70] sm:$0xff]
        %v606 = vld [vmem:[#allocation8 + $0x78] sm:$0xff]
        %v607 = vld [vmem:[#allocation8 + $0x80] sm:$0xff]
        %v608 = vld [vmem:[#allocation8 + $0x88] sm:$0xff]
        %v609 = vld [vmem:[#allocation8 + $0x90] sm:$0xff]
        %v610 = vld [vmem:[#allocation8 + $0x98] sm:$0xff]
        %v611 = vld [vmem:[#allocation8 + $0xa0] sm:$0xff]
        %v612 = vld [vmem:[#allocation8 + $0xa8] sm:$0xff]
        %v613 = vld [vmem:[#allocation8 + $0xb0] sm:$0xff]
        %v614 = vld [vmem:[#allocation8 + $0xb8] sm:$0xff]
        %v615 = vld [vmem:[#allocation8 + $0xc0] sm:$0xff]
        %v616 = vld [vmem:[#allocation8 + $0xc8] sm:$0xff]
        %v617 = vld [vmem:[#allocation8 + $0xd0] sm:$0xff]
        %v618 = vld [vmem:[#allocation8 + $0xd8] sm:$0xff]
        %v619 = vld [vmem:[#allocation8 + $0xe0] sm:$0xff]
        %v620 = vld [vmem:[#allocation8 + $0xe8] sm:$0xff]
        %v621 = vld [vmem:[#allocation8 + $0xf0] sm:$0xff]
        %v622 = vld [vmem:[#allocation8 + $0xf8] sm:$0xff]
        %v623 = vld [vmem:[#allocation8 + $0x100] sm:$0xff]
        %v624 = vld [vmem:[#allocation8 + $0x108] sm:$0xff]
        %v625 = vld [vmem:[#allocation8 + $0x110] sm:$0xff]
        %v626 = vld [vmem:[#allocation8 + $0x118] sm:$0xff]
        %v627 = vld [vmem:[#allocation8 + $0x120] sm:$0xff]
        %v628 = vld [vmem:[#allocation8 + $0x128] sm:$0xff]
        %v629 = vld [vmem:[#allocation8 + $0x130] sm:$0xff]
        %v630 = vld [vmem:[#allocation8 + $0x138] sm:$0xff]
        %v631 = vld [vmem:[#allocation8 + $0x140] sm:$0xff]
        %v632 = vld [vmem:[#allocation8 + $0x148] sm:$0xff]
        %v633 = vld [vmem:[#allocation8 + $0x150] sm:$0xff]
        %v634 = vld [vmem:[#allocation8 + $0x158] sm:$0xff]
        %v635 = vld [vmem:[#allocation8 + $0x160] sm:$0xff]
        %v636 = vld [vmem:[#allocation8 + $0x168] sm:$0xff]
        %v637 = vld [vmem:[#allocation8 + $0x170] sm:$0xff]
        %v638 = vld [vmem:[#allocation8 + $0x178] sm:$0xff]
        %v639 = vld [vmem:[#allocation8 + $0x180] sm:$0xff]
        %v640 = vld [vmem:[#allocation8 + $0x188] sm:$0xff]
        %v641 = vld [vmem:[#allocation8 + $0x190] sm:$0xff]
        %v642 = vld [vmem:[#allocation8 + $0x198] sm:$0xff]
        %v643 = vld [vmem:[#allocation8 + $0x1a0] sm:$0xff]
        %v644 = vld [vmem:[#allocation8 + $0x1a8] sm:$0xff]
        %v645 = vld [vmem:[#allocation8 + $0x1b0] sm:$0xff]
        %v646 = vld [vmem:[#allocation8 + $0x1b8] sm:$0xff]
        %v647 = vld [vmem:[#allocation8 + $0x1c0] sm:$0xff]
        %v648 = vld [vmem:[#allocation8 + $0x1c8] sm:$0xff]
        %v649 = vld [vmem:[#allocation8 + $0x1d0] sm:$0xff]
        %v650 = vld [vmem:[#allocation8 + $0x1d8] sm:$0xff]
        %v651 = vld [vmem:[#allocation8 + $0x1e0] sm:$0xff]
        %v652 = vld [vmem:[#allocation8 + $0x1e8] sm:$0xff]
        %v653 = vld [vmem:[#allocation8 + $0x1f0] sm:$0xff]
        %v654 = vld [vmem:[#allocation8 + $0x1f8] sm:$0xff]
        %v655 = vpack.c.bf16 %v595, %v591
        %v656 = vpack.c.bf16 %v596, %v592
        %v657 = vpack.c.bf16 %v597, %v593
        %v658 = vpack.c.bf16 %v598, %v594
        %v659 = vpack.c.bf16 %v603, %v599
        %v660 = vpack.c.bf16 %v604, %v600
        %v661 = vpack.c.bf16 %v605, %v601
        %v662 = vpack.c.bf16 %v606, %v602
        %v663 = vpack.c.bf16 %v611, %v607
        %v664 = vpack.c.bf16 %v612, %v608
        %v665 = vpack.c.bf16 %v613, %v609
        %v666 = vpack.c.bf16 %v614, %v610
        %v667 = vpack.c.bf16 %v619, %v615
        %v668 = vpack.c.bf16 %v620, %v616
        %v669 = vpack.c.bf16 %v621, %v617
        %v670 = vpack.c.bf16 %v622, %v618
        %v671 = vpack.c.bf16 %v627, %v623
        %v672 = vpack.c.bf16 %v628, %v624
        %v673 = vpack.c.bf16 %v629, %v625
        %v674 = vpack.c.bf16 %v630, %v626
        %v675 = vpack.c.bf16 %v635, %v631
        %v676 = vpack.c.bf16 %v636, %v632
        %v677 = vpack.c.bf16 %v637, %v633
        %v678 = vpack.c.bf16 %v638, %v634
        %v679 = vpack.c.bf16 %v643, %v639
        %v680 = vpack.c.bf16 %v644, %v640
        %v681 = vpack.c.bf16 %v645, %v641
        %v682 = vpack.c.bf16 %v646, %v642
        %v683 = vpack.c.bf16 %v651, %v647
        %v684 = vpack.c.bf16 %v652, %v648
        %v685 = vpack.c.bf16 %v653, %v649
        %v686 = vpack.c.bf16 %v654, %v650
        %v687 = vld [vmem:[%s5] sm:$0xf]
        %v689 = vperm.slane %v687, 0
        %v690 = vperm.slane %v687, 1
        %v691 = vperm.slane %v687, 2
        %v692 = vperm.slane %v687, 3
        %697 = vmatpush.bf16.msra.mxu0 %v587
        %698 = vmatpush.bf16.msra.mxu0 %v583
        %699 = vmatpush.bf16.msra.mxu0 %v579
        %700 = vmatpush.bf16.msra.mxu0 %v575
        %701 = vmatpush.bf16.msra.mxu0 %v571
        %702 = vmatpush.bf16.msra.mxu0 %v567
        %703 = vmatpush.bf16.msra.mxu0 %v563
        %704 = vmatpush.bf16.msra.mxu0 %v559
        %705 = vmatmul.bf16.gmra.mxu0 %v479
        %v706 = vpop.f32.mrf.mxu0
        %v707 = vadd.f32 %v689, %v706
        %v708 = vpop.f32.mrf.mxu0
        %v709 = vadd.f32 %v689, %v708
        %710 = vmatmul.bf16.gmra.mxu0 %v480
        %v711 = vpop.f32.mrf.mxu0
        %v712 = vadd.f32 %v689, %v711
        %v713 = vpop.f32.mrf.mxu0
        %v714 = vadd.f32 %v689, %v713
        %715 = vmatmul.bf16.gmra.mxu0 %v481
        %v716 = vpop.f32.mrf.mxu0
        %v717 = vadd.f32 %v689, %v716
        %v718 = vpop.f32.mrf.mxu0
        %v719 = vadd.f32 %v689, %v718
        %720 = vmatmul.bf16.gmra.mxu0 %v482
        %v721 = vpop.f32.mrf.mxu0
        %v722 = vadd.f32 %v689, %v721
        %v723 = vpop.f32.mrf.mxu0
        %v724 = vadd.f32 %v689, %v723
        %725 = vdwg.mxu0
        %726 = vmatpush.bf16.msra.mxu0 %v588
        %727 = vmatpush.bf16.msra.mxu0 %v584
        %728 = vmatpush.bf16.msra.mxu0 %v580
        %729 = vmatpush.bf16.msra.mxu0 %v576
        %730 = vmatpush.bf16.msra.mxu0 %v572
        %731 = vmatpush.bf16.msra.mxu0 %v568
        %732 = vmatpush.bf16.msra.mxu0 %v564
        %733 = vmatpush.bf16.msra.mxu0 %v560
        %734 = vmatmul.bf16.gmra.mxu0 %v479
        %v735 = vpop.f32.mrf.mxu0
        %v736 = vadd.f32 %v690, %v735
        %v737 = vpop.f32.mrf.mxu0
        %v738 = vadd.f32 %v690, %v737
        %739 = vmatmul.bf16.gmra.mxu0 %v480
        %v740 = vpop.f32.mrf.mxu0
        %v741 = vadd.f32 %v690, %v740
        %v742 = vpop.f32.mrf.mxu0
        %v743 = vadd.f32 %v690, %v742
        %744 = vmatmul.bf16.gmra.mxu0 %v481
        %v745 = vpop.f32.mrf.mxu0
        %v746 = vadd.f32 %v690, %v745
        %v747 = vpop.f32.mrf.mxu0
        %v748 = vadd.f32 %v690, %v747
        %749 = vmatmul.bf16.gmra.mxu0 %v482
        %v750 = vpop.f32.mrf.mxu0
        %v751 = vadd.f32 %v690, %v750
        %v752 = vpop.f32.mrf.mxu0
        %v753 = vadd.f32 %v690, %v752
        %754 = vdwg.mxu0
        %755 = vmatpush.bf16.msra.mxu0 %v589
        %756 = vmatpush.bf16.msra.mxu0 %v585
        %757 = vmatpush.bf16.msra.mxu0 %v581
        %758 = vmatpush.bf16.msra.mxu0 %v577
        %759 = vmatpush.bf16.msra.mxu0 %v573
        %760 = vmatpush.bf16.msra.mxu0 %v569
        %761 = vmatpush.bf16.msra.mxu0 %v565
        %762 = vmatpush.bf16.msra.mxu0 %v561
        %763 = vmatmul.bf16.gmra.mxu0 %v479
        %v764 = vpop.f32.mrf.mxu0
        %v765 = vadd.f32 %v691, %v764
        %v766 = vpop.f32.mrf.mxu0
        %v767 = vadd.f32 %v691, %v766
        %768 = vmatmul.bf16.gmra.mxu0 %v480
        %v769 = vpop.f32.mrf.mxu0
        %v770 = vadd.f32 %v691, %v769
        %v771 = vpop.f32.mrf.mxu0
        %v772 = vadd.f32 %v691, %v771
        %773 = vmatmul.bf16.gmra.mxu0 %v481
        %v774 = vpop.f32.mrf.mxu0
        %v775 = vadd.f32 %v691, %v774
        %v776 = vpop.f32.mrf.mxu0
        %v777 = vadd.f32 %v691, %v776
        %778 = vmatmul.bf16.gmra.mxu0 %v482
        %v779 = vpop.f32.mrf.mxu0
        %v780 = vadd.f32 %v691, %v779
        %v781 = vpop.f32.mrf.mxu0
        %v782 = vadd.f32 %v691, %v781
        %783 = vdwg.mxu0
        %784 = vmatpush.bf16.msra.mxu0 %v590
        %785 = vmatpush.bf16.msra.mxu0 %v586
        %786 = vmatpush.bf16.msra.mxu0 %v582
        %787 = vmatpush.bf16.msra.mxu0 %v578
        %788 = vmatpush.bf16.msra.mxu0 %v574
        %789 = vmatpush.bf16.msra.mxu0 %v570
        %790 = vmatpush.bf16.msra.mxu0 %v566
        %791 = vmatpush.bf16.msra.mxu0 %v562
        %792 = vmatmul.bf16.gmra.mxu0 %v479
        %v793 = vpop.f32.mrf.mxu0
        %v794 = vadd.f32 %v692, %v793
        %v795 = vpop.f32.mrf.mxu0
        %v796 = vadd.f32 %v692, %v795
        %797 = vmatmul.bf16.gmra.mxu0 %v480
        %v798 = vpop.f32.mrf.mxu0
        %v799 = vadd.f32 %v692, %v798
        %v800 = vpop.f32.mrf.mxu0
        %v801 = vadd.f32 %v692, %v800
        %802 = vmatmul.bf16.gmra.mxu0 %v481
        %v803 = vpop.f32.mrf.mxu0
        %v804 = vadd.f32 %v692, %v803
        %v805 = vpop.f32.mrf.mxu0
        %v806 = vadd.f32 %v692, %v805
        %807 = vmatmul.bf16.gmra.mxu0 %v482
        %v808 = vpop.f32.mrf.mxu0
        %v809 = vadd.f32 %v692, %v808
        %v810 = vpop.f32.mrf.mxu0
        %v811 = vadd.f32 %v692, %v810
        %812 = vdwg.mxu0
        %v813 = vld [vmem:[#allocation11] sm:$0xf]
        %v815 = vperm.slane %v813, 0
        %v816 = vperm.slane %v813, 1
        %v817 = vperm.slane %v813, 2
        %v818 = vperm.slane %v813, 3
        %823 = vmatpush.bf16.msra.mxu0 %v683
        %824 = vmatpush.bf16.msra.mxu0 %v679
        %825 = vmatpush.bf16.msra.mxu0 %v675
        %826 = vmatpush.bf16.msra.mxu0 %v671
        %827 = vmatpush.bf16.msra.mxu0 %v667
        %828 = vmatpush.bf16.msra.mxu0 %v663
        %829 = vmatpush.bf16.msra.mxu0 %v659
        %830 = vmatpush.bf16.msra.mxu0 %v655
        %831 = vmatmul.bf16.gmra.mxu0 %v491
        %v832 = vpop.f32.mrf.mxu0
        %v833 = vadd.f32 %v815, %v832
        %v834 = vpop.f32.mrf.mxu0
        %v835 = vadd.f32 %v815, %v834
        %836 = vmatmul.bf16.gmra.mxu0 %v492
        %v837 = vpop.f32.mrf.mxu0
        %v838 = vadd.f32 %v815, %v837
        %v839 = vpop.f32.mrf.mxu0
        %v840 = vadd.f32 %v815, %v839
        %841 = vmatmul.bf16.gmra.mxu0 %v493
        %v842 = vpop.f32.mrf.mxu0
        %v843 = vadd.f32 %v815, %v842
        %v844 = vpop.f32.mrf.mxu0
        %v845 = vadd.f32 %v815, %v844
        %846 = vmatmul.bf16.gmra.mxu0 %v494
        %v847 = vpop.f32.mrf.mxu0
        %v848 = vadd.f32 %v815, %v847
        %v849 = vpop.f32.mrf.mxu0
        %v850 = vadd.f32 %v815, %v849
        %851 = vdwg.mxu0
        %852 = vmatpush.bf16.msra.mxu0 %v684
        %853 = vmatpush.bf16.msra.mxu0 %v680
        %854 = vmatpush.bf16.msra.mxu0 %v676
        %855 = vmatpush.bf16.msra.mxu0 %v672
        %856 = vmatpush.bf16.msra.mxu0 %v668
        %857 = vmatpush.bf16.msra.mxu0 %v664
        %858 = vmatpush.bf16.msra.mxu0 %v660
        %859 = vmatpush.bf16.msra.mxu0 %v656
        %860 = vmatmul.bf16.gmra.mxu0 %v491
        %v861 = vpop.f32.mrf.mxu0
        %v862 = vadd.f32 %v816, %v861
        %v863 = vpop.f32.mrf.mxu0
        %v864 = vadd.f32 %v816, %v863
        %865 = vmatmul.bf16.gmra.mxu0 %v492
        %v866 = vpop.f32.mrf.mxu0
        %v867 = vadd.f32 %v816, %v866
        %v868 = vpop.f32.mrf.mxu0
        %v869 = vadd.f32 %v816, %v868
        %870 = vmatmul.bf16.gmra.mxu0 %v493
        %v871 = vpop.f32.mrf.mxu0
        %v872 = vadd.f32 %v816, %v871
        %v873 = vpop.f32.mrf.mxu0
        %v874 = vadd.f32 %v816, %v873
        %875 = vmatmul.bf16.gmra.mxu0 %v494
        %v876 = vpop.f32.mrf.mxu0
        %v877 = vadd.f32 %v816, %v876
        %v878 = vpop.f32.mrf.mxu0
        %v879 = vadd.f32 %v816, %v878
        %880 = vdwg.mxu0
        %881 = vmatpush.bf16.msra.mxu0 %v685
        %882 = vmatpush.bf16.msra.mxu0 %v681
        %883 = vmatpush.bf16.msra.mxu0 %v677
        %884 = vmatpush.bf16.msra.mxu0 %v673
        %885 = vmatpush.bf16.msra.mxu0 %v669
        %886 = vmatpush.bf16.msra.mxu0 %v665
        %887 = vmatpush.bf16.msra.mxu0 %v661
        %888 = vmatpush.bf16.msra.mxu0 %v657
        %889 = vmatmul.bf16.gmra.mxu0 %v491
        %v890 = vpop.f32.mrf.mxu0
        %v891 = vadd.f32 %v817, %v890
        %v892 = vpop.f32.mrf.mxu0
        %v893 = vadd.f32 %v817, %v892
        %894 = vmatmul.bf16.gmra.mxu0 %v492
        %v895 = vpop.f32.mrf.mxu0
        %v896 = vadd.f32 %v817, %v895
        %v897 = vpop.f32.mrf.mxu0
        %v898 = vadd.f32 %v817, %v897
        %899 = vmatmul.bf16.gmra.mxu0 %v493
        %v900 = vpop.f32.mrf.mxu0
        %v901 = vadd.f32 %v817, %v900
        %v902 = vpop.f32.mrf.mxu0
        %v903 = vadd.f32 %v817, %v902
        %904 = vmatmul.bf16.gmra.mxu0 %v494
        %v905 = vpop.f32.mrf.mxu0
        %v906 = vadd.f32 %v817, %v905
        %v907 = vpop.f32.mrf.mxu0
        %v908 = vadd.f32 %v817, %v907
        %909 = vdwg.mxu0
        %910 = vmatpush.bf16.msra.mxu0 %v686
        %911 = vmatpush.bf16.msra.mxu0 %v682
        %912 = vmatpush.bf16.msra.mxu0 %v678
        %913 = vmatpush.bf16.msra.mxu0 %v674
        %914 = vmatpush.bf16.msra.mxu0 %v670
        %915 = vmatpush.bf16.msra.mxu0 %v666
        %916 = vmatpush.bf16.msra.mxu0 %v662
        %917 = vmatpush.bf16.msra.mxu0 %v658
        %918 = vmatmul.bf16.gmra.mxu0 %v491
        %v919 = vpop.f32.mrf.mxu0
        %v920 = vadd.f32 %v818, %v919
        %v921 = vpop.f32.mrf.mxu0
        %v922 = vadd.f32 %v818, %v921
        %923 = vmatmul.bf16.gmra.mxu0 %v492
        %v924 = vpop.f32.mrf.mxu0
        %v925 = vadd.f32 %v818, %v924
        %v926 = vpop.f32.mrf.mxu0
        %v927 = vadd.f32 %v818, %v926
        %928 = vmatmul.bf16.gmra.mxu0 %v493
        %v929 = vpop.f32.mrf.mxu0
        %v930 = vadd.f32 %v818, %v929
        %v931 = vpop.f32.mrf.mxu0
        %v932 = vadd.f32 %v818, %v931
        %933 = vmatmul.bf16.gmra.mxu0 %v494
        %v934 = vpop.f32.mrf.mxu0
        %v935 = vadd.f32 %v818, %v934
        %v936 = vpop.f32.mrf.mxu0
        %v937 = vadd.f32 %v818, %v936
        %938 = vdwg.mxu0
        %v939 = vadd.f32 %v707, %v736
        %v940 = vadd.f32 %v939, %v765
        %v941 = vadd.f32 %v940, %v794
        %942 = vadd.xlane.f32.xlu0 %v941
        %v943 = vpop.xlane.xlu0 %942
        %v944 = vadd.f32 %v709, %v738
        %v945 = vadd.f32 %v944, %v767
        %v946 = vadd.f32 %v945, %v796
        %947 = vadd.xlane.f32.xlu0 %v946
        %v948 = vpop.xlane.xlu0 %947
        %v949 = vadd.f32 %v712, %v741
        %v950 = vadd.f32 %v949, %v770
        %v951 = vadd.f32 %v950, %v799
        %952 = vadd.xlane.f32.xlu0 %v951
        %v953 = vpop.xlane.xlu0 %952
        %v954 = vadd.f32 %v714, %v743
        %v955 = vadd.f32 %v954, %v772
        %v956 = vadd.f32 %v955, %v801
        %957 = vadd.xlane.f32.xlu0 %v956
        %v958 = vpop.xlane.xlu0 %957
        %v959 = vadd.f32 %v717, %v746
        %v960 = vadd.f32 %v959, %v775
        %v961 = vadd.f32 %v960, %v804
        %962 = vadd.xlane.f32.xlu0 %v961
        %v963 = vpop.xlane.xlu0 %962
        %v964 = vadd.f32 %v719, %v748
        %v965 = vadd.f32 %v964, %v777
        %v966 = vadd.f32 %v965, %v806
        %967 = vadd.xlane.f32.xlu0 %v966
        %v968 = vpop.xlane.xlu0 %967
        %v969 = vadd.f32 %v722, %v751
        %v970 = vadd.f32 %v969, %v780
        %v971 = vadd.f32 %v970, %v809
        %972 = vadd.xlane.f32.xlu0 %v971
        %v973 = vpop.xlane.xlu0 %972
        %v974 = vadd.f32 %v724, %v753
        %v975 = vadd.f32 %v974, %v782
        %v976 = vadd.f32 %v975, %v811
        %977 = vadd.xlane.f32.xlu0 %v976
        %v978 = vpop.xlane.xlu0 %977
        %v979 = vrcp.pop 512.0
        %v980 = vmul.f32 512.0, %v979
        %v981 = vsub.f32 1.0, %v980
        %v982 = vmul.f32 %v979, %v981
        %v983 = vadd.f32 %v979, %v982
        %vm984 = vweird.f32 %v979
        %v985 = vsel %vm984, %v979, %v983
        %v986 = vmul.f32 %v943, %v985
        %v987 = vmul.f32 %v948, %v985
        %v988 = vmul.f32 %v953, %v985
        %v989 = vmul.f32 %v958, %v985
        %v990 = vmul.f32 %v963, %v985
        %v991 = vmul.f32 %v968, %v985
        %v992 = vmul.f32 %v973, %v985
        %v993 = vmul.f32 %v978, %v985
        %v994 = vsub.f32 %v707, %v986
        %v995 = vsub.f32 %v736, %v986
        %v996 = vsub.f32 %v765, %v986
        %v997 = vsub.f32 %v794, %v986
        %v998 = vsub.f32 %v709, %v987
        %v999 = vsub.f32 %v738, %v987
        %v1000 = vsub.f32 %v767, %v987
        %v1001 = vsub.f32 %v796, %v987
        %v1002 = vsub.f32 %v712, %v988
        %v1003 = vsub.f32 %v741, %v988
        %v1004 = vsub.f32 %v770, %v988
        %v1005 = vsub.f32 %v799, %v988
        %v1006 = vsub.f32 %v714, %v989
        %v1007 = vsub.f32 %v743, %v989
        %v1008 = vsub.f32 %v772, %v989
        %v1009 = vsub.f32 %v801, %v989
        %v1010 = vsub.f32 %v717, %v990
        %v1011 = vsub.f32 %v746, %v990
        %v1012 = vsub.f32 %v775, %v990
        %v1013 = vsub.f32 %v804, %v990
        %v1014 = vsub.f32 %v719, %v991
        %v1015 = vsub.f32 %v748, %v991
        %v1016 = vsub.f32 %v777, %v991
        %v1017 = vsub.f32 %v806, %v991
        %v1018 = vsub.f32 %v722, %v992
        %v1019 = vsub.f32 %v751, %v992
        %v1020 = vsub.f32 %v780, %v992
        %v1021 = vsub.f32 %v809, %v992
        %v1022 = vsub.f32 %v724, %v993
        %v1023 = vsub.f32 %v753, %v993
        %v1024 = vsub.f32 %v782, %v993
        %v1025 = vsub.f32 %v811, %v993
        %v1026 = vmul.f32 %v994, %v994
        %v1027 = vmul.f32 %v995, %v995
        %v1028 = vmul.f32 %v996, %v996
        %v1029 = vmul.f32 %v997, %v997
        %v1030 = vmul.f32 %v998, %v998
        %v1031 = vmul.f32 %v999, %v999
        %v1032 = vmul.f32 %v1000, %v1000
        %v1033 = vmul.f32 %v1001, %v1001
        %v1034 = vmul.f32 %v1002, %v1002
        %v1035 = vmul.f32 %v1003, %v1003
        %v1036 = vmul.f32 %v1004, %v1004
        %v1037 = vmul.f32 %v1005, %v1005
        %v1038 = vmul.f32 %v1006, %v1006
        %v1039 = vmul.f32 %v1007, %v1007
        %v1040 = vmul.f32 %v1008, %v1008
        %v1041 = vmul.f32 %v1009, %v1009
        %v1042 = vmul.f32 %v1010, %v1010
        %v1043 = vmul.f32 %v1011, %v1011
        %v1044 = vmul.f32 %v1012, %v1012
        %v1045 = vmul.f32 %v1013, %v1013
        %v1046 = vmul.f32 %v1014, %v1014
        %v1047 = vmul.f32 %v1015, %v1015
        %v1048 = vmul.f32 %v1016, %v1016
        %v1049 = vmul.f32 %v1017, %v1017
        %v1050 = vmul.f32 %v1018, %v1018
        %v1051 = vmul.f32 %v1019, %v1019
        %v1052 = vmul.f32 %v1020, %v1020
        %v1053 = vmul.f32 %v1021, %v1021
        %v1054 = vmul.f32 %v1022, %v1022
        %v1055 = vmul.f32 %v1023, %v1023
        %v1056 = vmul.f32 %v1024, %v1024
        %v1057 = vmul.f32 %v1025, %v1025
        %v1058 = vadd.f32 %v1026, %v1027
        %v1059 = vadd.f32 %v1058, %v1028
        %v1060 = vadd.f32 %v1059, %v1029
        %1061 = vadd.xlane.f32.xlu0 %v1060
        %v1062 = vpop.xlane.xlu0 %1061
        %v1063 = vadd.f32 %v1030, %v1031
        %v1064 = vadd.f32 %v1063, %v1032
        %v1065 = vadd.f32 %v1064, %v1033
        %1066 = vadd.xlane.f32.xlu0 %v1065
        %v1067 = vpop.xlane.xlu0 %1066
        %v1068 = vadd.f32 %v1034, %v1035
        %v1069 = vadd.f32 %v1068, %v1036
        %v1070 = vadd.f32 %v1069, %v1037
        %1071 = vadd.xlane.f32.xlu0 %v1070
        %v1072 = vpop.xlane.xlu0 %1071
        %v1073 = vadd.f32 %v1038, %v1039
        %v1074 = vadd.f32 %v1073, %v1040
        %v1075 = vadd.f32 %v1074, %v1041
        %1076 = vadd.xlane.f32.xlu0 %v1075
        %v1077 = vpop.xlane.xlu0 %1076
        %v1078 = vadd.f32 %v1042, %v1043
        %v1079 = vadd.f32 %v1078, %v1044
        %v1080 = vadd.f32 %v1079, %v1045
        %1081 = vadd.xlane.f32.xlu0 %v1080
        %v1082 = vpop.xlane.xlu0 %1081
        %v1083 = vadd.f32 %v1046, %v1047
        %v1084 = vadd.f32 %v1083, %v1048
        %v1085 = vadd.f32 %v1084, %v1049
        %1086 = vadd.xlane.f32.xlu0 %v1085
        %v1087 = vpop.xlane.xlu0 %1086
        %v1088 = vadd.f32 %v1050, %v1051
        %v1089 = vadd.f32 %v1088, %v1052
        %v1090 = vadd.f32 %v1089, %v1053
        %1091 = vadd.xlane.f32.xlu0 %v1090
        %v1092 = vpop.xlane.xlu0 %1091
        %v1093 = vadd.f32 %v1054, %v1055
        %v1094 = vadd.f32 %v1093, %v1056
        %v1095 = vadd.f32 %v1094, %v1057
        %1096 = vadd.xlane.f32.xlu0 %v1095
        %v1097 = vpop.xlane.xlu0 %1096
        %v1098 = vmul.f32 %v1062, %v985
        %v1099 = vmul.f32 %v1067, %v985
        %v1100 = vmul.f32 %v1072, %v985
        %v1101 = vmul.f32 %v1077, %v985
        %v1102 = vmul.f32 %v1082, %v985
        %v1103 = vmul.f32 %v1087, %v985
        %v1104 = vmul.f32 %v1092, %v985
        %v1105 = vmul.f32 %v1097, %v985
        %v1106 = vadd.f32 %v1098, 1e-05
        %v1107 = vadd.f32 %v1099, 1e-05
        %v1108 = vadd.f32 %v1100, 1e-05
        %v1109 = vadd.f32 %v1101, 1e-05
        %v1110 = vadd.f32 %v1102, 1e-05
        %v1111 = vadd.f32 %v1103, 1e-05
        %v1112 = vadd.f32 %v1104, 1e-05
        %v1113 = vadd.f32 %v1105, 1e-05
        %v1114 = vrsqrt.pop %v1106
        %v1115 = vmul.f32 %v1114, %v1106
        %v1116 = vmul.f32 %v1115, %v1114
        %v1117 = vmul.f32 0.5, %v1116
        %v1118 = vsub.f32 1.5, %v1117
        %v1119 = vmul.f32 %v1114, %v1118
        %vm1120 = vweird.f32 %v1106
        %vm1121 = vweird.f32 %v1114
        %vm1122 = vmor %vm1120, %vm1121
        %v1123 = vsel %vm1122, %v1114, %v1119
        %v1124 = vrsqrt.pop %v1107
        %v1125 = vmul.f32 %v1124, %v1107
        %v1126 = vmul.f32 %v1125, %v1124
        %v1127 = vmul.f32 0.5, %v1126
        %v1128 = vsub.f32 1.5, %v1127
        %v1129 = vmul.f32 %v1124, %v1128
        %vm1130 = vweird.f32 %v1107
        %vm1131 = vweird.f32 %v1124
        %vm1132 = vmor %vm1130, %vm1131
        %v1133 = vsel %vm1132, %v1124, %v1129
        %v1134 = vrsqrt.pop %v1108
        %v1135 = vmul.f32 %v1134, %v1108
        %v1136 = vmul.f32 %v1135, %v1134
        %v1137 = vmul.f32 0.5, %v1136
        %v1138 = vsub.f32 1.5, %v1137
        %v1139 = vmul.f32 %v1134, %v1138
        %vm1140 = vweird.f32 %v1108
        %vm1141 = vweird.f32 %v1134
        %vm1142 = vmor %vm1140, %vm1141
        %v1143 = vsel %vm1142, %v1134, %v1139
        %v1144 = vrsqrt.pop %v1109
        %v1145 = vmul.f32 %v1144, %v1109
        %v1146 = vmul.f32 %v1145, %v1144
        %v1147 = vmul.f32 0.5, %v1146
        %v1148 = vsub.f32 1.5, %v1147
        %v1149 = vmul.f32 %v1144, %v1148
        %vm1150 = vweird.f32 %v1109
        %vm1151 = vweird.f32 %v1144
        %vm1152 = vmor %vm1150, %vm1151
        %v1153 = vsel %vm1152, %v1144, %v1149
        %v1154 = vrsqrt.pop %v1110
        %v1155 = vmul.f32 %v1154, %v1110
        %v1156 = vmul.f32 %v1155, %v1154
        %v1157 = vmul.f32 0.5, %v1156
        %v1158 = vsub.f32 1.5, %v1157
        %v1159 = vmul.f32 %v1154, %v1158
        %vm1160 = vweird.f32 %v1110
        %vm1161 = vweird.f32 %v1154
        %vm1162 = vmor %vm1160, %vm1161
        %v1163 = vsel %vm1162, %v1154, %v1159
        %v1164 = vrsqrt.pop %v1111
        %v1165 = vmul.f32 %v1164, %v1111
        %v1166 = vmul.f32 %v1165, %v1164
        %v1167 = vmul.f32 0.5, %v1166
        %v1168 = vsub.f32 1.5, %v1167
        %v1169 = vmul.f32 %v1164, %v1168
        %vm1170 = vweird.f32 %v1111
        %vm1171 = vweird.f32 %v1164
        %vm1172 = vmor %vm1170, %vm1171
        %v1173 = vsel %vm1172, %v1164, %v1169
        %v1174 = vrsqrt.pop %v1112
        %v1175 = vmul.f32 %v1174, %v1112
        %v1176 = vmul.f32 %v1175, %v1174
        %v1177 = vmul.f32 0.5, %v1176
        %v1178 = vsub.f32 1.5, %v1177
        %v1179 = vmul.f32 %v1174, %v1178
        %vm1180 = vweird.f32 %v1112
        %vm1181 = vweird.f32 %v1174
        %vm1182 = vmor %vm1180, %vm1181
        %v1183 = vsel %vm1182, %v1174, %v1179
        %v1184 = vrsqrt.pop %v1113
        %v1185 = vmul.f32 %v1184, %v1113
        %v1186 = vmul.f32 %v1185, %v1184
        %v1187 = vmul.f32 0.5, %v1186
        %v1188 = vsub.f32 1.5, %v1187
        %v1189 = vmul.f32 %v1184, %v1188
        %vm1190 = vweird.f32 %v1113
        %vm1191 = vweird.f32 %v1184
        %vm1192 = vmor %vm1190, %vm1191
        %v1193 = vsel %vm1192, %v1184, %v1189
        %v1194 = vmul.f32 %v994, %v1123
        %v1195 = vmul.f32 %v995, %v1123
        %v1196 = vmul.f32 %v996, %v1123
        %v1197 = vmul.f32 %v997, %v1123
        %v1198 = vmul.f32 %v998, %v1133
        %v1199 = vmul.f32 %v999, %v1133
        %v1200 = vmul.f32 %v1000, %v1133
        %v1201 = vmul.f32 %v1001, %v1133
        %v1202 = vmul.f32 %v1002, %v1143
        %v1203 = vmul.f32 %v1003, %v1143
        %v1204 = vmul.f32 %v1004, %v1143
        %v1205 = vmul.f32 %v1005, %v1143
        %v1206 = vmul.f32 %v1006, %v1153
        %v1207 = vmul.f32 %v1007, %v1153
        %v1208 = vmul.f32 %v1008, %v1153
        %v1209 = vmul.f32 %v1009, %v1153
        %v1210 = vmul.f32 %v1010, %v1163
        %v1211 = vmul.f32 %v1011, %v1163
        %v1212 = vmul.f32 %v1012, %v1163
        %v1213 = vmul.f32 %v1013, %v1163
        %v1214 = vmul.f32 %v1014, %v1173
        %v1215 = vmul.f32 %v1015, %v1173
        %v1216 = vmul.f32 %v1016, %v1173
        %v1217 = vmul.f32 %v1017, %v1173
        %v1218 = vmul.f32 %v1018, %v1183
        %v1219 = vmul.f32 %v1019, %v1183
        %v1220 = vmul.f32 %v1020, %v1183
        %v1221 = vmul.f32 %v1021, %v1183
        %v1222 = vmul.f32 %v1022, %v1193
        %v1223 = vmul.f32 %v1023, %v1193
        %v1224 = vmul.f32 %v1024, %v1193
        %v1225 = vmul.f32 %v1025, %v1193
        %v1226 = vadd.f32 %v833, %v862
        %v1227 = vadd.f32 %v1226, %v891
        %v1228 = vadd.f32 %v1227, %v920
        %1229 = vadd.xlane.f32.xlu0 %v1228
        %v1230 = vpop.xlane.xlu0 %1229
        %v1231 = vadd.f32 %v835, %v864
        %v1232 = vadd.f32 %v1231, %v893
        %v1233 = vadd.f32 %v1232, %v922
        %1234 = vadd.xlane.f32.xlu0 %v1233
        %v1235 = vpop.xlane.xlu0 %1234
        %v1236 = vadd.f32 %v838, %v867
        %v1237 = vadd.f32 %v1236, %v896
        %v1238 = vadd.f32 %v1237, %v925
        %1239 = vadd.xlane.f32.xlu0 %v1238
        %v1240 = vpop.xlane.xlu0 %1239
        %v1241 = vadd.f32 %v840, %v869
        %v1242 = vadd.f32 %v1241, %v898
        %v1243 = vadd.f32 %v1242, %v927
        %1244 = vadd.xlane.f32.xlu0 %v1243
        %v1245 = vpop.xlane.xlu0 %1244
        %v1246 = vadd.f32 %v843, %v872
        %v1247 = vadd.f32 %v1246, %v901
        %v1248 = vadd.f32 %v1247, %v930
        %1249 = vadd.xlane.f32.xlu0 %v1248
        %v1250 = vpop.xlane.xlu0 %1249
        %v1251 = vadd.f32 %v845, %v874
        %v1252 = vadd.f32 %v1251, %v903
        %v1253 = vadd.f32 %v1252, %v932
        %1254 = vadd.xlane.f32.xlu0 %v1253
        %v1255 = vpop.xlane.xlu0 %1254
        %v1256 = vadd.f32 %v848, %v877
        %v1257 = vadd.f32 %v1256, %v906
        %v1258 = vadd.f32 %v1257, %v935
        %1259 = vadd.xlane.f32.xlu0 %v1258
        %v1260 = vpop.xlane.xlu0 %1259
        %v1261 = vadd.f32 %v850, %v879
        %v1262 = vadd.f32 %v1261, %v908
        %v1263 = vadd.f32 %v1262, %v937
        %1264 = vadd.xlane.f32.xlu0 %v1263
        %v1265 = vpop.xlane.xlu0 %1264
        %v1266 = vmul.f32 %v1230, %v985
        %v1267 = vmul.f32 %v1235, %v985
        %v1268 = vmul.f32 %v1240, %v985
        %v1269 = vmul.f32 %v1245, %v985
        %v1270 = vmul.f32 %v1250, %v985
        %v1271 = vmul.f32 %v1255, %v985
        %v1272 = vmul.f32 %v1260, %v985
        %v1273 = vmul.f32 %v1265, %v985
        %v1274 = vsub.f32 %v833, %v1266
        %v1275 = vsub.f32 %v862, %v1266
        %v1276 = vsub.f32 %v891, %v1266
        %v1277 = vsub.f32 %v920, %v1266
        %v1278 = vsub.f32 %v835, %v1267
        %v1279 = vsub.f32 %v864, %v1267
        %v1280 = vsub.f32 %v893, %v1267
        %v1281 = vsub.f32 %v922, %v1267
        %v1282 = vsub.f32 %v838, %v1268
        %v1283 = vsub.f32 %v867, %v1268
        %v1284 = vsub.f32 %v896, %v1268
        %v1285 = vsub.f32 %v925, %v1268
        %v1286 = vsub.f32 %v840, %v1269
        %v1287 = vsub.f32 %v869, %v1269
        %v1288 = vsub.f32 %v898, %v1269
        %v1289 = vsub.f32 %v927, %v1269
        %v1290 = vsub.f32 %v843, %v1270
        %v1291 = vsub.f32 %v872, %v1270
        %v1292 = vsub.f32 %v901, %v1270
        %v1293 = vsub.f32 %v930, %v1270
        %v1294 = vsub.f32 %v845, %v1271
        %v1295 = vsub.f32 %v874, %v1271
        %v1296 = vsub.f32 %v903, %v1271
        %v1297 = vsub.f32 %v932, %v1271
        %v1298 = vsub.f32 %v848, %v1272
        %v1299 = vsub.f32 %v877, %v1272
        %v1300 = vsub.f32 %v906, %v1272
        %v1301 = vsub.f32 %v935, %v1272
        %v1302 = vsub.f32 %v850, %v1273
        %v1303 = vsub.f32 %v879, %v1273
        %v1304 = vsub.f32 %v908, %v1273
        %v1305 = vsub.f32 %v937, %v1273
        %v1306 = vmul.f32 %v1274, %v1274
        %v1307 = vmul.f32 %v1275, %v1275
        %v1308 = vmul.f32 %v1276, %v1276
        %v1309 = vmul.f32 %v1277, %v1277
        %v1310 = vmul.f32 %v1278, %v1278
        %v1311 = vmul.f32 %v1279, %v1279
        %v1312 = vmul.f32 %v1280, %v1280
        %v1313 = vmul.f32 %v1281, %v1281
        %v1314 = vmul.f32 %v1282, %v1282
        %v1315 = vmul.f32 %v1283, %v1283
        %v1316 = vmul.f32 %v1284, %v1284
        %v1317 = vmul.f32 %v1285, %v1285
        %v1318 = vmul.f32 %v1286, %v1286
        %v1319 = vmul.f32 %v1287, %v1287
        %v1320 = vmul.f32 %v1288, %v1288
        %v1321 = vmul.f32 %v1289, %v1289
        %v1322 = vmul.f32 %v1290, %v1290
        %v1323 = vmul.f32 %v1291, %v1291
        %v1324 = vmul.f32 %v1292, %v1292
        %v1325 = vmul.f32 %v1293, %v1293
        %v1326 = vmul.f32 %v1294, %v1294
        %v1327 = vmul.f32 %v1295, %v1295
        %v1328 = vmul.f32 %v1296, %v1296
        %v1329 = vmul.f32 %v1297, %v1297
        %v1330 = vmul.f32 %v1298, %v1298
        %v1331 = vmul.f32 %v1299, %v1299
        %v1332 = vmul.f32 %v1300, %v1300
        %v1333 = vmul.f32 %v1301, %v1301
        %v1334 = vmul.f32 %v1302, %v1302
        %v1335 = vmul.f32 %v1303, %v1303
        %v1336 = vmul.f32 %v1304, %v1304
        %v1337 = vmul.f32 %v1305, %v1305
        %v1338 = vadd.f32 %v1306, %v1307
        %v1339 = vadd.f32 %v1338, %v1308
        %v1340 = vadd.f32 %v1339, %v1309
        %1341 = vadd.xlane.f32.xlu0 %v1340
        %v1342 = vpop.xlane.xlu0 %1341
        %v1343 = vadd.f32 %v1310, %v1311
        %v1344 = vadd.f32 %v1343, %v1312
        %v1345 = vadd.f32 %v1344, %v1313
        %1346 = vadd.xlane.f32.xlu0 %v1345
        %v1347 = vpop.xlane.xlu0 %1346
        %v1348 = vadd.f32 %v1314, %v1315
        %v1349 = vadd.f32 %v1348, %v1316
        %v1350 = vadd.f32 %v1349, %v1317
        %1351 = vadd.xlane.f32.xlu0 %v1350
        %v1352 = vpop.xlane.xlu0 %1351
        %v1353 = vadd.f32 %v1318, %v1319
        %v1354 = vadd.f32 %v1353, %v1320
        %v1355 = vadd.f32 %v1354, %v1321
        %1356 = vadd.xlane.f32.xlu0 %v1355
        %v1357 = vpop.xlane.xlu0 %1356
        %v1358 = vadd.f32 %v1322, %v1323
        %v1359 = vadd.f32 %v1358, %v1324
        %v1360 = vadd.f32 %v1359, %v1325
        %1361 = vadd.xlane.f32.xlu0 %v1360
        %v1362 = vpop.xlane.xlu0 %1361
        %v1363 = vadd.f32 %v1326, %v1327
        %v1364 = vadd.f32 %v1363, %v1328
        %v1365 = vadd.f32 %v1364, %v1329
        %1366 = vadd.xlane.f32.xlu0 %v1365
        %v1367 = vpop.xlane.xlu0 %1366
        %v1368 = vadd.f32 %v1330, %v1331
        %v1369 = vadd.f32 %v1368, %v1332
        %v1370 = vadd.f32 %v1369, %v1333
        %1371 = vadd.xlane.f32.xlu0 %v1370
        %v1372 = vpop.xlane.xlu0 %1371
        %v1373 = vadd.f32 %v1334, %v1335
        %v1374 = vadd.f32 %v1373, %v1336
        %v1375 = vadd.f32 %v1374, %v1337
        %1376 = vadd.xlane.f32.xlu0 %v1375
        %v1377 = vpop.xlane.xlu0 %1376
        %v1378 = vmul.f32 %v1342, %v985
        %v1379 = vmul.f32 %v1347, %v985
        %v1380 = vmul.f32 %v1352, %v985
        %v1381 = vmul.f32 %v1357, %v985
        %v1382 = vmul.f32 %v1362, %v985
        %v1383 = vmul.f32 %v1367, %v985
        %v1384 = vmul.f32 %v1372, %v985
        %v1385 = vmul.f32 %v1377, %v985
        %v1386 = vadd.f32 %v1378, 1e-05
        %v1387 = vadd.f32 %v1379, 1e-05
        %v1388 = vadd.f32 %v1380, 1e-05
        %v1389 = vadd.f32 %v1381, 1e-05
        %v1390 = vadd.f32 %v1382, 1e-05
        %v1391 = vadd.f32 %v1383, 1e-05
        %v1392 = vadd.f32 %v1384, 1e-05
        %v1393 = vadd.f32 %v1385, 1e-05
        %v1394 = vrsqrt.pop %v1386
        %v1395 = vmul.f32 %v1394, %v1386
        %v1396 = vmul.f32 %v1395, %v1394
        %v1397 = vmul.f32 0.5, %v1396
        %v1398 = vsub.f32 1.5, %v1397
        %v1399 = vmul.f32 %v1394, %v1398
        %vm1400 = vweird.f32 %v1386
        %vm1401 = vweird.f32 %v1394
        %vm1402 = vmor %vm1400, %vm1401
        %v1403 = vsel %vm1402, %v1394, %v1399
        %v1404 = vrsqrt.pop %v1387
        %v1405 = vmul.f32 %v1404, %v1387
        %v1406 = vmul.f32 %v1405, %v1404
        %v1407 = vmul.f32 0.5, %v1406
        %v1408 = vsub.f32 1.5, %v1407
        %v1409 = vmul.f32 %v1404, %v1408
        %vm1410 = vweird.f32 %v1387
        %vm1411 = vweird.f32 %v1404
        %vm1412 = vmor %vm1410, %vm1411
        %v1413 = vsel %vm1412, %v1404, %v1409
        %v1414 = vrsqrt.pop %v1388
        %v1415 = vmul.f32 %v1414, %v1388
        %v1416 = vmul.f32 %v1415, %v1414
        %v1417 = vmul.f32 0.5, %v1416
        %v1418 = vsub.f32 1.5, %v1417
        %v1419 = vmul.f32 %v1414, %v1418
        %vm1420 = vweird.f32 %v1388
        %vm1421 = vweird.f32 %v1414
        %vm1422 = vmor %vm1420, %vm1421
        %v1423 = vsel %vm1422, %v1414, %v1419
        %v1424 = vrsqrt.pop %v1389
        %v1425 = vmul.f32 %v1424, %v1389
        %v1426 = vmul.f32 %v1425, %v1424
        %v1427 = vmul.f32 0.5, %v1426
        %v1428 = vsub.f32 1.5, %v1427
        %v1429 = vmul.f32 %v1424, %v1428
        %vm1430 = vweird.f32 %v1389
        %vm1431 = vweird.f32 %v1424
        %vm1432 = vmor %vm1430, %vm1431
        %v1433 = vsel %vm1432, %v1424, %v1429
        %v1434 = vrsqrt.pop %v1390
        %v1435 = vmul.f32 %v1434, %v1390
        %v1436 = vmul.f32 %v1435, %v1434
        %v1437 = vmul.f32 0.5, %v1436
        %v1438 = vsub.f32 1.5, %v1437
        %v1439 = vmul.f32 %v1434, %v1438
        %vm1440 = vweird.f32 %v1390
        %vm1441 = vweird.f32 %v1434
        %vm1442 = vmor %vm1440, %vm1441
        %v1443 = vsel %vm1442, %v1434, %v1439
        %v1444 = vrsqrt.pop %v1391
        %v1445 = vmul.f32 %v1444, %v1391
        %v1446 = vmul.f32 %v1445, %v1444
        %v1447 = vmul.f32 0.5, %v1446
        %v1448 = vsub.f32 1.5, %v1447
        %v1449 = vmul.f32 %v1444, %v1448
        %vm1450 = vweird.f32 %v1391
        %vm1451 = vweird.f32 %v1444
        %vm1452 = vmor %vm1450, %vm1451
        %v1453 = vsel %vm1452, %v1444, %v1449
        %v1454 = vrsqrt.pop %v1392
        %v1455 = vmul.f32 %v1454, %v1392
        %v1456 = vmul.f32 %v1455, %v1454
        %v1457 = vmul.f32 0.5, %v1456
        %v1458 = vsub.f32 1.5, %v1457
        %v1459 = vmul.f32 %v1454, %v1458
        %vm1460 = vweird.f32 %v1392
        %vm1461 = vweird.f32 %v1454
        %vm1462 = vmor %vm1460, %vm1461
        %v1463 = vsel %vm1462, %v1454, %v1459
        %v1464 = vrsqrt.pop %v1393
        %v1465 = vmul.f32 %v1464, %v1393
        %v1466 = vmul.f32 %v1465, %v1464
        %v1467 = vmul.f32 0.5, %v1466
        %v1468 = vsub.f32 1.5, %v1467
        %v1469 = vmul.f32 %v1464, %v1468
        %vm1470 = vweird.f32 %v1393
        %vm1471 = vweird.f32 %v1464
        %vm1472 = vmor %vm1470, %vm1471
        %v1473 = vsel %vm1472, %v1464, %v1469
        %v1474 = vmul.f32 %v1274, %v1403
        %v1475 = vmul.f32 %v1275, %v1403
        %v1476 = vmul.f32 %v1276, %v1403
        %v1477 = vmul.f32 %v1277, %v1403
        %v1478 = vmul.f32 %v1278, %v1413
        %v1479 = vmul.f32 %v1279, %v1413
        %v1480 = vmul.f32 %v1280, %v1413
        %v1481 = vmul.f32 %v1281, %v1413
        %v1482 = vmul.f32 %v1282, %v1423
        %v1483 = vmul.f32 %v1283, %v1423
        %v1484 = vmul.f32 %v1284, %v1423
        %v1485 = vmul.f32 %v1285, %v1423
        %v1486 = vmul.f32 %v1286, %v1433
        %v1487 = vmul.f32 %v1287, %v1433
        %v1488 = vmul.f32 %v1288, %v1433
        %v1489 = vmul.f32 %v1289, %v1433
        %v1490 = vmul.f32 %v1290, %v1443
        %v1491 = vmul.f32 %v1291, %v1443
        %v1492 = vmul.f32 %v1292, %v1443
        %v1493 = vmul.f32 %v1293, %v1443
        %v1494 = vmul.f32 %v1294, %v1453
        %v1495 = vmul.f32 %v1295, %v1453
        %v1496 = vmul.f32 %v1296, %v1453
        %v1497 = vmul.f32 %v1297, %v1453
        %v1498 = vmul.f32 %v1298, %v1463
        %v1499 = vmul.f32 %v1299, %v1463
        %v1500 = vmul.f32 %v1300, %v1463
        %v1501 = vmul.f32 %v1301, %v1463
        %v1502 = vmul.f32 %v1302, %v1473
        %v1503 = vmul.f32 %v1303, %v1473
        %v1504 = vmul.f32 %v1304, %v1473
        %v1505 = vmul.f32 %v1305, %v1473
        %v1506 = vadd.f32 %v1194, %v1474
        %v1507 = vadd.f32 %v1195, %v1475
        %v1508 = vadd.f32 %v1196, %v1476
        %v1509 = vadd.f32 %v1197, %v1477
        %v1510 = vadd.f32 %v1198, %v1478
        %v1511 = vadd.f32 %v1199, %v1479
        %v1512 = vadd.f32 %v1200, %v1480
        %v1513 = vadd.f32 %v1201, %v1481
        %v1514 = vadd.f32 %v1202, %v1482
        %v1515 = vadd.f32 %v1203, %v1483
        %v1516 = vadd.f32 %v1204, %v1484
        %v1517 = vadd.f32 %v1205, %v1485
        %v1518 = vadd.f32 %v1206, %v1486
        %v1519 = vadd.f32 %v1207, %v1487
        %v1520 = vadd.f32 %v1208, %v1488
        %v1521 = vadd.f32 %v1209, %v1489
        %v1522 = vadd.f32 %v1210, %v1490
        %v1523 = vadd.f32 %v1211, %v1491
        %v1524 = vadd.f32 %v1212, %v1492
        %v1525 = vadd.f32 %v1213, %v1493
        %v1526 = vadd.f32 %v1214, %v1494
        %v1527 = vadd.f32 %v1215, %v1495
        %v1528 = vadd.f32 %v1216, %v1496
        %v1529 = vadd.f32 %v1217, %v1497
        %v1530 = vadd.f32 %v1218, %v1498
        %v1531 = vadd.f32 %v1219, %v1499
        %v1532 = vadd.f32 %v1220, %v1500
        %v1533 = vadd.f32 %v1221, %v1501
        %v1534 = vadd.f32 %v1222, %v1502
        %v1535 = vadd.f32 %v1223, %v1503
        %v1536 = vadd.f32 %v1224, %v1504
        %v1537 = vadd.f32 %v1225, %v1505
        %v1538 = vld [vmem:[%s402] sm:$0xff]
        %v1539 = vld [vmem:[%s402 + $0x8] sm:$0xff]
        %v1540 = vld [vmem:[%s402 + $0x10] sm:$0xff]
        %v1541 = vld [vmem:[%s402 + $0x18] sm:$0xff]
        %v1542 = vld [vmem:[%s402 + $0x20] sm:$0xff]
        %v1543 = vld [vmem:[%s402 + $0x28] sm:$0xff]
        %v1544 = vld [vmem:[%s402 + $0x30] sm:$0xff]
        %v1545 = vld [vmem:[%s402 + $0x38] sm:$0xff]
        %v1546 = vmul.f32 %v1506, 0.5
        %v1547 = vmul.f32 %v1510, 0.5
        %v1548 = vmul.f32 %v1514, 0.5
        %v1549 = vmul.f32 %v1518, 0.5
        %v1550 = vmul.f32 %v1522, 0.5
        %v1551 = vmul.f32 %v1526, 0.5
        %v1552 = vmul.f32 %v1530, 0.5
        %v1553 = vmul.f32 %v1534, 0.5
        %v1554 = vtanh.pop %v1546
        %v1555 = vtanh.pop %v1547
        %v1556 = vtanh.pop %v1548
        %v1557 = vtanh.pop %v1549
        %v1558 = vtanh.pop %v1550
        %v1559 = vtanh.pop %v1551
        %v1560 = vtanh.pop %v1552
        %v1561 = vtanh.pop %v1553
        %v1562 = vmul.f32 %v1554, 0.5
        %v1563 = vmul.f32 %v1555, 0.5
        %v1564 = vmul.f32 %v1556, 0.5
        %v1565 = vmul.f32 %v1557, 0.5
        %v1566 = vmul.f32 %v1558, 0.5
        %v1567 = vmul.f32 %v1559, 0.5
        %v1568 = vmul.f32 %v1560, 0.5
        %v1569 = vmul.f32 %v1561, 0.5
        %v1570 = vadd.f32 %v1562, 0.5
        %v1571 = vadd.f32 %v1563, 0.5
        %v1572 = vadd.f32 %v1564, 0.5
        %v1573 = vadd.f32 %v1565, 0.5
        %v1574 = vadd.f32 %v1566, 0.5
        %v1575 = vadd.f32 %v1567, 0.5
        %v1576 = vadd.f32 %v1568, 0.5
        %v1577 = vadd.f32 %v1569, 0.5
        %v1578 = vmul.f32 %v1570, %v1538
        %v1579 = vmul.f32 %v1571, %v1539
        %v1580 = vmul.f32 %v1572, %v1540
        %v1581 = vmul.f32 %v1573, %v1541
        %v1582 = vmul.f32 %v1574, %v1542
        %v1583 = vmul.f32 %v1575, %v1543
        %v1584 = vmul.f32 %v1576, %v1544
        %v1585 = vmul.f32 %v1577, %v1545
        %v1586 = vmul.f32 %v1507, 0.5
        %v1587 = vmul.f32 %v1511, 0.5
        %v1588 = vmul.f32 %v1515, 0.5
        %v1589 = vmul.f32 %v1519, 0.5
        %v1590 = vmul.f32 %v1523, 0.5
        %v1591 = vmul.f32 %v1527, 0.5
        %v1592 = vmul.f32 %v1531, 0.5
        %v1593 = vmul.f32 %v1535, 0.5
        %v1594 = vtanh.pop %v1586
        %v1595 = vtanh.pop %v1587
        %v1596 = vtanh.pop %v1588
        %v1597 = vtanh.pop %v1589
        %v1598 = vtanh.pop %v1590
        %v1599 = vtanh.pop %v1591
        %v1600 = vtanh.pop %v1592
        %v1601 = vtanh.pop %v1593
        %v1602 = vmul.f32 %v1594, 0.5
        %v1603 = vmul.f32 %v1595, 0.5
        %v1604 = vmul.f32 %v1596, 0.5
        %v1605 = vmul.f32 %v1597, 0.5
        %v1606 = vmul.f32 %v1598, 0.5
        %v1607 = vmul.f32 %v1599, 0.5
        %v1608 = vmul.f32 %v1600, 0.5
        %v1609 = vmul.f32 %v1601, 0.5
        %v1610 = vadd.f32 %v1602, 0.5
        %v1611 = vadd.f32 %v1603, 0.5
        %v1612 = vadd.f32 %v1604, 0.5
        %v1613 = vadd.f32 %v1605, 0.5
        %v1614 = vadd.f32 %v1606, 0.5
        %v1615 = vadd.f32 %v1607, 0.5
        %v1616 = vadd.f32 %v1608, 0.5
        %v1617 = vadd.f32 %v1609, 0.5
        %v1618 = vtanh.pop %v1509
        %v1619 = vtanh.pop %v1513
        %v1620 = vtanh.pop %v1517
        %v1621 = vtanh.pop %v1521
        %v1622 = vtanh.pop %v1525
        %v1623 = vtanh.pop %v1529
        %v1624 = vtanh.pop %v1533
        %v1625 = vtanh.pop %v1537
        %v1626 = vmul.f32 %v1610, %v1618
        %v1627 = vmul.f32 %v1611, %v1619
        %v1628 = vmul.f32 %v1612, %v1620
        %v1629 = vmul.f32 %v1613, %v1621
        %v1630 = vmul.f32 %v1614, %v1622
        %v1631 = vmul.f32 %v1615, %v1623
        %v1632 = vmul.f32 %v1616, %v1624
        %v1633 = vmul.f32 %v1617, %v1625
        %v1634 = vadd.f32 %v1578, %v1626
        %v1635 = vadd.f32 %v1579, %v1627
        %v1636 = vadd.f32 %v1580, %v1628
        %v1637 = vadd.f32 %v1581, %v1629
        %v1638 = vadd.f32 %v1582, %v1630
        %v1639 = vadd.f32 %v1583, %v1631
        %v1640 = vadd.f32 %v1584, %v1632
        %v1641 = vadd.f32 %v1585, %v1633
        %v1642 = vmul.f32 %v1508, 0.5
        %v1643 = vmul.f32 %v1512, 0.5
        %v1644 = vmul.f32 %v1516, 0.5
        %v1645 = vmul.f32 %v1520, 0.5
        %v1646 = vmul.f32 %v1524, 0.5
        %v1647 = vmul.f32 %v1528, 0.5
        %v1648 = vmul.f32 %v1532, 0.5
        %v1649 = vmul.f32 %v1536, 0.5
        %v1650 = vtanh.pop %v1642
        %v1651 = vtanh.pop %v1643
        %v1652 = vtanh.pop %v1644
        %v1653 = vtanh.pop %v1645
        %v1654 = vtanh.pop %v1646
        %v1655 = vtanh.pop %v1647
        %v1656 = vtanh.pop %v1648
        %v1657 = vtanh.pop %v1649
        %v1658 = vmul.f32 %v1650, 0.5
        %v1659 = vmul.f32 %v1651, 0.5
        %v1660 = vmul.f32 %v1652, 0.5
        %v1661 = vmul.f32 %v1653, 0.5
        %v1662 = vmul.f32 %v1654, 0.5
        %v1663 = vmul.f32 %v1655, 0.5
        %v1664 = vmul.f32 %v1656, 0.5
        %v1665 = vmul.f32 %v1657, 0.5
        %v1666 = vadd.f32 %v1658, 0.5
        %v1667 = vadd.f32 %v1659, 0.5
        %v1668 = vadd.f32 %v1660, 0.5
        %v1669 = vadd.f32 %v1661, 0.5
        %v1670 = vadd.f32 %v1662, 0.5
        %v1671 = vadd.f32 %v1663, 0.5
        %v1672 = vadd.f32 %v1664, 0.5
        %v1673 = vadd.f32 %v1665, 0.5
        %1674 = vadd.xlane.f32.xlu0 %v1634
        %v1675 = vpop.xlane.xlu0 %1674
        %1676 = vadd.xlane.f32.xlu0 %v1635
        %v1677 = vpop.xlane.xlu0 %1676
        %1678 = vadd.xlane.f32.xlu0 %v1636
        %v1679 = vpop.xlane.xlu0 %1678
        %1680 = vadd.xlane.f32.xlu0 %v1637
        %v1681 = vpop.xlane.xlu0 %1680
        %1682 = vadd.xlane.f32.xlu0 %v1638
        %v1683 = vpop.xlane.xlu0 %1682
        %1684 = vadd.xlane.f32.xlu0 %v1639
        %v1685 = vpop.xlane.xlu0 %1684
        %1686 = vadd.xlane.f32.xlu0 %v1640
        %v1687 = vpop.xlane.xlu0 %1686
        %1688 = vadd.xlane.f32.xlu0 %v1641
        %v1689 = vpop.xlane.xlu0 %1688
        %v1690 = vrcp.pop 128.0
        %v1691 = vmul.f32 128.0, %v1690
        %v1692 = vsub.f32 1.0, %v1691
        %v1693 = vmul.f32 %v1690, %v1692
        %v1694 = vadd.f32 %v1690, %v1693
        %vm1695 = vweird.f32 %v1690
        %v1696 = vsel %vm1695, %v1690, %v1694
        %v1697 = vmul.f32 %v1675, %v1696
        %v1698 = vmul.f32 %v1677, %v1696
        %v1699 = vmul.f32 %v1679, %v1696
        %v1700 = vmul.f32 %v1681, %v1696
        %v1701 = vmul.f32 %v1683, %v1696
        %v1702 = vmul.f32 %v1685, %v1696
        %v1703 = vmul.f32 %v1687, %v1696
        %v1704 = vmul.f32 %v1689, %v1696
        %v1705 = vsub.f32 %v1634, %v1697
        %v1706 = vsub.f32 %v1635, %v1698
        %v1707 = vsub.f32 %v1636, %v1699
        %v1708 = vsub.f32 %v1637, %v1700
        %v1709 = vsub.f32 %v1638, %v1701
        %v1710 = vsub.f32 %v1639, %v1702
        %v1711 = vsub.f32 %v1640, %v1703
        %v1712 = vsub.f32 %v1641, %v1704
        %v1713 = vmul.f32 %v1705, %v1705
        %v1714 = vmul.f32 %v1706, %v1706
        %v1715 = vmul.f32 %v1707, %v1707
        %v1716 = vmul.f32 %v1708, %v1708
        %v1717 = vmul.f32 %v1709, %v1709
        %v1718 = vmul.f32 %v1710, %v1710
        %v1719 = vmul.f32 %v1711, %v1711
        %v1720 = vmul.f32 %v1712, %v1712
        %1721 = vadd.xlane.f32.xlu0 %v1713
        %v1722 = vpop.xlane.xlu0 %1721
        %1723 = vadd.xlane.f32.xlu0 %v1714
        %v1724 = vpop.xlane.xlu0 %1723
        %1725 = vadd.xlane.f32.xlu0 %v1715
        %v1726 = vpop.xlane.xlu0 %1725
        %1727 = vadd.xlane.f32.xlu0 %v1716
        %v1728 = vpop.xlane.xlu0 %1727
        %1729 = vadd.xlane.f32.xlu0 %v1717
        %v1730 = vpop.xlane.xlu0 %1729
        %1731 = vadd.xlane.f32.xlu0 %v1718
        %v1732 = vpop.xlane.xlu0 %1731
        %1733 = vadd.xlane.f32.xlu0 %v1719
        %v1734 = vpop.xlane.xlu0 %1733
        %1735 = vadd.xlane.f32.xlu0 %v1720
        %v1736 = vpop.xlane.xlu0 %1735
        %v1737 = vmul.f32 %v1722, %v1696
        %v1738 = vmul.f32 %v1724, %v1696
        %v1739 = vmul.f32 %v1726, %v1696
        %v1740 = vmul.f32 %v1728, %v1696
        %v1741 = vmul.f32 %v1730, %v1696
        %v1742 = vmul.f32 %v1732, %v1696
        %v1743 = vmul.f32 %v1734, %v1696
        %v1744 = vmul.f32 %v1736, %v1696
        %v1745 = vadd.f32 %v1737, 1e-05
        %v1746 = vadd.f32 %v1738, 1e-05
        %v1747 = vadd.f32 %v1739, 1e-05
        %v1748 = vadd.f32 %v1740, 1e-05
        %v1749 = vadd.f32 %v1741, 1e-05
        %v1750 = vadd.f32 %v1742, 1e-05
        %v1751 = vadd.f32 %v1743, 1e-05
        %v1752 = vadd.f32 %v1744, 1e-05
        %v1753 = vrsqrt.pop %v1745
        %v1754 = vmul.f32 %v1753, %v1745
        %v1755 = vmul.f32 %v1754, %v1753
        %v1756 = vmul.f32 0.5, %v1755
        %v1757 = vsub.f32 1.5, %v1756
        %v1758 = vmul.f32 %v1753, %v1757
        %vm1759 = vweird.f32 %v1745
        %vm1760 = vweird.f32 %v1753
        %vm1761 = vmor %vm1759, %vm1760
        %v1762 = vsel %vm1761, %v1753, %v1758
        %v1763 = vrsqrt.pop %v1746
        %v1764 = vmul.f32 %v1763, %v1746
        %v1765 = vmul.f32 %v1764, %v1763
        %v1766 = vmul.f32 0.5, %v1765
        %v1767 = vsub.f32 1.5, %v1766
        %v1768 = vmul.f32 %v1763, %v1767
        %vm1769 = vweird.f32 %v1746
        %vm1770 = vweird.f32 %v1763
        %vm1771 = vmor %vm1769, %vm1770
        %v1772 = vsel %vm1771, %v1763, %v1768
        %v1773 = vrsqrt.pop %v1747
        %v1774 = vmul.f32 %v1773, %v1747
        %v1775 = vmul.f32 %v1774, %v1773
        %v1776 = vmul.f32 0.5, %v1775
        %v1777 = vsub.f32 1.5, %v1776
        %v1778 = vmul.f32 %v1773, %v1777
        %vm1779 = vweird.f32 %v1747
        %vm1780 = vweird.f32 %v1773
        %vm1781 = vmor %vm1779, %vm1780
        %v1782 = vsel %vm1781, %v1773, %v1778
        %v1783 = vrsqrt.pop %v1748
        %v1784 = vmul.f32 %v1783, %v1748
        %v1785 = vmul.f32 %v1784, %v1783
        %v1786 = vmul.f32 0.5, %v1785
        %v1787 = vsub.f32 1.5, %v1786
        %v1788 = vmul.f32 %v1783, %v1787
        %vm1789 = vweird.f32 %v1748
        %vm1790 = vweird.f32 %v1783
        %vm1791 = vmor %vm1789, %vm1790
        %v1792 = vsel %vm1791, %v1783, %v1788
        %v1793 = vrsqrt.pop %v1749
        %v1794 = vmul.f32 %v1793, %v1749
        %v1795 = vmul.f32 %v1794, %v1793
        %v1796 = vmul.f32 0.5, %v1795
        %v1797 = vsub.f32 1.5, %v1796
        %v1798 = vmul.f32 %v1793, %v1797
        %vm1799 = vweird.f32 %v1749
        %vm1800 = vweird.f32 %v1793
        %vm1801 = vmor %vm1799, %vm1800
        %v1802 = vsel %vm1801, %v1793, %v1798
        %v1803 = vrsqrt.pop %v1750
        %v1804 = vmul.f32 %v1803, %v1750
        %v1805 = vmul.f32 %v1804, %v1803
        %v1806 = vmul.f32 0.5, %v1805
        %v1807 = vsub.f32 1.5, %v1806
        %v1808 = vmul.f32 %v1803, %v1807
        %vm1809 = vweird.f32 %v1750
        %vm1810 = vweird.f32 %v1803
        %vm1811 = vmor %vm1809, %vm1810
        %v1812 = vsel %vm1811, %v1803, %v1808
        %v1813 = vrsqrt.pop %v1751
        %v1814 = vmul.f32 %v1813, %v1751
        %v1815 = vmul.f32 %v1814, %v1813
        %v1816 = vmul.f32 0.5, %v1815
        %v1817 = vsub.f32 1.5, %v1816
        %v1818 = vmul.f32 %v1813, %v1817
        %vm1819 = vweird.f32 %v1751
        %vm1820 = vweird.f32 %v1813
        %vm1821 = vmor %vm1819, %vm1820
        %v1822 = vsel %vm1821, %v1813, %v1818
        %v1823 = vrsqrt.pop %v1752
        %v1824 = vmul.f32 %v1823, %v1752
        %v1825 = vmul.f32 %v1824, %v1823
        %v1826 = vmul.f32 0.5, %v1825
        %v1827 = vsub.f32 1.5, %v1826
        %v1828 = vmul.f32 %v1823, %v1827
        %vm1829 = vweird.f32 %v1752
        %vm1830 = vweird.f32 %v1823
        %vm1831 = vmor %vm1829, %vm1830
        %v1832 = vsel %vm1831, %v1823, %v1828
        %v1833 = vmul.f32 %v1705, %v1762
        %v1834 = vmul.f32 %v1706, %v1772
        %v1835 = vmul.f32 %v1707, %v1782
        %v1836 = vmul.f32 %v1708, %v1792
        %v1837 = vmul.f32 %v1709, %v1802
        %v1838 = vmul.f32 %v1710, %v1812
        %v1839 = vmul.f32 %v1711, %v1822
        %v1840 = vmul.f32 %v1712, %v1832
        %v1841 = vtanh.pop %v1833
        %v1842 = vtanh.pop %v1834
        %v1843 = vtanh.pop %v1835
        %v1844 = vtanh.pop %v1836
        %v1845 = vtanh.pop %v1837
        %v1846 = vtanh.pop %v1838
        %v1847 = vtanh.pop %v1839
        %v1848 = vtanh.pop %v1840
        %v1849 = vmul.f32 %v1666, %v1841
        %v1850 = vmul.f32 %v1667, %v1842
        %v1851 = vmul.f32 %v1668, %v1843
        %v1852 = vmul.f32 %v1669, %v1844
        %v1853 = vmul.f32 %v1670, %v1845
        %v1854 = vmul.f32 %v1671, %v1846
        %v1855 = vmul.f32 %v1672, %v1847
        %v1856 = vmul.f32 %v1673, %v1848
        %1857 = vst [vmem:[%s458] sm:$0xff] %v1849
        %1858 = vst [vmem:[%s458 + $0x8] sm:$0xff] %v1850
        %1859 = vst [vmem:[%s458 + $0x10] sm:$0xff] %v1851
        %1860 = vst [vmem:[%s458 + $0x18] sm:$0xff] %v1852
        %1861 = vst [vmem:[%s458 + $0x20] sm:$0xff] %v1853
        %1862 = vst [vmem:[%s458 + $0x28] sm:$0xff] %v1854
        %1863 = vst [vmem:[%s458 + $0x30] sm:$0xff] %v1855
        %1864 = vst [vmem:[%s458 + $0x38] sm:$0xff] %v1856
        %1865 = vst [vmem:[%s465] sm:$0xff] %v1634
        %1866 = vst [vmem:[%s465 + $0x8] sm:$0xff] %v1635
        %1867 = vst [vmem:[%s465 + $0x10] sm:$0xff] %v1636
        %1868 = vst [vmem:[%s465 + $0x18] sm:$0xff] %v1637
        %1869 = vst [vmem:[%s465 + $0x20] sm:$0xff] %v1638
        %1870 = vst [vmem:[%s465 + $0x28] sm:$0xff] %v1639
        %1871 = vst [vmem:[%s465 + $0x30] sm:$0xff] %v1640
        %1872 = vst [vmem:[%s465 + $0x38] sm:$0xff] %v1641
        %s1873 = sand.u32 %s204, 1
        %s1874 = scalar_lea.sflag [#allocation4], %s1873
        %s1875 = sand.u32 %s204, 1
        %s1876 = smul.addr %s1875, 64
        %s1877 = scalar_lea.vmem [#allocation13], %s1876
        %s1878 = sand.u32 %s230, 1
        %s1879 = scalar_lea.sflag [#allocation15], %s1878
        %s1880 = sand.u32 %s230, 1
        %s1881 = smul.addr %s1880, 64
        %s1882 = scalar_lea.vmem [#allocation14], %s1881
        // Predicated region
        $region73: #{atn_lstm_cell.1} parent=47 // pred_check
          %p1883 = pneg %p214
        $region74: #{atn_lstm_cell.1} parent=47 // pred_check_branch
          %1885 = sbr.rel (%p1883) target = $region76
        $region75: #{atn_lstm_cell.1} parent=47 // pred_region
          %s1886 = smul.u32 8, %s34
          %1888 = vsyncadd %s1874, 0
          %s1889 = smul.addr %s1886, 8
          %s1890 = scalar_lea.hbm %s7, %s1889
          %s1891 = sshll.u32 %s1877, 4
          %s1892 = int_to_ptr.vmem [resolvable:$true] %s1891
          %s1893 = sshll.u32 %s1890, 4
          %s1894 = int_to_ptr.hbm [resolvable:$true] %s1893
          %1899 = dma.vmem_to_hbm [thread:$0]  %s1892, 1024, %s1894, %s1874, 128, 128, 8
        $region76: #{atn_lstm_cell.1} parent=47 // pred_fallthru
          _
        // Predicated region
        $region77: #{atn_lstm_cell.1} parent=47 // pred_check
          %p1900 = pneg %p240
        $region78: #{atn_lstm_cell.1} parent=47 // pred_check_branch
          %1902 = sbr.rel (%p1900) target = $region80
        $region79: #{atn_lstm_cell.1} parent=47 // pred_region
          %s1903 = smul.u32 8, %s34
          %1905 = vsyncadd %s1879, 0
          %s1906 = smul.addr %s1903, 8
          %s1907 = scalar_lea.hbm %s8, %s1906
          %s1908 = sshll.u32 %s1882, 4
          %s1909 = int_to_ptr.vmem [resolvable:$true] %s1908
          %s1910 = sshll.u32 %s1907, 4
          %s1911 = int_to_ptr.hbm [resolvable:$true] %s1910
          %1916 = dma.vmem_to_hbm [thread:$0]  %s1909, 1024, %s1911, %s1879, 128, 128, 8
        $region80: #{atn_lstm_cell.1} parent=47 // pred_fallthru
          _
      $region48: #{atn_lstm_cell.1} parent=5 // pred_fallthru
        _
      %p1917 = scmp.le.s32.totalorder 2, %s29
      // Predicated region
      $region81: #{atn_lstm_cell.1} parent=5 // pred_check
        %p1918 = pneg %p1917
      $region82: #{atn_lstm_cell.1} parent=5 // pred_check_branch
        %1920 = sbr.rel (%p1918) target = $region84
      $region83: #{atn_lstm_cell.1} parent=5 // pred_region
        %s1921 = ssub.s32 %s29, 2
        // Predicated region
        $region85: #{atn_lstm_cell.1} parent=83 // pred_check
          %p1922 = pneg %p220
        $region86: #{atn_lstm_cell.1} parent=83 // pred_check_branch
          %1924 = sbr.rel (%p1922) target = $region88
        $region87: #{atn_lstm_cell.1} parent=83 // pred_region
          %s1925 = sand.u32 %s205, 1
          %s1926 = scalar_lea.sflag [#allocation4], %s1925
          %s1927 = sand.u32 %s205, 1
          %s1928 = smul.addr %s1927, 64
          %s1929 = scalar_lea.vmem [#allocation13], %s1928
          %1931 = dma.done %s1926, 1024
        $region88: #{atn_lstm_cell.1} parent=83 // pred_fallthru
          _
        // Predicated region
        $region89: #{atn_lstm_cell.1} parent=83 // pred_check
          %p1932 = pneg %p246
        $region90: #{atn_lstm_cell.1} parent=83 // pred_check_branch
          %1934 = sbr.rel (%p1932) target = $region92
        $region91: #{atn_lstm_cell.1} parent=83 // pred_region
          %s1935 = sand.u32 %s231, 1
          %s1936 = scalar_lea.sflag [#allocation15], %s1935
          %s1937 = sand.u32 %s231, 1
          %s1938 = smul.addr %s1937, 64
          %s1939 = scalar_lea.vmem [#allocation14], %s1938
          %1941 = dma.done %s1936, 1024
        $region92: #{atn_lstm_cell.1} parent=83 // pred_fallthru
          _
      $region84: #{atn_lstm_cell.1} parent=5 // pred_fallthru
        _
    $region6: #{atn_lstm_cell.1} parent=1 // loop_footer
      %s33 = sadd.s32 1, %s29
    $region7: #{atn_lstm_cell.1} parent=1 // loop_footer_branch
      %28 = sbr.rel target = $region3
    $region8: #{atn_lstm_cell.1} parent=1 // loop_exit
      _
    %1942 = vsyncpa [#allocation3], 1
    %s1943 = scalar_lea.sflag [#allocation3], 1
    %1944 = vsyncpa %s1943, 1
    %1945 = vsyncpa [#allocation6], 1
    %s1946 = scalar_lea.sflag [#allocation6], 1
    %1947 = vsyncpa %s1946, 1
    %1948 = vsyncpa [#allocation9], 1
    %1949 = vsyncpa [#allocation12], 1
    %1950 = vsyncpa [#allocation4], 1
    %s1951 = scalar_lea.sflag [#allocation4], 1
    %1952 = vsyncpa %s1951, 1
    %1953 = vsyncpa [#allocation15], 1
    %s1954 = scalar_lea.sflag [#allocation15], 1
    %1955 = vsyncpa %s1954, 1

</llo_original>
